<compile_context>
chip_gen: v6e
topology: v6e:2x2x1
jax: 0.10.0
libtpu: 0.0.40
codegen_flags: <defaults>
</compile_context>

<pallas_src>
import functools

import jax
import jax.numpy as jnp
import numpy as np
from jax.experimental import pallas as pl
from jax.experimental.pallas import tpu as pltpu


def _cdiv(a, b):
    return -(-a // b)


def _round_up(a, b):
    return _cdiv(a, b) * b


def _conv_bn_kernel(x_ref, w_ref, shift_ref, o_ref, scratch_ref, *,
                    kh, kw, cin, row_tile, wp, extra, use_relu, direct, compat):
    """One (batch, output-row-tile) grid step.

    x_ref:      (1, Hp*Wp, Cin)        bf16 (f32 in compat)  whole zero-padded image
    w_ref:      (kh*kw*Cin, Cout_p)    bf16  im2col-packed weights * BN scale
    shift_ref:  (1, Cout_p)            f32   (conv_bias - mean) * scale + beta
    o_ref:      (1, M, Cout_p)                lane-dense output tile (M = row_tile*Wp)
    scratch_ref: (M, kh*kw*Cin) bf16 im2col slab   (slab path, cin < 128)
                 (M, Cout_p)    f32  accumulator   (direct path, cin >= 128)
    """
    t = pl.program_id(1)
    m = row_tile * wp
    row0 = t * row_tile

    if compat:
        # Conservative gather: one dynamic-slice load per tap (previously validated path).
        for dh in range(kh):
            for dw in range(kw):
                col = dh * kw + dw
                start = (row0 + dh) * wp + dw
                if dw == 0:
                    start = pl.multiple_of(start, 8)   # wp is a multiple of 8
                scratch_ref[:, col * cin:(col + 1) * cin] = (
                    x_ref[0, pl.ds(start, m), :].astype(jnp.bfloat16))
        acc = jax.lax.dot_general(
            scratch_ref[...], w_ref[...],
            dimension_numbers=(((1,), (0,)), ((), ())),
            preferred_element_type=jnp.float32)
    else:
        # One sublane-aligned window load per kernel row; the kw column shifts are
        # derived in-register with static slices (off the critical load slot).
        for dh in range(kh):
            start = pl.multiple_of((row0 + dh) * wp, 8)
            win = x_ref[0, pl.ds(start, m + extra), :]          # bf16
            for dw in range(kw):
                col = dh * kw + dw
                tap = win if extra == 0 else jax.lax.slice_in_dim(win, dw, dw + m, axis=0)
                if direct:
                    part = jax.lax.dot_general(
                        tap, w_ref[col * cin:(col + 1) * cin, :],
                        dimension_numbers=(((1,), (0,)), ((), ())),
                        preferred_element_type=jnp.float32)
                    if col == 0:
                        scratch_ref[...] = part
                    else:
                        scratch_ref[...] += part
                else:
                    scratch_ref[:, col * cin:(col + 1) * cin] = tap
        if direct:
            acc = scratch_ref[...]
        else:
            acc = jax.lax.dot_general(
                scratch_ref[...], w_ref[...],
                dimension_numbers=(((1,), (0,)), ((), ())),
                preferred_element_type=jnp.float32)

    # BN scale is already folded into the weights; epilogue is shift (+ relu) only.
    y = acc + shift_ref[0]
    if use_relu:
        y = jnp.maximum(y, 0.0)
    o_ref[0] = y.astype(o_ref.dtype)


def conv2d_block_nhwc(x_nhwc, weight_oihw, conv_bias, bn_gamma, bn_beta,
                      bn_mean, bn_var, *, eps=1e-5, act_fn=None, row_tile=None,
                      out_dtype=jnp.bfloat16):
    """Fused Conv2d(stride=1, padding=0) + inference BatchNorm2d + optional act.

    NHWC in / NHWC out. Returns (N, OH, OW, Cout) in `out_dtype` (default bf16)."""
    if act_fn not in (None, "relu"):
        # TODO(synk): other activations from the module's get_act_fn registry.
        raise NotImplementedError(f"act_fn={act_fn!r} not supported")

    n, h, w, cin = x_nhwc.shape
    cout, cin_w, kh, kw = weight_oihw.shape
    assert cin == cin_w, "grouped conv not supported"
    oh, ow = h - kh + 1, w - kw + 1
    assert oh >= 1 and ow >= 1

    wp = _round_up(w, 8)              # flattened row stride (sublane friendly)
    cout_p = _round_up(cout, 128)     # lane-dense output channels
    k_dim = kh * kw * cin             # fused contraction dim (all taps x Cin)
    direct = (cin >= 128) and (cin % 8 == 0)   # skip the im2col slab for large Cin
    extra = 0 if kw == 1 else _round_up(kw - 1, 8)   # overread slack per window (<= wp)
    out_itemsize = jnp.dtype(out_dtype).itemsize

    # ---- generation-aware VMEM budget -----------------------------------------------
    vmem_cap = 64 * 2**20             # conservative default (v7x per-TensorCore)
    try:
        vmem_cap = int(getattr(pltpu.get_tpu_info(), "vmem_capacity_bytes", vmem_cap))
    except Exception:
        pass
    vmem_budget = min(100 * 2**20, max(16 * 2**20, (vmem_cap * 3) // 4))
    target_m = 1024 if vmem_cap >= 96 * 2**20 else 512   # bigger tiles on v5e/v6e

    def _working_set(t):
        m = t * wp
        oh_p_t = _cdiv(oh, t) * t
        hp_t = oh_p_t + kh
        xb = hp_t * wp * cin * 2                 # resident bf16 image (single-buffered)
        wb = k_dim * cout_p * 2                  # bf16 weights (single-buffered)
        sb = 2 * cout_p * 4                      # shift
        ob = 2 * m * cout_p * out_itemsize       # output tile (double-buffered)
        scr = m * cout_p * 4 if direct else m * k_dim * 2
        win = (m + extra) * cin * 2              # in-register window (rough)
        return xb + wb + sb + ob + scr + win

    # ---- pick the output-row tile -----------------------------------------------------
    if row_tile is None:
        row_tile = max(1, min(oh, _cdiv(target_m, wp)))
        while row_tile > 1 and _working_set(row_tile) > vmem_budget // 2:
            row_tile = max(1, row_tile // 2)
    row_tile = max(1, min(int(row_tile), oh))
    n_tiles = _cdiv(oh, row_tile)
    oh_p = n_tiles * row_tile         # output rows padded to a multiple of row_tile
    hp = oh_p + kh                    # input rows kept (slack row covers the aligned-
                                      #  window overread `extra <= wp` of the last tile)
    m_tile = row_tile * wp

    # ---- layout prep (plain JAX glue; XLA fuses it around the pallas_call) ------------
    # Activations go to bf16 here (the MXU consumes bf16 anyway): halves DMA + VMEM.
    x_pad = jnp.pad(x_nhwc.astype(jnp.bfloat16),
                    ((0, 0), (0, hp - h), (0, wp - w), (0, 0)))
    x_flat = x_pad.reshape(n, hp * wp, cin)

    scale = bn_gamma.astype(jnp.float32) / jnp.sqrt(bn_var.astype(jnp.float32) + eps)
    shift = ((conv_bias - bn_mean) * scale + bn_beta).astype(jnp.float32)
    # Fold the BN scale into the conv weights (per output channel).
    w_mat = jnp.transpose(weight_oihw, (2, 3, 1, 0)).reshape(k_dim, cout)
    w_mat = w_mat.astype(jnp.float32) * scale[None, :]
    w_mat = jnp.pad(w_mat, ((0, 0), (0, cout_p - cout))).astype(jnp.bfloat16)
    shift2 = jnp.pad(shift, (0, cout_p - cout)).reshape(1, cout_p)

    kernel_base = functools.partial(
        _conv_bn_kernel, kh=kh, kw=kw, cin=cin, row_tile=row_tile, wp=wp,
        extra=extra, use_relu=(act_fn == "relu"))

    def _run(compat):
        use_direct = direct and not compat
        scratch = (pltpu.VMEM((m_tile, cout_p), jnp.float32) if use_direct
                   else pltpu.VMEM((m_tile, k_dim), jnp.bfloat16))
        kernel = functools.partial(kernel_base, direct=use_direct, compat=compat)

        def _spec(shape, index_map):
            if compat:
                return pl.BlockSpec(shape, index_map)
            # Grid-invariant (per row-tile) blocks: single-buffer to save VMEM.
            return pl.BlockSpec(shape, index_map, pipeline_mode=pl.Buffered(1))

        x_in = x_flat if not compat else x_flat.astype(jnp.float32)
        return pl.pallas_call(
            kernel,
            out_shape=jax.ShapeDtypeStruct((n, oh_p * wp, cout_p), out_dtype),
            grid_spec=pltpu.PrefetchScalarGridSpec(
                num_scalar_prefetch=0,
                grid=(n, n_tiles),            # batch leads -> megacore prefers batch axis
                in_specs=[
                    # Whole (padded) bf16 image per batch element; VMEM-resident across t.
                    _spec((1, hp * wp, cin), lambda b, t: (b, 0, 0)),
                    _spec((k_dim, cout_p), lambda b, t: (0, 0)),
                    _spec((1, cout_p), lambda b, t: (0, 0)),
                ],
                out_specs=pl.BlockSpec((1, m_tile, cout_p), lambda b, t: (b, t, 0)),
                scratch_shapes=[scratch],
            ),
            compiler_params=pltpu.CompilerParams(
                dimension_semantics=("parallel", "parallel"),
                vmem_limit_bytes=int(vmem_budget)),
        )(x_in, w_mat, shift2)

    try:
        out_flat = _run(compat=False)
    except Exception:
        # Fallback to the previously-validated conservative configuration
        # (per-tap gather, default double buffering, f32 x block). Same semantics.
        out_flat = _run(compat=True)

    # Un-flatten and drop padding: garbage columns >= OW (column "wrap" of the flattened
    # layout), padded rows >= OH, and zero channels >= Cout.
    out = out_flat.reshape(n, oh_p, wp, cout_p)[:, :oh, :ow, :cout]
    return out


def conv2d_block(x_nchw, weight_oihw, conv_bias, bn_gamma, bn_beta, bn_mean, bn_var,
                 *, eps=1e-5, act_fn=None, static_padding=False, row_tile=None,
                 out_dtype=jnp.bfloat16):
    """PyTorch-layout entry point (NCHW in / NCHW out), matching Conv2dBlock.forward."""
    if static_padding:
        # Conv2dStaticSamePadding with stride=1, dilation=1.
        kh, kw = weight_oihw.shape[-2:]
        ph, pw = kh - 1, kw - 1
        top, left = ph >> 1, pw >> 1
        x_nchw = jnp.pad(x_nchw, ((0, 0), (0, 0), (top, ph - top), (left, pw - left)))
    x_nhwc = jnp.transpose(x_nchw, (0, 2, 3, 1))
    out_nhwc = conv2d_block_nhwc(x_nhwc, weight_oihw, conv_bias, bn_gamma, bn_beta,
                                 bn_mean, bn_var, eps=eps, act_fn=act_fn,
                                 row_tile=row_tile, out_dtype=out_dtype)
    return jnp.transpose(out_nhwc, (0, 3, 1, 2))


def _reference(x, w, b, gamma, beta, mean, var, *, eps=1e-5, act_fn=None,
               static_padding=False, quantize_bf16=False):
    if quantize_bf16:
        x = x.astype(jnp.bfloat16).astype(jnp.float32)
        w = w.astype(jnp.bfloat16).astype(jnp.float32)
    if static_padding:
        kh, kw = w.shape[-2:]
        ph, pw = kh - 1, kw - 1
        pad = ((ph >> 1, ph - (ph >> 1)), (pw >> 1, pw - (pw >> 1)))
    else:
        pad = ((0, 0), (0, 0))
    y = jax.lax.conv_general_dilated(
        x, w, window_strides=(1, 1), padding=pad,
        dimension_numbers=("NCHW", "OIHW", "NCHW"))
    y = y + b[None, :, None, None]
    y = (y - mean[None, :, None, None]) / jnp.sqrt(var + eps)[None, :, None, None]
    y = y * gamma[None, :, None, None] + beta[None, :, None, None]
    if act_fn == "relu":
        y = jnp.maximum(y, 0.0)
    return y


if __name__ == "__main__":
    key = jax.random.PRNGKey(0)

    def make_case(k, n, cin, cout, ksize, h, w, wscale):
        kx, kw_, kb, kg, kbe, km, kv = jax.random.split(k, 7)
        x = jax.random.normal(kx, (n, cin, h, w), dtype=jnp.float32)
        weight = jax.random.normal(kw_, (cout, cin, ksize, ksize), jnp.float32) * wscale
        bias = jax.random.normal(kb, (cout,), jnp.float32) * 0.1
        gamma = 1.0 + 0.1 * jax.random.normal(kg, (cout,), jnp.float32)
        beta = 0.1 * jax.random.normal(kbe, (cout,), jnp.float32)
        mean = 0.1 * jax.random.normal(km, (cout,), jnp.float32)
        var = jnp.abs(jax.random.normal(kv, (cout,), jnp.float32)) + 0.5
        return x, weight, bias, gamma, beta, mean, var

    k1, k2 = jax.random.split(key)
    cases = [
        # Small-cin layer: exercises the im2col-slab path (Conv2dBlock(4, 8, 3)).
        (make_case(k1, 2, 4, 8, 3, 16, 16, 0.1), [
            dict(act_fn=None, static_padding=False, row_tile=8, out_dtype=jnp.float32),
            dict(act_fn="relu", static_padding=False, row_tile=None, out_dtype=jnp.bfloat16),
            dict(act_fn=None, static_padding=True, row_tile=None, out_dtype=jnp.bfloat16),
        ]),
        # cin >= 128: exercises the direct (no-slab) per-tap MXU accumulation path.
        (make_case(k2, 1, 128, 16, 3, 12, 12, 0.02), [
            dict(act_fn="relu", static_padding=True, row_tile=None, out_dtype=jnp.bfloat16),
        ]),
    ]

    for (x, weight, bias, gamma, beta, mean, var), cfgs in cases:
        for cfg in cfgs:
            out = conv2d_block(x, weight, bias, gamma, beta, mean, var, eps=1e-5, **cfg)
            out = jax.block_until_ready(out)
            out_f32 = np.asarray(out.astype(jnp.float32))

            ref_kwargs = dict(eps=1e-5, act_fn=cfg["act_fn"],
                              static_padding=cfg["static_padding"])
            # Check vs. a reference using the same bf16-rounded matmul operands
            # (bf16 output rounding + BN-scale folding accounted for by the tolerance).
            ref_bf16 = _reference(x, weight, bias, gamma, beta, mean, var,
                                  quantize_bf16=True, **ref_kwargs)
            np.testing.assert_allclose(out_f32, np.asarray(ref_bf16),
                                       rtol=2e-2, atol=2e-2)
            # Looser sanity check vs. exact f32 PyTorch semantics.
            ref_f32 = _reference(x, weight, bias, gamma, beta, mean, var,
                                 quantize_bf16=False, **ref_kwargs)
            np.testing.assert_allclose(out_f32, np.asarray(ref_f32),
                                       rtol=5e-2, atol=5e-2)

    print("KERNEL_OK")
</pallas_src>

<mosaic_0001>
module attributes {stable_mosaic.version = 11 : i64} {
  func.func @_conv_bn_kernel(%arg0: i32, %arg1: i32, %arg2: memref<1x304x4xbf16, #tpu.memory_space<vmem>>, %arg3: memref<36x128xbf16, #tpu.memory_space<vmem>>, %arg4: memref<1x128xf32, #tpu.memory_space<vmem>>, %arg5: memref<1x128x128xf32, #tpu.memory_space<vmem>>, %arg6: memref<128x36xbf16, #tpu.memory_space<vmem>>) attributes {dimension_semantics = [#tpu.dimension_semantics<parallel>, #tpu.dimension_semantics<parallel>], iteration_bounds = array<i64: 2, 2>, scalar_prefetch = 0 : i64, scratch_operands = 1 : i64, tpu.core_type = #tpu.core_type<tc>, window_params = [{pipeline_mode = #tpu.pipeline_mode<synchronous>, transform_indices = @transform_0, window_bounds = array<i64: 1, 304, 4>}, {pipeline_mode = #tpu.pipeline_mode<synchronous>, transform_indices = @transform_1, window_bounds = array<i64: 36, 128>}, {pipeline_mode = #tpu.pipeline_mode<synchronous>, transform_indices = @transform_2, window_bounds = array<i64: 1, 128>}, {transform_indices = @transform_3, window_bounds = array<i64: 1, 128, 128>}]} {
    %c8_i32 = arith.constant 8 : i32
    %0 = arith.muli %arg1, %c8_i32 : i32
    %c0_i32 = arith.constant 0 : i32
    %1 = arith.addi %0, %c0_i32 : i32
    %c16_i32 = arith.constant 16 : i32
    %2 = arith.muli %1, %c16_i32 : i32
    %3 = tpu.assume_multiple %2, 8 : i32
    %c0 = arith.constant 0 : index
    %4 = arith.index_cast %3 : i32 to index
    %c0_0 = arith.constant 0 : index
    %5 = vector.load %arg2[%c0, %4, %c0_0] : memref<1x304x4xbf16, #tpu.memory_space<vmem>>, vector<1x136x4xbf16>
    %6 = vector.shape_cast %5 : vector<1x136x4xbf16> to vector<136x4xbf16>
    %7 = vector.extract_strided_slice %6 {offsets = [0, 0], sizes = [128, 4], strides = [1, 1]} : vector<136x4xbf16> to vector<128x4xbf16>
    %c0_1 = arith.constant 0 : index
    %c0_2 = arith.constant 0 : index
    %8 = vector.load %arg6[%c0_1, %c0_2] : memref<128x36xbf16, #tpu.memory_space<vmem>>, vector<128x4xbf16>
    tpu.vector_store %arg6[%c0_1, %c0_2], %7 {strides = array<i32>} : memref<128x36xbf16, #tpu.memory_space<vmem>>, vector<128x4xbf16>,
    %9 = vector.extract_strided_slice %6 {offsets = [1, 0], sizes = [128, 4], strides = [1, 1]} : vector<136x4xbf16> to vector<128x4xbf16>
    %c0_3 = arith.constant 0 : index
    %c4 = arith.constant 4 : index
    %10 = vector.load %arg6[%c0_3, %c4] : memref<128x36xbf16, #tpu.memory_space<vmem>>, vector<128x4xbf16>
    tpu.vector_store %arg6[%c0_3, %c4], %9 {strides = array<i32>} : memref<128x36xbf16, #tpu.memory_space<vmem>>, vector<128x4xbf16>,
    %11 = vector.extract_strided_slice %6 {offsets = [2, 0], sizes = [128, 4], strides = [1, 1]} : vector<136x4xbf16> to vector<128x4xbf16>
    %c0_4 = arith.constant 0 : index
    %c8 = arith.constant 8 : index
    %12 = vector.load %arg6[%c0_4, %c8] : memref<128x36xbf16, #tpu.memory_space<vmem>>, vector<128x4xbf16>
    tpu.vector_store %arg6[%c0_4, %c8], %11 {strides = array<i32>} : memref<128x36xbf16, #tpu.memory_space<vmem>>, vector<128x4xbf16>,
    %c1_i32 = arith.constant 1 : i32
    %13 = arith.addi %0, %c1_i32 : i32
    %c16_i32_5 = arith.constant 16 : i32
    %14 = arith.muli %13, %c16_i32_5 : i32
    %15 = tpu.assume_multiple %14, 8 : i32
    %c0_6 = arith.constant 0 : index
    %16 = arith.index_cast %15 : i32 to index
    %c0_7 = arith.constant 0 : index
    %17 = vector.load %arg2[%c0_6, %16, %c0_7] : memref<1x304x4xbf16, #tpu.memory_space<vmem>>, vector<1x136x4xbf16>
    %18 = vector.shape_cast %17 : vector<1x136x4xbf16> to vector<136x4xbf16>
    %19 = vector.extract_strided_slice %18 {offsets = [0, 0], sizes = [128, 4], strides = [1, 1]} : vector<136x4xbf16> to vector<128x4xbf16>
    %c0_8 = arith.constant 0 : index
    %c12 = arith.constant 12 : index
    %20 = vector.load %arg6[%c0_8, %c12] : memref<128x36xbf16, #tpu.memory_space<vmem>>, vector<128x4xbf16>
    tpu.vector_store %arg6[%c0_8, %c12], %19 {strides = array<i32>} : memref<128x36xbf16, #tpu.memory_space<vmem>>, vector<128x4xbf16>,
    %21 = vector.extract_strided_slice %18 {offsets = [1, 0], sizes = [128, 4], strides = [1, 1]} : vector<136x4xbf16> to vector<128x4xbf16>
    %c0_9 = arith.constant 0 : index
    %c16 = arith.constant 16 : index
    %22 = vector.load %arg6[%c0_9, %c16] : memref<128x36xbf16, #tpu.memory_space<vmem>>, vector<128x4xbf16>
    tpu.vector_store %arg6[%c0_9, %c16], %21 {strides = array<i32>} : memref<128x36xbf16, #tpu.memory_space<vmem>>, vector<128x4xbf16>,
    %23 = vector.extract_strided_slice %18 {offsets = [2, 0], sizes = [128, 4], strides = [1, 1]} : vector<136x4xbf16> to vector<128x4xbf16>
    %c0_10 = arith.constant 0 : index
    %c20 = arith.constant 20 : index
    %24 = vector.load %arg6[%c0_10, %c20] : memref<128x36xbf16, #tpu.memory_space<vmem>>, vector<128x4xbf16>
    tpu.vector_store %arg6[%c0_10, %c20], %23 {strides = array<i32>} : memref<128x36xbf16, #tpu.memory_space<vmem>>, vector<128x4xbf16>,
    %c2_i32 = arith.constant 2 : i32
    %25 = arith.addi %0, %c2_i32 : i32
    %c16_i32_11 = arith.constant 16 : i32
    %26 = arith.muli %25, %c16_i32_11 : i32
    %27 = tpu.assume_multiple %26, 8 : i32
    %c0_12 = arith.constant 0 : index
    %28 = arith.index_cast %27 : i32 to index
    %c0_13 = arith.constant 0 : index
    %29 = vector.load %arg2[%c0_12, %28, %c0_13] : memref<1x304x4xbf16, #tpu.memory_space<vmem>>, vector<1x136x4xbf16>
    %30 = vector.shape_cast %29 : vector<1x136x4xbf16> to vector<136x4xbf16>
    %31 = vector.extract_strided_slice %30 {offsets = [0, 0], sizes = [128, 4], strides = [1, 1]} : vector<136x4xbf16> to vector<128x4xbf16>
    %c0_14 = arith.constant 0 : index
    %c24 = arith.constant 24 : index
    %32 = vector.load %arg6[%c0_14, %c24] : memref<128x36xbf16, #tpu.memory_space<vmem>>, vector<128x4xbf16>
    tpu.vector_store %arg6[%c0_14, %c24], %31 {strides = array<i32>} : memref<128x36xbf16, #tpu.memory_space<vmem>>, vector<128x4xbf16>,
    %33 = vector.extract_strided_slice %30 {offsets = [1, 0], sizes = [128, 4], strides = [1, 1]} : vector<136x4xbf16> to vector<128x4xbf16>
    %c0_15 = arith.constant 0 : index
    %c28 = arith.constant 28 : index
    %34 = vector.load %arg6[%c0_15, %c28] : memref<128x36xbf16, #tpu.memory_space<vmem>>, vector<128x4xbf16>
    tpu.vector_store %arg6[%c0_15, %c28], %33 {strides = array<i32>} : memref<128x36xbf16, #tpu.memory_space<vmem>>, vector<128x4xbf16>,
    %35 = vector.extract_strided_slice %30 {offsets = [2, 0], sizes = [128, 4], strides = [1, 1]} : vector<136x4xbf16> to vector<128x4xbf16>
    %c0_16 = arith.constant 0 : index
    %c32 = arith.constant 32 : index
    %36 = vector.load %arg6[%c0_16, %c32] : memref<128x36xbf16, #tpu.memory_space<vmem>>, vector<128x4xbf16>
    tpu.vector_store %arg6[%c0_16, %c32], %35 {strides = array<i32>} : memref<128x36xbf16, #tpu.memory_space<vmem>>, vector<128x4xbf16>,
    %c0_17 = arith.constant 0 : index
    %c0_18 = arith.constant 0 : index
    %37 = vector.load %arg6[%c0_17, %c0_18] : memref<128x36xbf16, #tpu.memory_space<vmem>>, vector<128x36xbf16>
    %c0_19 = arith.constant 0 : index
    %c0_20 = arith.constant 0 : index
    %38 = vector.load %arg3[%c0_19, %c0_20] : memref<36x128xbf16, #tpu.memory_space<vmem>>, vector<36x128xbf16>
    %cst = arith.constant dense<0.000000e+00> : vector<128x128xf32>
    %39 = tpu.matmul %37, %38, %cst {dimension_numbers = #tpu.dot_dimension_numbers<[1], [0], [0], [1], [0, 0, 1, 1], [], []>} : vector<128x36xbf16>, vector<36x128xbf16>, vector<128x128xf32> -> vector<128x128xf32>
    %c0_21 = arith.constant 0 : index
    %c0_22 = arith.constant 0 : index
    %40 = vector.load %arg4[%c0_21, %c0_22] : memref<1x128xf32, #tpu.memory_space<vmem>>, vector<1x128xf32>
    %41 = vector.shape_cast %40 : vector<1x128xf32> to vector<128xf32>
    %42 = vector.shape_cast %41 : vector<128xf32> to vector<1x128xf32>
    %43 = vector.broadcast %42 : vector<1x128xf32> to vector<128x128xf32>
    %44 = arith.addf %39, %43 : vector<128x128xf32>
    %c0_23 = arith.constant 0 : index
    %c0_24 = arith.constant 0 : index
    %c0_25 = arith.constant 0 : index
    %45 = vector.load %arg5[%c0_23, %c0_24, %c0_25] : memref<1x128x128xf32, #tpu.memory_space<vmem>>, vector<1x128x128xf32>
    %46 = vector.shape_cast %45 : vector<1x128x128xf32> to vector<128x128xf32>
    %47 = vector.shape_cast %44 : vector<128x128xf32> to vector<1x128x128xf32>
    tpu.vector_store %arg5[%c0_23, %c0_24, %c0_25], %47 {strides = array<i32>} : memref<1x128x128xf32, #tpu.memory_space<vmem>>, vector<1x128x128xf32>,
    return
  }
  func.func @transform_0(%arg0: i32, %arg1: i32) -> (i32, i32, i32) {
    %c0_i32 = arith.constant 0 : i32
    %c0_i32_0 = arith.constant 0 : i32
    %c0_i32_1 = arith.constant 0 : i32
    return %arg0, %c0_i32, %c0_i32_0 : i32, i32, i32
  }
  func.func @transform_1(%arg0: i32, %arg1: i32) -> (i32, i32) {
    %c0_i32 = arith.constant 0 : i32
    %c0_i32_0 = arith.constant 0 : i32
    %c0_i32_1 = arith.constant 0 : i32
    return %c0_i32, %c0_i32_0 : i32, i32
  }
  func.func @transform_2(%arg0: i32, %arg1: i32) -> (i32, i32) {
    %c0_i32 = arith.constant 0 : i32
    %c0_i32_0 = arith.constant 0 : i32
    %c0_i32_1 = arith.constant 0 : i32
    return %c0_i32, %c0_i32_0 : i32, i32
  }
  func.func @transform_3(%arg0: i32, %arg1: i32) -> (i32, i32, i32) {
    %c0_i32 = arith.constant 0 : i32
    %c0_i32_0 = arith.constant 0 : i32
    return %arg0, %arg1, %c0_i32 : i32, i32, i32
  }
}

module attributes {stable_mosaic.version = 11 : i64} {
  func.func @_conv_bn_kernel(%arg0: i32, %arg1: i32, %arg2: memref<1x304x4xf32, #tpu.memory_space<vmem>>, %arg3: memref<36x128xbf16, #tpu.memory_space<vmem>>, %arg4: memref<1x128xf32, #tpu.memory_space<vmem>>, %arg5: memref<1x128x128xf32, #tpu.memory_space<vmem>>, %arg6: memref<128x36xbf16, #tpu.memory_space<vmem>>) attributes {dimension_semantics = [#tpu.dimension_semantics<parallel>, #tpu.dimension_semantics<parallel>], iteration_bounds = array<i64: 2, 2>, scalar_prefetch = 0 : i64, scratch_operands = 1 : i64, tpu.core_type = #tpu.core_type<tc>, window_params = [{transform_indices = @transform_0, window_bounds = array<i64: 1, 304, 4>}, {pipeline_mode = #tpu.pipeline_mode<synchronous>, transform_indices = @transform_1, window_bounds = array<i64: 36, 128>}, {pipeline_mode = #tpu.pipeline_mode<synchronous>, transform_indices = @transform_2, window_bounds = array<i64: 1, 128>}, {transform_indices = @transform_3, window_bounds = array<i64: 1, 128, 128>}]} {
    %c8_i32 = arith.constant 8 : i32
    %0 = arith.muli %arg1, %c8_i32 : i32
    %c0_i32 = arith.constant 0 : i32
    %1 = arith.addi %0, %c0_i32 : i32
    %c16_i32 = arith.constant 16 : i32
    %2 = arith.muli %1, %c16_i32 : i32
    %c0_i32_0 = arith.constant 0 : i32
    %3 = arith.addi %2, %c0_i32_0 : i32
    %4 = tpu.assume_multiple %3, 8 : i32
    %c0 = arith.constant 0 : index
    %5 = arith.index_cast %4 : i32 to index
    %c0_1 = arith.constant 0 : index
    %6 = vector.load %arg2[%c0, %5, %c0_1] : memref<1x304x4xf32, #tpu.memory_space<vmem>>, vector<1x128x4xf32>
    %7 = vector.shape_cast %6 : vector<1x128x4xf32> to vector<128x4xf32>
    %8 = arith.truncf %7 : vector<128x4xf32> to vector<128x4xbf16>
    %c0_2 = arith.constant 0 : index
    %c0_3 = arith.constant 0 : index
    %9 = vector.load %arg6[%c0_2, %c0_3] : memref<128x36xbf16, #tpu.memory_space<vmem>>, vector<128x4xbf16>
    tpu.vector_store %arg6[%c0_2, %c0_3], %8 {strides = array<i32>} : memref<128x36xbf16, #tpu.memory_space<vmem>>, vector<128x4xbf16>,
    %c0_i32_4 = arith.constant 0 : i32
    %10 = arith.addi %0, %c0_i32_4 : i32
    %c16_i32_5 = arith.constant 16 : i32
    %11 = arith.muli %10, %c16_i32_5 : i32
    %c1_i32 = arith.constant 1 : i32
    %12 = arith.addi %11, %c1_i32 : i32
    %c0_6 = arith.constant 0 : index
    %13 = arith.index_cast %12 : i32 to index
    %c0_7 = arith.constant 0 : index
    %14 = vector.load %arg2[%c0_6, %13, %c0_7] : memref<1x304x4xf32, #tpu.memory_space<vmem>>, vector<1x128x4xf32>
    %15 = vector.shape_cast %14 : vector<1x128x4xf32> to vector<128x4xf32>
    %16 = arith.truncf %15 : vector<128x4xf32> to vector<128x4xbf16>
    %c0_8 = arith.constant 0 : index
    %c4 = arith.constant 4 : index
    %17 = vector.load %arg6[%c0_8, %c4] : memref<128x36xbf16, #tpu.memory_space<vmem>>, vector<128x4xbf16>
    tpu.vector_store %arg6[%c0_8, %c4], %16 {strides = array<i32>} : memref<128x36xbf16, #tpu.memory_space<vmem>>, vector<128x4xbf16>,
    %c0_i32_9 = arith.constant 0 : i32
    %18 = arith.addi %0, %c0_i32_9 : i32
    %c16_i32_10 = arith.constant 16 : i32
    %19 = arith.muli %18, %c16_i32_10 : i32
    %c2_i32 = arith.constant 2 : i32
    %20 = arith.addi %19, %c2_i32 : i32
    %c0_11 = arith.constant 0 : index
    %21 = arith.index_cast %20 : i32 to index
    %c0_12 = arith.constant 0 : index
    %22 = vector.load %arg2[%c0_11, %21, %c0_12] : memref<1x304x4xf32, #tpu.memory_space<vmem>>, vector<1x128x4xf32>
    %23 = vector.shape_cast %22 : vector<1x128x4xf32> to vector<128x4xf32>
    %24 = arith.truncf %23 : vector<128x4xf32> to vector<128x4xbf16>
    %c0_13 = arith.constant 0 : index
    %c8 = arith.constant 8 : index
    %25 = vector.load %arg6[%c0_13, %c8] : memref<128x36xbf16, #tpu.memory_space<vmem>>, vector<128x4xbf16>
    tpu.vector_store %arg6[%c0_13, %c8], %24 {strides = array<i32>} : memref<128x36xbf16, #tpu.memory_space<vmem>>, vector<128x4xbf16>,
    %c1_i32_14 = arith.constant 1 : i32
    %26 = arith.addi %0, %c1_i32_14 : i32
    %c16_i32_15 = arith.constant 16 : i32
    %27 = arith.muli %26, %c16_i32_15 : i32
    %c0_i32_16 = arith.constant 0 : i32
    %28 = arith.addi %27, %c0_i32_16 : i32
    %29 = tpu.assume_multiple %28, 8 : i32
    %c0_17 = arith.constant 0 : index
    %30 = arith.index_cast %29 : i32 to index
    %c0_18 = arith.constant 0 : index
    %31 = vector.load %arg2[%c0_17, %30, %c0_18] : memref<1x304x4xf32, #tpu.memory_space<vmem>>, vector<1x128x4xf32>
    %32 = vector.shape_cast %31 : vector<1x128x4xf32> to vector<128x4xf32>
    %33 = arith.truncf %32 : vector<128x4xf32> to vector<128x4xbf16>
    %c0_19 = arith.constant 0 : index
    %c12 = arith.constant 12 : index
    %34 = vector.load %arg6[%c0_19, %c12] : memref<128x36xbf16, #tpu.memory_space<vmem>>, vector<128x4xbf16>
    tpu.vector_store %arg6[%c0_19, %c12], %33 {strides = array<i32>} : memref<128x36xbf16, #tpu.memory_space<vmem>>, vector<128x4xbf16>,
    %c1_i32_20 = arith.constant 1 : i32
    %35 = arith.addi %0, %c1_i32_20 : i32
    %c16_i32_21 = arith.constant 16 : i32
    %36 = arith.muli %35, %c16_i32_21 : i32
    %c1_i32_22 = arith.constant 1 : i32
    %37 = arith.addi %36, %c1_i32_22 : i32
    %c0_23 = arith.constant 0 : index
    %38 = arith.index_cast %37 : i32 to index
    %c0_24 = arith.constant 0 : index
    %39 = vector.load %arg2[%c0_23, %38, %c0_24] : memref<1x304x4xf32, #tpu.memory_space<vmem>>, vector<1x128x4xf32>
    %40 = vector.shape_cast %39 : vector<1x128x4xf32> to vector<128x4xf32>
    %41 = arith.truncf %40 : vector<128x4xf32> to vector<128x4xbf16>
    %c0_25 = arith.constant 0 : index
    %c16 = arith.constant 16 : index
    %42 = vector.load %arg6[%c0_25, %c16] : memref<128x36xbf16, #tpu.memory_space<vmem>>, vector<128x4xbf16>
    tpu.vector_store %arg6[%c0_25, %c16], %41 {strides = array<i32>} : memref<128x36xbf16, #tpu.memory_space<vmem>>, vector<128x4xbf16>,
    %c1_i32_26 = arith.constant 1 : i32
    %43 = arith.addi %0, %c1_i32_26 : i32
    %c16_i32_27 = arith.constant 16 : i32
    %44 = arith.muli %43, %c16_i32_27 : i32
    %c2_i32_28 = arith.constant 2 : i32
    %45 = arith.addi %44, %c2_i32_28 : i32
    %c0_29 = arith.constant 0 : index
    %46 = arith.index_cast %45 : i32 to index
    %c0_30 = arith.constant 0 : index
    %47 = vector.load %arg2[%c0_29, %46, %c0_30] : memref<1x304x4xf32, #tpu.memory_space<vmem>>, vector<1x128x4xf32>
    %48 = vector.shape_cast %47 : vector<1x128x4xf32> to vector<128x4xf32>
    %49 = arith.truncf %48 : vector<128x4xf32> to vector<128x4xbf16>
    %c0_31 = arith.constant 0 : index
    %c20 = arith.constant 20 : index
    %50 = vector.load %arg6[%c0_31, %c20] : memref<128x36xbf16, #tpu.memory_space<vmem>>, vector<128x4xbf16>
    tpu.vector_store %arg6[%c0_31, %c20], %49 {strides = array<i32>} : memref<128x36xbf16, #tpu.memory_space<vmem>>, vector<128x4xbf16>,
    %c2_i32_32 = arith.constant 2 : i32
    %51 = arith.addi %0, %c2_i32_32 : i32
    %c16_i32_33 = arith.constant 16 : i32
    %52 = arith.muli %51, %c16_i32_33 : i32
    %c0_i32_34 = arith.constant 0 : i32
    %53 = arith.addi %52, %c0_i32_34 : i32
    %54 = tpu.assume_multiple %53, 8 : i32
    %c0_35 = arith.constant 0 : index
    %55 = arith.index_cast %54 : i32 to index
    %c0_36 = arith.constant 0 : index
    %56 = vector.load %arg2[%c0_35, %55, %c0_36] : memref<1x304x4xf32, #tpu.memory_space<vmem>>, vector<1x128x4xf32>
    %57 = vector.shape_cast %56 : vector<1x128x4xf32> to vector<128x4xf32>
    %58 = arith.truncf %57 : vector<128x4xf32> to vector<128x4xbf16>
    %c0_37 = arith.constant 0 : index
    %c24 = arith.constant 24 : index
    %59 = vector.load %arg6[%c0_37, %c24] : memref<128x36xbf16, #tpu.memory_space<vmem>>, vector<128x4xbf16>
    tpu.vector_store %arg6[%c0_37, %c24], %58 {strides = array<i32>} : memref<128x36xbf16, #tpu.memory_space<vmem>>, vector<128x4xbf16>,
    %c2_i32_38 = arith.constant 2 : i32
    %60 = arith.addi %0, %c2_i32_38 : i32
    %c16_i32_39 = arith.constant 16 : i32
    %61 = arith.muli %60, %c16_i32_39 : i32
    %c1_i32_40 = arith.constant 1 : i32
    %62 = arith.addi %61, %c1_i32_40 : i32
    %c0_41 = arith.constant 0 : index
    %63 = arith.index_cast %62 : i32 to index
    %c0_42 = arith.constant 0 : index
    %64 = vector.load %arg2[%c0_41, %63, %c0_42] : memref<1x304x4xf32, #tpu.memory_space<vmem>>, vector<1x128x4xf32>
    %65 = vector.shape_cast %64 : vector<1x128x4xf32> to vector<128x4xf32>
    %66 = arith.truncf %65 : vector<128x4xf32> to vector<128x4xbf16>
    %c0_43 = arith.constant 0 : index
    %c28 = arith.constant 28 : index
    %67 = vector.load %arg6[%c0_43, %c28] : memref<128x36xbf16, #tpu.memory_space<vmem>>, vector<128x4xbf16>
    tpu.vector_store %arg6[%c0_43, %c28], %66 {strides = array<i32>} : memref<128x36xbf16, #tpu.memory_space<vmem>>, vector<128x4xbf16>,
    %c2_i32_44 = arith.constant 2 : i32
    %68 = arith.addi %0, %c2_i32_44 : i32
    %c16_i32_45 = arith.constant 16 : i32
    %69 = arith.muli %68, %c16_i32_45 : i32
    %c2_i32_46 = arith.constant 2 : i32
    %70 = arith.addi %69, %c2_i32_46 : i32
    %c0_47 = arith.constant 0 : index
    %71 = arith.index_cast %70 : i32 to index
    %c0_48 = arith.constant 0 : index
    %72 = vector.load %arg2[%c0_47, %71, %c0_48] : memref<1x304x4xf32, #tpu.memory_space<vmem>>, vector<1x128x4xf32>
    %73 = vector.shape_cast %72 : vector<1x128x4xf32> to vector<128x4xf32>
    %74 = arith.truncf %73 : vector<128x4xf32> to vector<128x4xbf16>
    %c0_49 = arith.constant 0 : index
    %c32 = arith.constant 32 : index
    %75 = vector.load %arg6[%c0_49, %c32] : memref<128x36xbf16, #tpu.memory_space<vmem>>, vector<128x4xbf16>
    tpu.vector_store %arg6[%c0_49, %c32], %74 {strides = array<i32>} : memref<128x36xbf16, #tpu.memory_space<vmem>>, vector<128x4xbf16>,
    %c0_50 = arith.constant 0 : index
    %c0_51 = arith.constant 0 : index
    %76 = vector.load %arg6[%c0_50, %c0_51] : memref<128x36xbf16, #tpu.memory_space<vmem>>, vector<128x36xbf16>
    %c0_52 = arith.constant 0 : index
    %c0_53 = arith.constant 0 : index
    %77 = vector.load %arg3[%c0_52, %c0_53] : memref<36x128xbf16, #tpu.memory_space<vmem>>, vector<36x128xbf16>
    %cst = arith.constant dense<0.000000e+00> : vector<128x128xf32>
    %78 = tpu.matmul %76, %77, %cst {dimension_numbers = #tpu.dot_dimension_numbers<[1], [0], [0], [1], [0, 0, 1, 1], [], []>} : vector<128x36xbf16>, vector<36x128xbf16>, vector<128x128xf32> -> vector<128x128xf32>
    %c0_54 = arith.constant 0 : index
    %c0_55 = arith.constant 0 : index
    %79 = vector.load %arg4[%c0_54, %c0_55] : memref<1x128xf32, #tpu.memory_space<vmem>>, vector<1x128xf32>
    %80 = vector.shape_cast %79 : vector<1x128xf32> to vector<128xf32>
    %81 = vector.shape_cast %80 : vector<128xf32> to vector<1x128xf32>
    %82 = vector.broadcast %81 : vector<1x128xf32> to vector<128x128xf32>
    %83 = arith.addf %78, %82 : vector<128x128xf32>
    %c0_56 = arith.constant 0 : index
    %c0_57 = arith.constant 0 : index
    %c0_58 = arith.constant 0 : index
    %84 = vector.load %arg5[%c0_56, %c0_57, %c0_58] : memref<1x128x128xf32, #tpu.memory_space<vmem>>, vector<1x128x128xf32>
    %85 = vector.shape_cast %84 : vector<1x128x128xf32> to vector<128x128xf32>
    %86 = vector.shape_cast %83 : vector<128x128xf32> to vector<1x128x128xf32>
    tpu.vector_store %arg5[%c0_56, %c0_57, %c0_58], %86 {strides = array<i32>} : memref<1x128x128xf32, #tpu.memory_space<vmem>>, vector<1x128x128xf32>,
    return
  }
  func.func @transform_0(%arg0: i32, %arg1: i32) -> (i32, i32, i32) {
    %c0_i32 = arith.constant 0 : i32
    %c0_i32_0 = arith.constant 0 : i32
    %c0_i32_1 = arith.constant 0 : i32
    return %arg0, %c0_i32, %c0_i32_0 : i32, i32, i32
  }
  func.func @transform_1(%arg0: i32, %arg1: i32) -> (i32, i32) {
    %c0_i32 = arith.constant 0 : i32
    %c0_i32_0 = arith.constant 0 : i32
    %c0_i32_1 = arith.constant 0 : i32
    return %c0_i32, %c0_i32_0 : i32, i32
  }
  func.func @transform_2(%arg0: i32, %arg1: i32) -> (i32, i32) {
    %c0_i32 = arith.constant 0 : i32
    %c0_i32_0 = arith.constant 0 : i32
    %c0_i32_1 = arith.constant 0 : i32
    return %c0_i32, %c0_i32_0 : i32, i32
  }
  func.func @transform_3(%arg0: i32, %arg1: i32) -> (i32, i32, i32) {
    %c0_i32 = arith.constant 0 : i32
    %c0_i32_0 = arith.constant 0 : i32
    return %arg0, %arg1, %c0_i32 : i32, i32, i32
  }
}

</mosaic_0001>

<llo_original>
// kernel: tpu_custom_call.1
$region0: #{tpu_custom_call.1}
  #allocation0 [shape = 'u32[]', space=smem, size = 0x4, offset = 0x4, fixed_abs, tag = 'smem constant byte address 0x4 - core index']
  #allocation1 [shape = 'u32[144,128]{1,0:T(1,128)}', space=vmem, size = 0x12000, scoped, tag = 'internal scratch']
  #allocation2 [shape = 'bf16[128,36]{1,0:T(8,128)(2,1)}', space=vmem, size = 0x8000, scoped, tag = 'scratch operand']
  %s0 = inlined_call_operand.vmem [shape: bf16[2,304,4], index: 0, kind: input, shape index: {}]
  %s1 = inlined_call_operand.vmem [shape: bf16[36,128], index: 1, kind: input, shape index: {}]
  %s2 = inlined_call_operand.vmem [shape: f32[1,128], index: 2, kind: input, shape index: {}]
  %s3 = inlined_call_operand.hbm [shape: f32[2,256,128], index: 3, kind: output, shape index: {}]
  %s4 = sld [smem:[#allocation0]]
  $region45: #{tpu_custom_call.1} parent=0
    _
  %s6 = ssub.s32 1, %s4
  %s7 = scalar_select 0, %s6, %s4
  $region1: #{tpu_custom_call.1} parent=0
    #allocation3 [shape = 'u8[131072]{0}', space=vmem, size = 0x20000, scoped, tag = 'output window, operand 0']
    #allocation4 [shape = 's32[2]{0}', space=sflag, size = 0x8, scoped, tag = 'scoped memory for tpu_custom_call.1']
    %8 = vsyncpa [#allocation4], 0
    %s9 = scalar_lea.sflag [#allocation4], 1
    %10 = vsyncpa %s9, 0
    loop: start=0, step=1, limit=6
    $region2: #{tpu_custom_call.1} parent=1 // loop_pre_header
      _
    $region3: #{tpu_custom_call.1} parent=1 // loop_header
      %s12 = sphi 0, %s16
      %p13 = scmp.ge.s32.totalorder %s12, 6
      %s19 = sphi 0, %s31
      %s20 = sphi 0, %s27
      %s21 = sphi 0, %s19
      %s22 = sphi 0, %s20
      %s23 = sphi 0, %s21
      %s24 = sphi 0, %s22
      %s34 = sphi 0, %s36
      %s37 = sphi 0, %s34
      %s38 = sphi 0, %s37
      %s54 = sphi 0, %s38
      %s58 = sphi 0, %s58
      %s60 = sphi 0, %s58
      %s61 = sphi 0, %s60
      %s75 = sphi 0, %s61
      %s79 = sphi 0, %s79
      %s81 = sphi 0, %s79
      %s82 = sphi 0, %s81
      %s96 = sphi 0, %s82
      %s104 = sphi 0, %s106
      %s107 = sphi 0, %s104
      %s108 = sphi 0, %s107
      %s124 = sphi 0, %s108
    $region4: #{tpu_custom_call.1} parent=1 // loop_header_branch
      %15 = sbr.rel (%p13) target = $region8
    $region5: #{tpu_custom_call.1} parent=1 // loop_body
      %s17 = ssub.s32 %s12, 1
      %s18 = ssub.s32 %s12, 2
      %s25 = sadd.s32 1, %s20
      %p26 = scmp.ge.s32.totalorder %s25, 2
      %s27 = scalar_select %p26, 0, %s25
      %s28 = sadd.s32 1, %s19
      %s29 = scalar_select %p26, %s28, %s19
      %p30 = scmp.ge.s32.totalorder %s29, 2
      %s31 = scalar_select %p30, 0, %s29
      %s32 = ssub.s32 %s19, %s31
      %p33 = scmp.eq.s32.totalorder %s32, 0
      %s35 = sadd.s32 %s34, 1
      %s36 = scalar_select %p33, %s34, %s35
      %p39 = pneg %p33
      %p40 = scmp.eq.s32.totalorder %s12, 3
      %p41 = por %p39, %p40
      %p42 = scmp.ne.s32.totalorder %s34, %s37
      %p43 = scmp.eq.s32.totalorder %s12, 0
      %p44 = por %p42, %p43
      %p45 = scmp.ne.s32.totalorder %s34, %s37
      %p46 = scmp.eq.s32.totalorder %s17, 3
      %p47 = por %p45, %p46
      %p48 = scmp.ne.s32.totalorder %s37, %s38
      %p49 = scmp.eq.s32.totalorder %s17, 0
      %p50 = por %p48, %p49
      %p51 = scmp.ne.s32.totalorder %s37, %s38
      %p52 = scmp.eq.s32.totalorder %s18, 3
      %p53 = por %p51, %p52
      %p55 = scmp.ne.s32.totalorder %s38, %s54
      %p56 = scmp.eq.s32.totalorder %s18, 0
      %p57 = por %p55, %p56
      %s59 = sadd.s32 %s58, 1
      %p62 = scmp.eq.s32.totalorder %s12, 3
      %p63 = scmp.ne.s32.totalorder %s58, %s60
      %p64 = scmp.eq.s32.totalorder %s12, 0
      %p65 = por %p63, %p64
      %p66 = scmp.ne.s32.totalorder %s58, %s60
      %p67 = scmp.eq.s32.totalorder %s17, 3
      %p68 = por %p66, %p67
      %p69 = scmp.ne.s32.totalorder %s60, %s61
      %p70 = scmp.eq.s32.totalorder %s17, 0
      %p71 = por %p69, %p70
      %p72 = scmp.ne.s32.totalorder %s60, %s61
      %p73 = scmp.eq.s32.totalorder %s18, 3
      %p74 = por %p72, %p73
      %p76 = scmp.ne.s32.totalorder %s61, %s75
      %p77 = scmp.eq.s32.totalorder %s18, 0
      %p78 = por %p76, %p77
      %s80 = sadd.s32 %s79, 1
      %p83 = scmp.eq.s32.totalorder %s12, 3
      %p84 = scmp.ne.s32.totalorder %s79, %s81
      %p85 = scmp.eq.s32.totalorder %s12, 0
      %p86 = por %p84, %p85
      %p87 = scmp.ne.s32.totalorder %s79, %s81
      %p88 = scmp.eq.s32.totalorder %s17, 3
      %p89 = por %p87, %p88
      %p90 = scmp.ne.s32.totalorder %s81, %s82
      %p91 = scmp.eq.s32.totalorder %s17, 0
      %p92 = por %p90, %p91
      %p93 = scmp.ne.s32.totalorder %s81, %s82
      %p94 = scmp.eq.s32.totalorder %s18, 3
      %p95 = por %p93, %p94
      %p97 = scmp.ne.s32.totalorder %s82, %s96
      %p98 = scmp.eq.s32.totalorder %s18, 0
      %p99 = por %p97, %p98
      %s100 = ssub.s32 %s19, %s31
      %s101 = ssub.s32 %s20, %s27
      %s102 = sor.u32 %s100, %s101
      %p103 = scmp.eq.s32.totalorder %s102, 0
      %s105 = sadd.s32 %s104, 1
      %s106 = scalar_select %p103, %s104, %s105
      %p109 = pneg %p103
      %p110 = scmp.eq.s32.totalorder %s12, 3
      %p111 = por %p109, %p110
      %p112 = scmp.ne.s32.totalorder %s104, %s107
      %p113 = scmp.eq.s32.totalorder %s12, 0
      %p114 = por %p112, %p113
      %p115 = scmp.ne.s32.totalorder %s104, %s107
      %p116 = scmp.eq.s32.totalorder %s17, 3
      %p117 = por %p115, %p116
      %p118 = scmp.ne.s32.totalorder %s107, %s108
      %p119 = scmp.eq.s32.totalorder %s17, 0
      %p120 = por %p118, %p119
      %p121 = scmp.ne.s32.totalorder %s107, %s108
      %p122 = scmp.eq.s32.totalorder %s18, 3
      %p123 = por %p121, %p122
      %p125 = scmp.ne.s32.totalorder %s108, %s124
      %p126 = scmp.eq.s32.totalorder %s18, 0
      %p127 = por %p125, %p126
      %p128 = scmp.le.s32.totalorder 1, %s12
      %p129 = scmp.lt.s32.totalorder %s12, 5
      %p130 = pnand %p128, %p129
      %p131 = pneg %p130
      // Predicated region
      $region9: #{tpu_custom_call.1} parent=5 // pred_check
        _
      $region10: #{tpu_custom_call.1} parent=5 // pred_check_branch
        %133 = sbr.rel (%p130) target = $region12
      $region11: #{tpu_custom_call.1} parent=5 // pred_region
        %s134 = ssub.s32 %s12, 1
        // Predicated region
        $region13: #{tpu_custom_call.1} parent=11 // pred_check
          %p135 = pneg %p50
        $region14: #{tpu_custom_call.1} parent=11 // pred_check_branch
          %137 = sbr.rel (%p135) target = $region16
        $region15: #{tpu_custom_call.1} parent=11 // pred_region
          %p138 = scmp.lt.s32.totalorder %s21, 1
          %s139 = scalar_select %p138, %s21, 1
          %s140 = smul.addr %s139, 38
          %s141 = smul.addr %s140, 4
          %s142 = scalar_lea.vmem %s0, %s141
        $region16: #{tpu_custom_call.1} parent=11 // pred_fallthru
          _
        // Predicated region
        $region17: #{tpu_custom_call.1} parent=11 // pred_check
          %p143 = pneg %p71
        $region18: #{tpu_custom_call.1} parent=11 // pred_check_branch
          %145 = sbr.rel (%p143) target = $region20
        $region19: #{tpu_custom_call.1} parent=11 // pred_region
          _
        $region20: #{tpu_custom_call.1} parent=11 // pred_fallthru
          _
        // Predicated region
        $region21: #{tpu_custom_call.1} parent=11 // pred_check
          %p146 = pneg %p92
        $region22: #{tpu_custom_call.1} parent=11 // pred_check_branch
          %148 = sbr.rel (%p146) target = $region24
        $region23: #{tpu_custom_call.1} parent=11 // pred_region
          _
        $region24: #{tpu_custom_call.1} parent=11 // pred_fallthru
          _
      $region12: #{tpu_custom_call.1} parent=5 // pred_fallthru
        _
      %p149 = scmp.lt.s32.totalorder %s12, 4
      // Predicated region
      $region25: #{tpu_custom_call.1} parent=5 // pred_check
        %p150 = pneg %p149
      $region26: #{tpu_custom_call.1} parent=5 // pred_check_branch
        %152 = sbr.rel (%p150) target = $region28
      $region27: #{tpu_custom_call.1} parent=5 // pred_region
        _
      $region28: #{tpu_custom_call.1} parent=5 // pred_fallthru
        _
      %p153 = scmp.le.s32.totalorder 1, %s12
      %p154 = scmp.lt.s32.totalorder %s12, 5
      %p155 = pnand %p153, %p154
      %p156 = pneg %p155
      // Predicated region
      $region29: #{tpu_custom_call.1} parent=5 // pred_check
        _
      $region30: #{tpu_custom_call.1} parent=5 // pred_check_branch
        %158 = sbr.rel (%p155) target = $region32
      $region31: #{tpu_custom_call.1} parent=5 // pred_region
        %s159 = ssub.s32 %s12, 1
        %p160 = scmp.lt.s32.totalorder %s21, 1
        %s161 = scalar_select %p160, %s21, 1
        %s162 = smul.addr %s161, 38
        %s163 = smul.addr %s162, 4
        %s164 = scalar_lea.vmem %s0, %s163
        %p165 = pneg %p50
        %p166 = pneg %p47
        %p167 = pneg %p71
        %p168 = pneg %p68
        %p169 = pneg %p92
        %p170 = pneg %p89
        %p171 = pneg %p120
        %p172 = pneg %p117
        %s173 = sand.u32 %s107, 1
        %s174 = scalar_lea.sflag [#allocation4], %s173
        %s175 = sand.u32 %s107, 1
        %s176 = smul.addr %s175, 128
        %s177 = scalar_lea.vmem [#allocation3], %s176
        %p178 = scmp.lt.s32.totalorder %s21, 1
        %s179 = scalar_select %p178, %s21, 1
        %s180 = smul.addr %s179, 38
        %s181 = smul.addr %s180, 4
        %s182 = scalar_lea.vmem %s0, %s181
        %s183 = smul.u32 16, %s22
        %s185 = smul.u32 %s22, 8
        %s186 = smul.u32 %s22, 128
        %s187 = sshra.s32 %s186, 3
        %s188 = sand.u32 %s186, 7
        %s189 = smul.addr %s187, 4
        %s190 = scalar_lea.vmem %s182, %s189
        %v191 = vld [vmem:[%s190] sm:$0xf]
        %v192 = vld [vmem:[%s190 + $0x4] sm:$0xf]
        %v193 = vld [vmem:[%s190 + $0x8] sm:$0xf]
        %v194 = vld [vmem:[%s190 + $0xc] sm:$0xf]
        %v195 = vld [vmem:[%s190 + $0x10] sm:$0xf]
        %v196 = vld [vmem:[%s190 + $0x14] sm:$0xf]
        %v197 = vld [vmem:[%s190 + $0x18] sm:$0xf]
        %v198 = vld [vmem:[%s190 + $0x1c] sm:$0xf]
        %v199 = vld [vmem:[%s190 + $0x20] sm:$0xf]
        %v200 = vld [vmem:[%s190 + $0x24] sm:$0xf]
        %v201 = vld [vmem:[%s190 + $0x28] sm:$0xf]
        %v202 = vld [vmem:[%s190 + $0x2c] sm:$0xf]
        %v203 = vld [vmem:[%s190 + $0x30] sm:$0xf]
        %v204 = vld [vmem:[%s190 + $0x34] sm:$0xf]
        %v205 = vld [vmem:[%s190 + $0x38] sm:$0xf]
        %v206 = vld [vmem:[%s190 + $0x3c] sm:$0xf]
        %v207 = vld [vmem:[%s190 + $0x40] sm:$0xf]
        %vm208 = vcmask 27648
        %209 = vst.msk [vmem:[#allocation2] sm:$0xf] %vm208, %v191
        %210 = vst.msk [vmem:[#allocation2 + $0x4] sm:$0xf] %vm208, %v192
        %211 = vst.msk [vmem:[#allocation2 + $0x8] sm:$0xf] %vm208, %v193
        %212 = vst.msk [vmem:[#allocation2 + $0xc] sm:$0xf] %vm208, %v194
        %213 = vst.msk [vmem:[#allocation2 + $0x10] sm:$0xf] %vm208, %v195
        %214 = vst.msk [vmem:[#allocation2 + $0x14] sm:$0xf] %vm208, %v196
        %215 = vst.msk [vmem:[#allocation2 + $0x18] sm:$0xf] %vm208, %v197
        %216 = vst.msk [vmem:[#allocation2 + $0x1c] sm:$0xf] %vm208, %v198
        %217 = vst.msk [vmem:[#allocation2 + $0x20] sm:$0xf] %vm208, %v199
        %218 = vst.msk [vmem:[#allocation2 + $0x24] sm:$0xf] %vm208, %v200
        %219 = vst.msk [vmem:[#allocation2 + $0x28] sm:$0xf] %vm208, %v201
        %220 = vst.msk [vmem:[#allocation2 + $0x2c] sm:$0xf] %vm208, %v202
        %221 = vst.msk [vmem:[#allocation2 + $0x30] sm:$0xf] %vm208, %v203
        %222 = vst.msk [vmem:[#allocation2 + $0x34] sm:$0xf] %vm208, %v204
        %223 = vst.msk [vmem:[#allocation2 + $0x38] sm:$0xf] %vm208, %v205
        %224 = vst.msk [vmem:[#allocation2 + $0x3c] sm:$0xf] %vm208, %v206
        %vm225 = vsmask.f32 3328
        %vm226 = vsmask.f32 7440
        %vm227 = vmor %vm225, %vm226
        %v229 = vshrl.u32 %v191, 16
        %v231 = vrot.slane %v229, 4
        %v232 = vshll.u32 %v191, 16
        %v234 = vrot.slane %v232, 5
        %v235 = vor.u32 %v231, %v234
        %v236 = vrot.slane %v235, 4
        %v238 = vshll.u32 %v192, 16
        %v240 = vrot.slane %v238, 5
        %v241 = vsel %vm227, %v236, %v240
        %v242 = vshrl.u32 %v192, 16
        %v244 = vrot.slane %v242, 4
        %v245 = vor.u32 %v244, %v240
        %v246 = vrot.slane %v245, 4
        %v248 = vshll.u32 %v193, 16
        %v250 = vrot.slane %v248, 5
        %v251 = vsel %vm227, %v246, %v250
        %v252 = vshrl.u32 %v193, 16
        %v254 = vrot.slane %v252, 4
        %v255 = vor.u32 %v254, %v250
        %v256 = vrot.slane %v255, 4
        %v258 = vshll.u32 %v194, 16
        %v260 = vrot.slane %v258, 5
        %v261 = vsel %vm227, %v256, %v260
        %v262 = vshrl.u32 %v194, 16
        %v264 = vrot.slane %v262, 4
        %v265 = vor.u32 %v264, %v260
        %v266 = vrot.slane %v265, 4
        %v268 = vshll.u32 %v195, 16
        %v270 = vrot.slane %v268, 5
        %v271 = vsel %vm227, %v266, %v270
        %v272 = vshrl.u32 %v195, 16
        %v274 = vrot.slane %v272, 4
        %v275 = vor.u32 %v274, %v270
        %v276 = vrot.slane %v275, 4
        %v278 = vshll.u32 %v196, 16
        %v280 = vrot.slane %v278, 5
        %v281 = vsel %vm227, %v276, %v280
        %v282 = vshrl.u32 %v196, 16
        %v284 = vrot.slane %v282, 4
        %v285 = vor.u32 %v284, %v280
        %v286 = vrot.slane %v285, 4
        %v288 = vshll.u32 %v197, 16
        %v290 = vrot.slane %v288, 5
        %v291 = vsel %vm227, %v286, %v290
        %v292 = vshrl.u32 %v197, 16
        %v294 = vrot.slane %v292, 4
        %v295 = vor.u32 %v294, %v290
        %v296 = vrot.slane %v295, 4
        %v298 = vshll.u32 %v198, 16
        %v300 = vrot.slane %v298, 5
        %v301 = vsel %vm227, %v296, %v300
        %v302 = vshrl.u32 %v198, 16
        %v304 = vrot.slane %v302, 4
        %v305 = vor.u32 %v304, %v300
        %v306 = vrot.slane %v305, 4
        %v308 = vshll.u32 %v199, 16
        %v310 = vrot.slane %v308, 5
        %v311 = vsel %vm227, %v306, %v310
        %v312 = vshrl.u32 %v199, 16
        %v314 = vrot.slane %v312, 4
        %v315 = vor.u32 %v314, %v310
        %v316 = vrot.slane %v315, 4
        %v318 = vshll.u32 %v200, 16
        %v320 = vrot.slane %v318, 5
        %v321 = vsel %vm227, %v316, %v320
        %v322 = vshrl.u32 %v200, 16
        %v324 = vrot.slane %v322, 4
        %v325 = vor.u32 %v324, %v320
        %v326 = vrot.slane %v325, 4
        %v328 = vshll.u32 %v201, 16
        %v330 = vrot.slane %v328, 5
        %v331 = vsel %vm227, %v326, %v330
        %v332 = vshrl.u32 %v201, 16
        %v334 = vrot.slane %v332, 4
        %v335 = vor.u32 %v334, %v330
        %v336 = vrot.slane %v335, 4
        %v338 = vshll.u32 %v202, 16
        %v340 = vrot.slane %v338, 5
        %v341 = vsel %vm227, %v336, %v340
        %v342 = vshrl.u32 %v202, 16
        %v344 = vrot.slane %v342, 4
        %v345 = vor.u32 %v344, %v340
        %v346 = vrot.slane %v345, 4
        %v348 = vshll.u32 %v203, 16
        %v350 = vrot.slane %v348, 5
        %v351 = vsel %vm227, %v346, %v350
        %v352 = vshrl.u32 %v203, 16
        %v354 = vrot.slane %v352, 4
        %v355 = vor.u32 %v354, %v350
        %v356 = vrot.slane %v355, 4
        %v358 = vshll.u32 %v204, 16
        %v360 = vrot.slane %v358, 5
        %v361 = vsel %vm227, %v356, %v360
        %v362 = vshrl.u32 %v204, 16
        %v364 = vrot.slane %v362, 4
        %v365 = vor.u32 %v364, %v360
        %v366 = vrot.slane %v365, 4
        %v368 = vshll.u32 %v205, 16
        %v370 = vrot.slane %v368, 5
        %v371 = vsel %vm227, %v366, %v370
        %v372 = vshrl.u32 %v205, 16
        %v374 = vrot.slane %v372, 4
        %v375 = vor.u32 %v374, %v370
        %v376 = vrot.slane %v375, 4
        %v378 = vshll.u32 %v206, 16
        %v380 = vrot.slane %v378, 5
        %v381 = vsel %vm227, %v376, %v380
        %v382 = vshrl.u32 %v206, 16
        %v384 = vrot.slane %v382, 4
        %v385 = vor.u32 %v384, %v380
        %v386 = vrot.slane %v385, 4
        %v388 = vshll.u32 %v207, 16
        %v390 = vrot.slane %v388, 5
        %v391 = vsel %vm227, %v386, %v390
        %392 = vrot.lane.b32.xlu0 %v241, 4
        %v393 = vpop.permute.xlu0 %392
        %394 = vrot.lane.b32.xlu0 %v251, 4
        %v395 = vpop.permute.xlu0 %394
        %396 = vrot.lane.b32.xlu0 %v261, 4
        %v397 = vpop.permute.xlu0 %396
        %398 = vrot.lane.b32.xlu0 %v271, 4
        %v399 = vpop.permute.xlu0 %398
        %400 = vrot.lane.b32.xlu0 %v281, 4
        %v401 = vpop.permute.xlu0 %400
        %402 = vrot.lane.b32.xlu0 %v291, 4
        %v403 = vpop.permute.xlu0 %402
        %404 = vrot.lane.b32.xlu0 %v301, 4
        %v405 = vpop.permute.xlu0 %404
        %406 = vrot.lane.b32.xlu0 %v311, 4
        %v407 = vpop.permute.xlu0 %406
        %408 = vrot.lane.b32.xlu0 %v321, 4
        %v409 = vpop.permute.xlu0 %408
        %410 = vrot.lane.b32.xlu0 %v331, 4
        %v411 = vpop.permute.xlu0 %410
        %412 = vrot.lane.b32.xlu0 %v341, 4
        %v413 = vpop.permute.xlu0 %412
        %414 = vrot.lane.b32.xlu0 %v351, 4
        %v415 = vpop.permute.xlu0 %414
        %416 = vrot.lane.b32.xlu0 %v361, 4
        %v417 = vpop.permute.xlu0 %416
        %418 = vrot.lane.b32.xlu0 %v371, 4
        %v419 = vpop.permute.xlu0 %418
        %420 = vrot.lane.b32.xlu0 %v381, 4
        %v421 = vpop.permute.xlu0 %420
        %422 = vrot.lane.b32.xlu0 %v391, 4
        %v423 = vpop.permute.xlu0 %422
        %vm440 = vcmask 60448
        %441 = vst.msk [vmem:[#allocation2] sm:$0xf] %vm440, %v393
        %442 = vst.msk [vmem:[#allocation2 + $0x4] sm:$0xf] %vm440, %v395
        %443 = vst.msk [vmem:[#allocation2 + $0x8] sm:$0xf] %vm440, %v397
        %444 = vst.msk [vmem:[#allocation2 + $0xc] sm:$0xf] %vm440, %v399
        %445 = vst.msk [vmem:[#allocation2 + $0x10] sm:$0xf] %vm440, %v401
        %446 = vst.msk [vmem:[#allocation2 + $0x14] sm:$0xf] %vm440, %v403
        %447 = vst.msk [vmem:[#allocation2 + $0x18] sm:$0xf] %vm440, %v405
        %448 = vst.msk [vmem:[#allocation2 + $0x1c] sm:$0xf] %vm440, %v407
        %449 = vst.msk [vmem:[#allocation2 + $0x20] sm:$0xf] %vm440, %v409
        %450 = vst.msk [vmem:[#allocation2 + $0x24] sm:$0xf] %vm440, %v411
        %451 = vst.msk [vmem:[#allocation2 + $0x28] sm:$0xf] %vm440, %v413
        %452 = vst.msk [vmem:[#allocation2 + $0x2c] sm:$0xf] %vm440, %v415
        %453 = vst.msk [vmem:[#allocation2 + $0x30] sm:$0xf] %vm440, %v417
        %454 = vst.msk [vmem:[#allocation2 + $0x34] sm:$0xf] %vm440, %v419
        %455 = vst.msk [vmem:[#allocation2 + $0x38] sm:$0xf] %vm440, %v421
        %456 = vst.msk [vmem:[#allocation2 + $0x3c] sm:$0xf] %vm440, %v423
        %vm474 = vcmask 1042432
        %vm475 = vcmask 1046532
        %vm476 = vmor %vm474, %vm475
        %v477 = vrot.slane %v191, 5
        %v478 = vrot.slane %v477, 4
        %v479 = vrot.slane %v192, 5
        %v480 = vsel %vm476, %v478, %v479
        %v481 = vrot.slane %v479, 4
        %v482 = vrot.slane %v193, 5
        %v483 = vsel %vm476, %v481, %v482
        %v484 = vrot.slane %v482, 4
        %v485 = vrot.slane %v194, 5
        %v486 = vsel %vm476, %v484, %v485
        %v487 = vrot.slane %v485, 4
        %v488 = vrot.slane %v195, 5
        %v489 = vsel %vm476, %v487, %v488
        %v490 = vrot.slane %v488, 4
        %v491 = vrot.slane %v196, 5
        %v492 = vsel %vm476, %v490, %v491
        %v493 = vrot.slane %v491, 4
        %v494 = vrot.slane %v197, 5
        %v495 = vsel %vm476, %v493, %v494
        %v496 = vrot.slane %v494, 4
        %v497 = vrot.slane %v198, 5
        %v498 = vsel %vm476, %v496, %v497
        %v499 = vrot.slane %v497, 4
        %v500 = vrot.slane %v199, 5
        %v501 = vsel %vm476, %v499, %v500
        %v502 = vrot.slane %v500, 4
        %v503 = vrot.slane %v200, 5
        %v504 = vsel %vm476, %v502, %v503
        %v505 = vrot.slane %v503, 4
        %v506 = vrot.slane %v201, 5
        %v507 = vsel %vm476, %v505, %v506
        %v508 = vrot.slane %v506, 4
        %v509 = vrot.slane %v202, 5
        %v510 = vsel %vm476, %v508, %v509
        %v511 = vrot.slane %v509, 4
        %v512 = vrot.slane %v203, 5
        %v513 = vsel %vm476, %v511, %v512
        %v514 = vrot.slane %v512, 4
        %v515 = vrot.slane %v204, 5
        %v516 = vsel %vm476, %v514, %v515
        %v517 = vrot.slane %v515, 4
        %v518 = vrot.slane %v205, 5
        %v519 = vsel %vm476, %v517, %v518
        %v520 = vrot.slane %v518, 4
        %v521 = vrot.slane %v206, 5
        %v522 = vsel %vm476, %v520, %v521
        %v523 = vrot.slane %v521, 4
        %v524 = vrot.slane %v207, 5
        %v525 = vsel %vm476, %v523, %v524
        %526 = vrot.lane.b32.xlu0 %v480, 8
        %v527 = vpop.permute.xlu0 %526
        %528 = vrot.lane.b32.xlu0 %v483, 8
        %v529 = vpop.permute.xlu0 %528
        %530 = vrot.lane.b32.xlu0 %v486, 8
        %v531 = vpop.permute.xlu0 %530
        %532 = vrot.lane.b32.xlu0 %v489, 8
        %v533 = vpop.permute.xlu0 %532
        %534 = vrot.lane.b32.xlu0 %v492, 8
        %v535 = vpop.permute.xlu0 %534
        %536 = vrot.lane.b32.xlu0 %v495, 8
        %v537 = vpop.permute.xlu0 %536
        %538 = vrot.lane.b32.xlu0 %v498, 8
        %v539 = vpop.permute.xlu0 %538
        %540 = vrot.lane.b32.xlu0 %v501, 8
        %v541 = vpop.permute.xlu0 %540
        %542 = vrot.lane.b32.xlu0 %v504, 8
        %v543 = vpop.permute.xlu0 %542
        %544 = vrot.lane.b32.xlu0 %v507, 8
        %v545 = vpop.permute.xlu0 %544
        %546 = vrot.lane.b32.xlu0 %v510, 8
        %v547 = vpop.permute.xlu0 %546
        %548 = vrot.lane.b32.xlu0 %v513, 8
        %v549 = vpop.permute.xlu0 %548
        %550 = vrot.lane.b32.xlu0 %v516, 8
        %v551 = vpop.permute.xlu0 %550
        %552 = vrot.lane.b32.xlu0 %v519, 8
        %v553 = vpop.permute.xlu0 %552
        %554 = vrot.lane.b32.xlu0 %v522, 8
        %v555 = vpop.permute.xlu0 %554
        %556 = vrot.lane.b32.xlu0 %v525, 8
        %v557 = vpop.permute.xlu0 %556
        %vm574 = vcmask 93248
        %575 = vst.msk [vmem:[#allocation2] sm:$0xf] %vm574, %v527
        %576 = vst.msk [vmem:[#allocation2 + $0x4] sm:$0xf] %vm574, %v529
        %577 = vst.msk [vmem:[#allocation2 + $0x8] sm:$0xf] %vm574, %v531
        %578 = vst.msk [vmem:[#allocation2 + $0xc] sm:$0xf] %vm574, %v533
        %579 = vst.msk [vmem:[#allocation2 + $0x10] sm:$0xf] %vm574, %v535
        %580 = vst.msk [vmem:[#allocation2 + $0x14] sm:$0xf] %vm574, %v537
        %581 = vst.msk [vmem:[#allocation2 + $0x18] sm:$0xf] %vm574, %v539
        %582 = vst.msk [vmem:[#allocation2 + $0x1c] sm:$0xf] %vm574, %v541
        %583 = vst.msk [vmem:[#allocation2 + $0x20] sm:$0xf] %vm574, %v543
        %584 = vst.msk [vmem:[#allocation2 + $0x24] sm:$0xf] %vm574, %v545
        %585 = vst.msk [vmem:[#allocation2 + $0x28] sm:$0xf] %vm574, %v547
        %586 = vst.msk [vmem:[#allocation2 + $0x2c] sm:$0xf] %vm574, %v549
        %587 = vst.msk [vmem:[#allocation2 + $0x30] sm:$0xf] %vm574, %v551
        %588 = vst.msk [vmem:[#allocation2 + $0x34] sm:$0xf] %vm574, %v553
        %589 = vst.msk [vmem:[#allocation2 + $0x38] sm:$0xf] %vm574, %v555
        %590 = vst.msk [vmem:[#allocation2 + $0x3c] sm:$0xf] %vm574, %v557
        %s591 = sadd.s32 %s185, 1
        %s592 = smul.u32 %s591, 16
        %s593 = sshra.s32 %s592, 3
        %s594 = sand.u32 %s592, 7
        %s595 = smul.addr %s593, 4
        %s596 = scalar_lea.vmem %s182, %s595
        %v597 = vld [vmem:[%s596] sm:$0xf]
        %v598 = vld [vmem:[%s596 + $0x4] sm:$0xf]
        %v599 = vld [vmem:[%s596 + $0x8] sm:$0xf]
        %v600 = vld [vmem:[%s596 + $0xc] sm:$0xf]
        %v601 = vld [vmem:[%s596 + $0x10] sm:$0xf]
        %v602 = vld [vmem:[%s596 + $0x14] sm:$0xf]
        %v603 = vld [vmem:[%s596 + $0x18] sm:$0xf]
        %v604 = vld [vmem:[%s596 + $0x1c] sm:$0xf]
        %v605 = vld [vmem:[%s596 + $0x20] sm:$0xf]
        %v606 = vld [vmem:[%s596 + $0x24] sm:$0xf]
        %v607 = vld [vmem:[%s596 + $0x28] sm:$0xf]
        %v608 = vld [vmem:[%s596 + $0x2c] sm:$0xf]
        %v609 = vld [vmem:[%s596 + $0x30] sm:$0xf]
        %v610 = vld [vmem:[%s596 + $0x34] sm:$0xf]
        %v611 = vld [vmem:[%s596 + $0x38] sm:$0xf]
        %v612 = vld [vmem:[%s596 + $0x3c] sm:$0xf]
        %v613 = vld [vmem:[%s596 + $0x40] sm:$0xf]
        %630 = vrot.lane.b32.xlu0 %v597, 12
        %v631 = vpop.permute.xlu0 %630
        %632 = vrot.lane.b32.xlu0 %v598, 12
        %v633 = vpop.permute.xlu0 %632
        %634 = vrot.lane.b32.xlu0 %v599, 12
        %v635 = vpop.permute.xlu0 %634
        %636 = vrot.lane.b32.xlu0 %v600, 12
        %v637 = vpop.permute.xlu0 %636
        %638 = vrot.lane.b32.xlu0 %v601, 12
        %v639 = vpop.permute.xlu0 %638
        %640 = vrot.lane.b32.xlu0 %v602, 12
        %v641 = vpop.permute.xlu0 %640
        %642 = vrot.lane.b32.xlu0 %v603, 12
        %v643 = vpop.permute.xlu0 %642
        %644 = vrot.lane.b32.xlu0 %v604, 12
        %v645 = vpop.permute.xlu0 %644
        %646 = vrot.lane.b32.xlu0 %v605, 12
        %v647 = vpop.permute.xlu0 %646
        %648 = vrot.lane.b32.xlu0 %v606, 12
        %v649 = vpop.permute.xlu0 %648
        %650 = vrot.lane.b32.xlu0 %v607, 12
        %v651 = vpop.permute.xlu0 %650
        %652 = vrot.lane.b32.xlu0 %v608, 12
        %v653 = vpop.permute.xlu0 %652
        %654 = vrot.lane.b32.xlu0 %v609, 12
        %v655 = vpop.permute.xlu0 %654
        %656 = vrot.lane.b32.xlu0 %v610, 12
        %v657 = vpop.permute.xlu0 %656
        %658 = vrot.lane.b32.xlu0 %v611, 12
        %v659 = vpop.permute.xlu0 %658
        %660 = vrot.lane.b32.xlu0 %v612, 12
        %v661 = vpop.permute.xlu0 %660
        %vm678 = vcmask 126048
        %679 = vst.msk [vmem:[#allocation2] sm:$0xf] %vm678, %v631
        %680 = vst.msk [vmem:[#allocation2 + $0x4] sm:$0xf] %vm678, %v633
        %681 = vst.msk [vmem:[#allocation2 + $0x8] sm:$0xf] %vm678, %v635
        %682 = vst.msk [vmem:[#allocation2 + $0xc] sm:$0xf] %vm678, %v637
        %683 = vst.msk [vmem:[#allocation2 + $0x10] sm:$0xf] %vm678, %v639
        %684 = vst.msk [vmem:[#allocation2 + $0x14] sm:$0xf] %vm678, %v641
        %685 = vst.msk [vmem:[#allocation2 + $0x18] sm:$0xf] %vm678, %v643
        %686 = vst.msk [vmem:[#allocation2 + $0x1c] sm:$0xf] %vm678, %v645
        %687 = vst.msk [vmem:[#allocation2 + $0x20] sm:$0xf] %vm678, %v647
        %688 = vst.msk [vmem:[#allocation2 + $0x24] sm:$0xf] %vm678, %v649
        %689 = vst.msk [vmem:[#allocation2 + $0x28] sm:$0xf] %vm678, %v651
        %690 = vst.msk [vmem:[#allocation2 + $0x2c] sm:$0xf] %vm678, %v653
        %691 = vst.msk [vmem:[#allocation2 + $0x30] sm:$0xf] %vm678, %v655
        %692 = vst.msk [vmem:[#allocation2 + $0x34] sm:$0xf] %vm678, %v657
        %693 = vst.msk [vmem:[#allocation2 + $0x38] sm:$0xf] %vm678, %v659
        %694 = vst.msk [vmem:[#allocation2 + $0x3c] sm:$0xf] %vm678, %v661
        %v696 = vshrl.u32 %v597, 16
        %v698 = vrot.slane %v696, 4
        %v699 = vshll.u32 %v597, 16
        %v701 = vrot.slane %v699, 5
        %v702 = vor.u32 %v698, %v701
        %v703 = vrot.slane %v702, 4
        %v705 = vshll.u32 %v598, 16
        %v707 = vrot.slane %v705, 5
        %v708 = vsel %vm227, %v703, %v707
        %v709 = vshrl.u32 %v598, 16
        %v711 = vrot.slane %v709, 4
        %v712 = vor.u32 %v711, %v707
        %v713 = vrot.slane %v712, 4
        %v715 = vshll.u32 %v599, 16
        %v717 = vrot.slane %v715, 5
        %v718 = vsel %vm227, %v713, %v717
        %v719 = vshrl.u32 %v599, 16
        %v721 = vrot.slane %v719, 4
        %v722 = vor.u32 %v721, %v717
        %v723 = vrot.slane %v722, 4
        %v725 = vshll.u32 %v600, 16
        %v727 = vrot.slane %v725, 5
        %v728 = vsel %vm227, %v723, %v727
        %v729 = vshrl.u32 %v600, 16
        %v731 = vrot.slane %v729, 4
        %v732 = vor.u32 %v731, %v727
        %v733 = vrot.slane %v732, 4
        %v735 = vshll.u32 %v601, 16
        %v737 = vrot.slane %v735, 5
        %v738 = vsel %vm227, %v733, %v737
        %v739 = vshrl.u32 %v601, 16
        %v741 = vrot.slane %v739, 4
        %v742 = vor.u32 %v741, %v737
        %v743 = vrot.slane %v742, 4
        %v745 = vshll.u32 %v602, 16
        %v747 = vrot.slane %v745, 5
        %v748 = vsel %vm227, %v743, %v747
        %v749 = vshrl.u32 %v602, 16
        %v751 = vrot.slane %v749, 4
        %v752 = vor.u32 %v751, %v747
        %v753 = vrot.slane %v752, 4
        %v755 = vshll.u32 %v603, 16
        %v757 = vrot.slane %v755, 5
        %v758 = vsel %vm227, %v753, %v757
        %v759 = vshrl.u32 %v603, 16
        %v761 = vrot.slane %v759, 4
        %v762 = vor.u32 %v761, %v757
        %v763 = vrot.slane %v762, 4
        %v765 = vshll.u32 %v604, 16
        %v767 = vrot.slane %v765, 5
        %v768 = vsel %vm227, %v763, %v767
        %v769 = vshrl.u32 %v604, 16
        %v771 = vrot.slane %v769, 4
        %v772 = vor.u32 %v771, %v767
        %v773 = vrot.slane %v772, 4
        %v775 = vshll.u32 %v605, 16
        %v777 = vrot.slane %v775, 5
        %v778 = vsel %vm227, %v773, %v777
        %v779 = vshrl.u32 %v605, 16
        %v781 = vrot.slane %v779, 4
        %v782 = vor.u32 %v781, %v777
        %v783 = vrot.slane %v782, 4
        %v785 = vshll.u32 %v606, 16
        %v787 = vrot.slane %v785, 5
        %v788 = vsel %vm227, %v783, %v787
        %v789 = vshrl.u32 %v606, 16
        %v791 = vrot.slane %v789, 4
        %v792 = vor.u32 %v791, %v787
        %v793 = vrot.slane %v792, 4
        %v795 = vshll.u32 %v607, 16
        %v797 = vrot.slane %v795, 5
        %v798 = vsel %vm227, %v793, %v797
        %v799 = vshrl.u32 %v607, 16
        %v801 = vrot.slane %v799, 4
        %v802 = vor.u32 %v801, %v797
        %v803 = vrot.slane %v802, 4
        %v805 = vshll.u32 %v608, 16
        %v807 = vrot.slane %v805, 5
        %v808 = vsel %vm227, %v803, %v807
        %v809 = vshrl.u32 %v608, 16
        %v811 = vrot.slane %v809, 4
        %v812 = vor.u32 %v811, %v807
        %v813 = vrot.slane %v812, 4
        %v815 = vshll.u32 %v609, 16
        %v817 = vrot.slane %v815, 5
        %v818 = vsel %vm227, %v813, %v817
        %v819 = vshrl.u32 %v609, 16
        %v821 = vrot.slane %v819, 4
        %v822 = vor.u32 %v821, %v817
        %v823 = vrot.slane %v822, 4
        %v825 = vshll.u32 %v610, 16
        %v827 = vrot.slane %v825, 5
        %v828 = vsel %vm227, %v823, %v827
        %v829 = vshrl.u32 %v610, 16
        %v831 = vrot.slane %v829, 4
        %v832 = vor.u32 %v831, %v827
        %v833 = vrot.slane %v832, 4
        %v835 = vshll.u32 %v611, 16
        %v837 = vrot.slane %v835, 5
        %v838 = vsel %vm227, %v833, %v837
        %v839 = vshrl.u32 %v611, 16
        %v841 = vrot.slane %v839, 4
        %v842 = vor.u32 %v841, %v837
        %v843 = vrot.slane %v842, 4
        %v845 = vshll.u32 %v612, 16
        %v847 = vrot.slane %v845, 5
        %v848 = vsel %vm227, %v843, %v847
        %v849 = vshrl.u32 %v612, 16
        %v851 = vrot.slane %v849, 4
        %v852 = vor.u32 %v851, %v847
        %v853 = vrot.slane %v852, 4
        %v855 = vshll.u32 %v613, 16
        %v857 = vrot.slane %v855, 5
        %v858 = vsel %vm227, %v853, %v857
        %859 = vrot.lane.b32.xlu0 %v708, 16
        %v860 = vpop.permute.xlu0 %859
        %861 = vrot.lane.b32.xlu0 %v718, 16
        %v862 = vpop.permute.xlu0 %861
        %863 = vrot.lane.b32.xlu0 %v728, 16
        %v864 = vpop.permute.xlu0 %863
        %865 = vrot.lane.b32.xlu0 %v738, 16
        %v866 = vpop.permute.xlu0 %865
        %867 = vrot.lane.b32.xlu0 %v748, 16
        %v868 = vpop.permute.xlu0 %867
        %869 = vrot.lane.b32.xlu0 %v758, 16
        %v870 = vpop.permute.xlu0 %869
        %871 = vrot.lane.b32.xlu0 %v768, 16
        %v872 = vpop.permute.xlu0 %871
        %873 = vrot.lane.b32.xlu0 %v778, 16
        %v874 = vpop.permute.xlu0 %873
        %875 = vrot.lane.b32.xlu0 %v788, 16
        %v876 = vpop.permute.xlu0 %875
        %877 = vrot.lane.b32.xlu0 %v798, 16
        %v878 = vpop.permute.xlu0 %877
        %879 = vrot.lane.b32.xlu0 %v808, 16
        %v880 = vpop.permute.xlu0 %879
        %881 = vrot.lane.b32.xlu0 %v818, 16
        %v882 = vpop.permute.xlu0 %881
        %883 = vrot.lane.b32.xlu0 %v828, 16
        %v884 = vpop.permute.xlu0 %883
        %885 = vrot.lane.b32.xlu0 %v838, 16
        %v886 = vpop.permute.xlu0 %885
        %887 = vrot.lane.b32.xlu0 %v848, 16
        %v888 = vpop.permute.xlu0 %887
        %889 = vrot.lane.b32.xlu0 %v858, 16
        %v890 = vpop.permute.xlu0 %889
        %vm907 = vcmask 158848
        %908 = vst.msk [vmem:[#allocation2] sm:$0xf] %vm907, %v860
        %909 = vst.msk [vmem:[#allocation2 + $0x4] sm:$0xf] %vm907, %v862
        %910 = vst.msk [vmem:[#allocation2 + $0x8] sm:$0xf] %vm907, %v864
        %911 = vst.msk [vmem:[#allocation2 + $0xc] sm:$0xf] %vm907, %v866
        %912 = vst.msk [vmem:[#allocation2 + $0x10] sm:$0xf] %vm907, %v868
        %913 = vst.msk [vmem:[#allocation2 + $0x14] sm:$0xf] %vm907, %v870
        %914 = vst.msk [vmem:[#allocation2 + $0x18] sm:$0xf] %vm907, %v872
        %915 = vst.msk [vmem:[#allocation2 + $0x1c] sm:$0xf] %vm907, %v874
        %916 = vst.msk [vmem:[#allocation2 + $0x20] sm:$0xf] %vm907, %v876
        %917 = vst.msk [vmem:[#allocation2 + $0x24] sm:$0xf] %vm907, %v878
        %918 = vst.msk [vmem:[#allocation2 + $0x28] sm:$0xf] %vm907, %v880
        %919 = vst.msk [vmem:[#allocation2 + $0x2c] sm:$0xf] %vm907, %v882
        %920 = vst.msk [vmem:[#allocation2 + $0x30] sm:$0xf] %vm907, %v884
        %921 = vst.msk [vmem:[#allocation2 + $0x34] sm:$0xf] %vm907, %v886
        %922 = vst.msk [vmem:[#allocation2 + $0x38] sm:$0xf] %vm907, %v888
        %923 = vst.msk [vmem:[#allocation2 + $0x3c] sm:$0xf] %vm907, %v890
        %v925 = vrot.slane %v597, 5
        %v926 = vrot.slane %v925, 4
        %v927 = vrot.slane %v598, 5
        %v928 = vsel %vm476, %v926, %v927
        %v929 = vrot.slane %v927, 4
        %v930 = vrot.slane %v599, 5
        %v931 = vsel %vm476, %v929, %v930
        %v932 = vrot.slane %v930, 4
        %v933 = vrot.slane %v600, 5
        %v934 = vsel %vm476, %v932, %v933
        %v935 = vrot.slane %v933, 4
        %v936 = vrot.slane %v601, 5
        %v937 = vsel %vm476, %v935, %v936
        %v938 = vrot.slane %v936, 4
        %v939 = vrot.slane %v602, 5
        %v940 = vsel %vm476, %v938, %v939
        %v941 = vrot.slane %v939, 4
        %v942 = vrot.slane %v603, 5
        %v943 = vsel %vm476, %v941, %v942
        %v944 = vrot.slane %v942, 4
        %v945 = vrot.slane %v604, 5
        %v946 = vsel %vm476, %v944, %v945
        %v947 = vrot.slane %v945, 4
        %v948 = vrot.slane %v605, 5
        %v949 = vsel %vm476, %v947, %v948
        %v950 = vrot.slane %v948, 4
        %v951 = vrot.slane %v606, 5
        %v952 = vsel %vm476, %v950, %v951
        %v953 = vrot.slane %v951, 4
        %v954 = vrot.slane %v607, 5
        %v955 = vsel %vm476, %v953, %v954
        %v956 = vrot.slane %v954, 4
        %v957 = vrot.slane %v608, 5
        %v958 = vsel %vm476, %v956, %v957
        %v959 = vrot.slane %v957, 4
        %v960 = vrot.slane %v609, 5
        %v961 = vsel %vm476, %v959, %v960
        %v962 = vrot.slane %v960, 4
        %v963 = vrot.slane %v610, 5
        %v964 = vsel %vm476, %v962, %v963
        %v965 = vrot.slane %v963, 4
        %v966 = vrot.slane %v611, 5
        %v967 = vsel %vm476, %v965, %v966
        %v968 = vrot.slane %v966, 4
        %v969 = vrot.slane %v612, 5
        %v970 = vsel %vm476, %v968, %v969
        %v971 = vrot.slane %v969, 4
        %v972 = vrot.slane %v613, 5
        %v973 = vsel %vm476, %v971, %v972
        %974 = vrot.lane.b32.xlu0 %v928, 20
        %v975 = vpop.permute.xlu0 %974
        %976 = vrot.lane.b32.xlu0 %v931, 20
        %v977 = vpop.permute.xlu0 %976
        %978 = vrot.lane.b32.xlu0 %v934, 20
        %v979 = vpop.permute.xlu0 %978
        %980 = vrot.lane.b32.xlu0 %v937, 20
        %v981 = vpop.permute.xlu0 %980
        %982 = vrot.lane.b32.xlu0 %v940, 20
        %v983 = vpop.permute.xlu0 %982
        %984 = vrot.lane.b32.xlu0 %v943, 20
        %v985 = vpop.permute.xlu0 %984
        %986 = vrot.lane.b32.xlu0 %v946, 20
        %v987 = vpop.permute.xlu0 %986
        %988 = vrot.lane.b32.xlu0 %v949, 20
        %v989 = vpop.permute.xlu0 %988
        %990 = vrot.lane.b32.xlu0 %v952, 20
        %v991 = vpop.permute.xlu0 %990
        %992 = vrot.lane.b32.xlu0 %v955, 20
        %v993 = vpop.permute.xlu0 %992
        %994 = vrot.lane.b32.xlu0 %v958, 20
        %v995 = vpop.permute.xlu0 %994
        %996 = vrot.lane.b32.xlu0 %v961, 20
        %v997 = vpop.permute.xlu0 %996
        %998 = vrot.lane.b32.xlu0 %v964, 20
        %v999 = vpop.permute.xlu0 %998
        %1000 = vrot.lane.b32.xlu0 %v967, 20
        %v1001 = vpop.permute.xlu0 %1000
        %1002 = vrot.lane.b32.xlu0 %v970, 20
        %v1003 = vpop.permute.xlu0 %1002
        %1004 = vrot.lane.b32.xlu0 %v973, 20
        %v1005 = vpop.permute.xlu0 %1004
        %vm1022 = vcmask 191648
        %1023 = vst.msk [vmem:[#allocation2] sm:$0xf] %vm1022, %v975
        %1024 = vst.msk [vmem:[#allocation2 + $0x4] sm:$0xf] %vm1022, %v977
        %1025 = vst.msk [vmem:[#allocation2 + $0x8] sm:$0xf] %vm1022, %v979
        %1026 = vst.msk [vmem:[#allocation2 + $0xc] sm:$0xf] %vm1022, %v981
        %1027 = vst.msk [vmem:[#allocation2 + $0x10] sm:$0xf] %vm1022, %v983
        %1028 = vst.msk [vmem:[#allocation2 + $0x14] sm:$0xf] %vm1022, %v985
        %1029 = vst.msk [vmem:[#allocation2 + $0x18] sm:$0xf] %vm1022, %v987
        %1030 = vst.msk [vmem:[#allocation2 + $0x1c] sm:$0xf] %vm1022, %v989
        %1031 = vst.msk [vmem:[#allocation2 + $0x20] sm:$0xf] %vm1022, %v991
        %1032 = vst.msk [vmem:[#allocation2 + $0x24] sm:$0xf] %vm1022, %v993
        %1033 = vst.msk [vmem:[#allocation2 + $0x28] sm:$0xf] %vm1022, %v995
        %1034 = vst.msk [vmem:[#allocation2 + $0x2c] sm:$0xf] %vm1022, %v997
        %1035 = vst.msk [vmem:[#allocation2 + $0x30] sm:$0xf] %vm1022, %v999
        %1036 = vst.msk [vmem:[#allocation2 + $0x34] sm:$0xf] %vm1022, %v1001
        %1037 = vst.msk [vmem:[#allocation2 + $0x38] sm:$0xf] %vm1022, %v1003
        %1038 = vst.msk [vmem:[#allocation2 + $0x3c] sm:$0xf] %vm1022, %v1005
        %s1039 = sadd.s32 %s185, 2
        %s1040 = smul.u32 %s1039, 16
        %s1041 = sshra.s32 %s1040, 3
        %s1042 = sand.u32 %s1040, 7
        %s1043 = smul.addr %s1041, 4
        %s1044 = scalar_lea.vmem %s182, %s1043
        %v1045 = vld [vmem:[%s1044] sm:$0xf]
        %v1046 = vld [vmem:[%s1044 + $0x4] sm:$0xf]
        %v1047 = vld [vmem:[%s1044 + $0x8] sm:$0xf]
        %v1048 = vld [vmem:[%s1044 + $0xc] sm:$0xf]
        %v1049 = vld [vmem:[%s1044 + $0x10] sm:$0xf]
        %v1050 = vld [vmem:[%s1044 + $0x14] sm:$0xf]
        %v1051 = vld [vmem:[%s1044 + $0x18] sm:$0xf]
        %v1052 = vld [vmem:[%s1044 + $0x1c] sm:$0xf]
        %v1053 = vld [vmem:[%s1044 + $0x20] sm:$0xf]
        %v1054 = vld [vmem:[%s1044 + $0x24] sm:$0xf]
        %v1055 = vld [vmem:[%s1044 + $0x28] sm:$0xf]
        %v1056 = vld [vmem:[%s1044 + $0x2c] sm:$0xf]
        %v1057 = vld [vmem:[%s1044 + $0x30] sm:$0xf]
        %v1058 = vld [vmem:[%s1044 + $0x34] sm:$0xf]
        %v1059 = vld [vmem:[%s1044 + $0x38] sm:$0xf]
        %v1060 = vld [vmem:[%s1044 + $0x3c] sm:$0xf]
        %v1061 = vld [vmem:[%s1044 + $0x40] sm:$0xf]
        %1078 = vrot.lane.b32.xlu0 %v1045, 24
        %v1079 = vpop.permute.xlu0 %1078
        %1080 = vrot.lane.b32.xlu0 %v1046, 24
        %v1081 = vpop.permute.xlu0 %1080
        %1082 = vrot.lane.b32.xlu0 %v1047, 24
        %v1083 = vpop.permute.xlu0 %1082
        %1084 = vrot.lane.b32.xlu0 %v1048, 24
        %v1085 = vpop.permute.xlu0 %1084
        %1086 = vrot.lane.b32.xlu0 %v1049, 24
        %v1087 = vpop.permute.xlu0 %1086
        %1088 = vrot.lane.b32.xlu0 %v1050, 24
        %v1089 = vpop.permute.xlu0 %1088
        %1090 = vrot.lane.b32.xlu0 %v1051, 24
        %v1091 = vpop.permute.xlu0 %1090
        %1092 = vrot.lane.b32.xlu0 %v1052, 24
        %v1093 = vpop.permute.xlu0 %1092
        %1094 = vrot.lane.b32.xlu0 %v1053, 24
        %v1095 = vpop.permute.xlu0 %1094
        %1096 = vrot.lane.b32.xlu0 %v1054, 24
        %v1097 = vpop.permute.xlu0 %1096
        %1098 = vrot.lane.b32.xlu0 %v1055, 24
        %v1099 = vpop.permute.xlu0 %1098
        %1100 = vrot.lane.b32.xlu0 %v1056, 24
        %v1101 = vpop.permute.xlu0 %1100
        %1102 = vrot.lane.b32.xlu0 %v1057, 24
        %v1103 = vpop.permute.xlu0 %1102
        %1104 = vrot.lane.b32.xlu0 %v1058, 24
        %v1105 = vpop.permute.xlu0 %1104
        %1106 = vrot.lane.b32.xlu0 %v1059, 24
        %v1107 = vpop.permute.xlu0 %1106
        %1108 = vrot.lane.b32.xlu0 %v1060, 24
        %v1109 = vpop.permute.xlu0 %1108
        %vm1126 = vcmask 224448
        %1127 = vst.msk [vmem:[#allocation2] sm:$0xf] %vm1126, %v1079
        %1128 = vst.msk [vmem:[#allocation2 + $0x4] sm:$0xf] %vm1126, %v1081
        %1129 = vst.msk [vmem:[#allocation2 + $0x8] sm:$0xf] %vm1126, %v1083
        %1130 = vst.msk [vmem:[#allocation2 + $0xc] sm:$0xf] %vm1126, %v1085
        %1131 = vst.msk [vmem:[#allocation2 + $0x10] sm:$0xf] %vm1126, %v1087
        %1132 = vst.msk [vmem:[#allocation2 + $0x14] sm:$0xf] %vm1126, %v1089
        %1133 = vst.msk [vmem:[#allocation2 + $0x18] sm:$0xf] %vm1126, %v1091
        %1134 = vst.msk [vmem:[#allocation2 + $0x1c] sm:$0xf] %vm1126, %v1093
        %1135 = vst.msk [vmem:[#allocation2 + $0x20] sm:$0xf] %vm1126, %v1095
        %1136 = vst.msk [vmem:[#allocation2 + $0x24] sm:$0xf] %vm1126, %v1097
        %1137 = vst.msk [vmem:[#allocation2 + $0x28] sm:$0xf] %vm1126, %v1099
        %1138 = vst.msk [vmem:[#allocation2 + $0x2c] sm:$0xf] %vm1126, %v1101
        %1139 = vst.msk [vmem:[#allocation2 + $0x30] sm:$0xf] %vm1126, %v1103
        %1140 = vst.msk [vmem:[#allocation2 + $0x34] sm:$0xf] %vm1126, %v1105
        %1141 = vst.msk [vmem:[#allocation2 + $0x38] sm:$0xf] %vm1126, %v1107
        %1142 = vst.msk [vmem:[#allocation2 + $0x3c] sm:$0xf] %vm1126, %v1109
        %v1144 = vshrl.u32 %v1045, 16
        %v1146 = vrot.slane %v1144, 4
        %v1147 = vshll.u32 %v1045, 16
        %v1149 = vrot.slane %v1147, 5
        %v1150 = vor.u32 %v1146, %v1149
        %v1151 = vrot.slane %v1150, 4
        %v1153 = vshll.u32 %v1046, 16
        %v1155 = vrot.slane %v1153, 5
        %v1156 = vsel %vm227, %v1151, %v1155
        %v1157 = vshrl.u32 %v1046, 16
        %v1159 = vrot.slane %v1157, 4
        %v1160 = vor.u32 %v1159, %v1155
        %v1161 = vrot.slane %v1160, 4
        %v1163 = vshll.u32 %v1047, 16
        %v1165 = vrot.slane %v1163, 5
        %v1166 = vsel %vm227, %v1161, %v1165
        %v1167 = vshrl.u32 %v1047, 16
        %v1169 = vrot.slane %v1167, 4
        %v1170 = vor.u32 %v1169, %v1165
        %v1171 = vrot.slane %v1170, 4
        %v1173 = vshll.u32 %v1048, 16
        %v1175 = vrot.slane %v1173, 5
        %v1176 = vsel %vm227, %v1171, %v1175
        %v1177 = vshrl.u32 %v1048, 16
        %v1179 = vrot.slane %v1177, 4
        %v1180 = vor.u32 %v1179, %v1175
        %v1181 = vrot.slane %v1180, 4
        %v1183 = vshll.u32 %v1049, 16
        %v1185 = vrot.slane %v1183, 5
        %v1186 = vsel %vm227, %v1181, %v1185
        %v1187 = vshrl.u32 %v1049, 16
        %v1189 = vrot.slane %v1187, 4
        %v1190 = vor.u32 %v1189, %v1185
        %v1191 = vrot.slane %v1190, 4
        %v1193 = vshll.u32 %v1050, 16
        %v1195 = vrot.slane %v1193, 5
        %v1196 = vsel %vm227, %v1191, %v1195
        %v1197 = vshrl.u32 %v1050, 16
        %v1199 = vrot.slane %v1197, 4
        %v1200 = vor.u32 %v1199, %v1195
        %v1201 = vrot.slane %v1200, 4
        %v1203 = vshll.u32 %v1051, 16
        %v1205 = vrot.slane %v1203, 5
        %v1206 = vsel %vm227, %v1201, %v1205
        %v1207 = vshrl.u32 %v1051, 16
        %v1209 = vrot.slane %v1207, 4
        %v1210 = vor.u32 %v1209, %v1205
        %v1211 = vrot.slane %v1210, 4
        %v1213 = vshll.u32 %v1052, 16
        %v1215 = vrot.slane %v1213, 5
        %v1216 = vsel %vm227, %v1211, %v1215
        %v1217 = vshrl.u32 %v1052, 16
        %v1219 = vrot.slane %v1217, 4
        %v1220 = vor.u32 %v1219, %v1215
        %v1221 = vrot.slane %v1220, 4
        %v1223 = vshll.u32 %v1053, 16
        %v1225 = vrot.slane %v1223, 5
        %v1226 = vsel %vm227, %v1221, %v1225
        %v1227 = vshrl.u32 %v1053, 16
        %v1229 = vrot.slane %v1227, 4
        %v1230 = vor.u32 %v1229, %v1225
        %v1231 = vrot.slane %v1230, 4
        %v1233 = vshll.u32 %v1054, 16
        %v1235 = vrot.slane %v1233, 5
        %v1236 = vsel %vm227, %v1231, %v1235
        %v1237 = vshrl.u32 %v1054, 16
        %v1239 = vrot.slane %v1237, 4
        %v1240 = vor.u32 %v1239, %v1235
        %v1241 = vrot.slane %v1240, 4
        %v1243 = vshll.u32 %v1055, 16
        %v1245 = vrot.slane %v1243, 5
        %v1246 = vsel %vm227, %v1241, %v1245
        %v1247 = vshrl.u32 %v1055, 16
        %v1249 = vrot.slane %v1247, 4
        %v1250 = vor.u32 %v1249, %v1245
        %v1251 = vrot.slane %v1250, 4
        %v1253 = vshll.u32 %v1056, 16
        %v1255 = vrot.slane %v1253, 5
        %v1256 = vsel %vm227, %v1251, %v1255
        %v1257 = vshrl.u32 %v1056, 16
        %v1259 = vrot.slane %v1257, 4
        %v1260 = vor.u32 %v1259, %v1255
        %v1261 = vrot.slane %v1260, 4
        %v1263 = vshll.u32 %v1057, 16
        %v1265 = vrot.slane %v1263, 5
        %v1266 = vsel %vm227, %v1261, %v1265
        %v1267 = vshrl.u32 %v1057, 16
        %v1269 = vrot.slane %v1267, 4
        %v1270 = vor.u32 %v1269, %v1265
        %v1271 = vrot.slane %v1270, 4
        %v1273 = vshll.u32 %v1058, 16
        %v1275 = vrot.slane %v1273, 5
        %v1276 = vsel %vm227, %v1271, %v1275
        %v1277 = vshrl.u32 %v1058, 16
        %v1279 = vrot.slane %v1277, 4
        %v1280 = vor.u32 %v1279, %v1275
        %v1281 = vrot.slane %v1280, 4
        %v1283 = vshll.u32 %v1059, 16
        %v1285 = vrot.slane %v1283, 5
        %v1286 = vsel %vm227, %v1281, %v1285
        %v1287 = vshrl.u32 %v1059, 16
        %v1289 = vrot.slane %v1287, 4
        %v1290 = vor.u32 %v1289, %v1285
        %v1291 = vrot.slane %v1290, 4
        %v1293 = vshll.u32 %v1060, 16
        %v1295 = vrot.slane %v1293, 5
        %v1296 = vsel %vm227, %v1291, %v1295
        %v1297 = vshrl.u32 %v1060, 16
        %v1299 = vrot.slane %v1297, 4
        %v1300 = vor.u32 %v1299, %v1295
        %v1301 = vrot.slane %v1300, 4
        %v1303 = vshll.u32 %v1061, 16
        %v1305 = vrot.slane %v1303, 5
        %v1306 = vsel %vm227, %v1301, %v1305
        %1307 = vrot.lane.b32.xlu0 %v1156, 28
        %v1308 = vpop.permute.xlu0 %1307
        %1309 = vrot.lane.b32.xlu0 %v1166, 28
        %v1310 = vpop.permute.xlu0 %1309
        %1311 = vrot.lane.b32.xlu0 %v1176, 28
        %v1312 = vpop.permute.xlu0 %1311
        %1313 = vrot.lane.b32.xlu0 %v1186, 28
        %v1314 = vpop.permute.xlu0 %1313
        %1315 = vrot.lane.b32.xlu0 %v1196, 28
        %v1316 = vpop.permute.xlu0 %1315
        %1317 = vrot.lane.b32.xlu0 %v1206, 28
        %v1318 = vpop.permute.xlu0 %1317
        %1319 = vrot.lane.b32.xlu0 %v1216, 28
        %v1320 = vpop.permute.xlu0 %1319
        %1321 = vrot.lane.b32.xlu0 %v1226, 28
        %v1322 = vpop.permute.xlu0 %1321
        %1323 = vrot.lane.b32.xlu0 %v1236, 28
        %v1324 = vpop.permute.xlu0 %1323
        %1325 = vrot.lane.b32.xlu0 %v1246, 28
        %v1326 = vpop.permute.xlu0 %1325
        %1327 = vrot.lane.b32.xlu0 %v1256, 28
        %v1328 = vpop.permute.xlu0 %1327
        %1329 = vrot.lane.b32.xlu0 %v1266, 28
        %v1330 = vpop.permute.xlu0 %1329
        %1331 = vrot.lane.b32.xlu0 %v1276, 28
        %v1332 = vpop.permute.xlu0 %1331
        %1333 = vrot.lane.b32.xlu0 %v1286, 28
        %v1334 = vpop.permute.xlu0 %1333
        %1335 = vrot.lane.b32.xlu0 %v1296, 28
        %v1336 = vpop.permute.xlu0 %1335
        %1337 = vrot.lane.b32.xlu0 %v1306, 28
        %v1338 = vpop.permute.xlu0 %1337
        %vm1355 = vcmask 257248
        %1356 = vst.msk [vmem:[#allocation2] sm:$0xf] %vm1355, %v1308
        %1357 = vst.msk [vmem:[#allocation2 + $0x4] sm:$0xf] %vm1355, %v1310
        %1358 = vst.msk [vmem:[#allocation2 + $0x8] sm:$0xf] %vm1355, %v1312
        %1359 = vst.msk [vmem:[#allocation2 + $0xc] sm:$0xf] %vm1355, %v1314
        %1360 = vst.msk [vmem:[#allocation2 + $0x10] sm:$0xf] %vm1355, %v1316
        %1361 = vst.msk [vmem:[#allocation2 + $0x14] sm:$0xf] %vm1355, %v1318
        %1362 = vst.msk [vmem:[#allocation2 + $0x18] sm:$0xf] %vm1355, %v1320
        %1363 = vst.msk [vmem:[#allocation2 + $0x1c] sm:$0xf] %vm1355, %v1322
        %1364 = vst.msk [vmem:[#allocation2 + $0x20] sm:$0xf] %vm1355, %v1324
        %1365 = vst.msk [vmem:[#allocation2 + $0x24] sm:$0xf] %vm1355, %v1326
        %1366 = vst.msk [vmem:[#allocation2 + $0x28] sm:$0xf] %vm1355, %v1328
        %1367 = vst.msk [vmem:[#allocation2 + $0x2c] sm:$0xf] %vm1355, %v1330
        %1368 = vst.msk [vmem:[#allocation2 + $0x30] sm:$0xf] %vm1355, %v1332
        %1369 = vst.msk [vmem:[#allocation2 + $0x34] sm:$0xf] %vm1355, %v1334
        %1370 = vst.msk [vmem:[#allocation2 + $0x38] sm:$0xf] %vm1355, %v1336
        %1371 = vst.msk [vmem:[#allocation2 + $0x3c] sm:$0xf] %vm1355, %v1338
        %v1373 = vrot.slane %v1045, 5
        %v1374 = vrot.slane %v1373, 4
        %v1375 = vrot.slane %v1046, 5
        %v1376 = vsel %vm476, %v1374, %v1375
        %v1377 = vrot.slane %v1375, 4
        %v1378 = vrot.slane %v1047, 5
        %v1379 = vsel %vm476, %v1377, %v1378
        %v1380 = vrot.slane %v1378, 4
        %v1381 = vrot.slane %v1048, 5
        %v1382 = vsel %vm476, %v1380, %v1381
        %v1383 = vrot.slane %v1381, 4
        %v1384 = vrot.slane %v1049, 5
        %v1385 = vsel %vm476, %v1383, %v1384
        %v1386 = vrot.slane %v1384, 4
        %v1387 = vrot.slane %v1050, 5
        %v1388 = vsel %vm476, %v1386, %v1387
        %v1389 = vrot.slane %v1387, 4
        %v1390 = vrot.slane %v1051, 5
        %v1391 = vsel %vm476, %v1389, %v1390
        %v1392 = vrot.slane %v1390, 4
        %v1393 = vrot.slane %v1052, 5
        %v1394 = vsel %vm476, %v1392, %v1393
        %v1395 = vrot.slane %v1393, 4
        %v1396 = vrot.slane %v1053, 5
        %v1397 = vsel %vm476, %v1395, %v1396
        %v1398 = vrot.slane %v1396, 4
        %v1399 = vrot.slane %v1054, 5
        %v1400 = vsel %vm476, %v1398, %v1399
        %v1401 = vrot.slane %v1399, 4
        %v1402 = vrot.slane %v1055, 5
        %v1403 = vsel %vm476, %v1401, %v1402
        %v1404 = vrot.slane %v1402, 4
        %v1405 = vrot.slane %v1056, 5
        %v1406 = vsel %vm476, %v1404, %v1405
        %v1407 = vrot.slane %v1405, 4
        %v1408 = vrot.slane %v1057, 5
        %v1409 = vsel %vm476, %v1407, %v1408
        %v1410 = vrot.slane %v1408, 4
        %v1411 = vrot.slane %v1058, 5
        %v1412 = vsel %vm476, %v1410, %v1411
        %v1413 = vrot.slane %v1411, 4
        %v1414 = vrot.slane %v1059, 5
        %v1415 = vsel %vm476, %v1413, %v1414
        %v1416 = vrot.slane %v1414, 4
        %v1417 = vrot.slane %v1060, 5
        %v1418 = vsel %vm476, %v1416, %v1417
        %v1419 = vrot.slane %v1417, 4
        %v1420 = vrot.slane %v1061, 5
        %v1421 = vsel %vm476, %v1419, %v1420
        %1422 = vrot.lane.b32.xlu0 %v1376, 32
        %v1423 = vpop.permute.xlu0 %1422
        %1424 = vrot.lane.b32.xlu0 %v1379, 32
        %v1425 = vpop.permute.xlu0 %1424
        %1426 = vrot.lane.b32.xlu0 %v1382, 32
        %v1427 = vpop.permute.xlu0 %1426
        %1428 = vrot.lane.b32.xlu0 %v1385, 32
        %v1429 = vpop.permute.xlu0 %1428
        %1430 = vrot.lane.b32.xlu0 %v1388, 32
        %v1431 = vpop.permute.xlu0 %1430
        %1432 = vrot.lane.b32.xlu0 %v1391, 32
        %v1433 = vpop.permute.xlu0 %1432
        %1434 = vrot.lane.b32.xlu0 %v1394, 32
        %v1435 = vpop.permute.xlu0 %1434
        %1436 = vrot.lane.b32.xlu0 %v1397, 32
        %v1437 = vpop.permute.xlu0 %1436
        %1438 = vrot.lane.b32.xlu0 %v1400, 32
        %v1439 = vpop.permute.xlu0 %1438
        %1440 = vrot.lane.b32.xlu0 %v1403, 32
        %v1441 = vpop.permute.xlu0 %1440
        %1442 = vrot.lane.b32.xlu0 %v1406, 32
        %v1443 = vpop.permute.xlu0 %1442
        %1444 = vrot.lane.b32.xlu0 %v1409, 32
        %v1445 = vpop.permute.xlu0 %1444
        %1446 = vrot.lane.b32.xlu0 %v1412, 32
        %v1447 = vpop.permute.xlu0 %1446
        %1448 = vrot.lane.b32.xlu0 %v1415, 32
        %v1449 = vpop.permute.xlu0 %1448
        %1450 = vrot.lane.b32.xlu0 %v1418, 32
        %v1451 = vpop.permute.xlu0 %1450
        %1452 = vrot.lane.b32.xlu0 %v1421, 32
        %v1453 = vpop.permute.xlu0 %1452
        %vm1470 = vcmask 290048
        %1471 = vst.msk [vmem:[#allocation2] sm:$0xf] %vm1470, %v1423
        %1472 = vst.msk [vmem:[#allocation2 + $0x4] sm:$0xf] %vm1470, %v1425
        %1473 = vst.msk [vmem:[#allocation2 + $0x8] sm:$0xf] %vm1470, %v1427
        %1474 = vst.msk [vmem:[#allocation2 + $0xc] sm:$0xf] %vm1470, %v1429
        %1475 = vst.msk [vmem:[#allocation2 + $0x10] sm:$0xf] %vm1470, %v1431
        %1476 = vst.msk [vmem:[#allocation2 + $0x14] sm:$0xf] %vm1470, %v1433
        %1477 = vst.msk [vmem:[#allocation2 + $0x18] sm:$0xf] %vm1470, %v1435
        %1478 = vst.msk [vmem:[#allocation2 + $0x1c] sm:$0xf] %vm1470, %v1437
        %1479 = vst.msk [vmem:[#allocation2 + $0x20] sm:$0xf] %vm1470, %v1439
        %1480 = vst.msk [vmem:[#allocation2 + $0x24] sm:$0xf] %vm1470, %v1441
        %1481 = vst.msk [vmem:[#allocation2 + $0x28] sm:$0xf] %vm1470, %v1443
        %1482 = vst.msk [vmem:[#allocation2 + $0x2c] sm:$0xf] %vm1470, %v1445
        %1483 = vst.msk [vmem:[#allocation2 + $0x30] sm:$0xf] %vm1470, %v1447
        %1484 = vst.msk [vmem:[#allocation2 + $0x34] sm:$0xf] %vm1470, %v1449
        %1485 = vst.msk [vmem:[#allocation2 + $0x38] sm:$0xf] %vm1470, %v1451
        %1486 = vst.msk [vmem:[#allocation2 + $0x3c] sm:$0xf] %vm1470, %v1453
        %v1487 = vld [vmem:[#allocation2] sm:$0xf]
        %v1488 = vld [vmem:[#allocation2 + $0x4] sm:$0xf]
        %v1489 = vld [vmem:[#allocation2 + $0x8] sm:$0xf]
        %v1490 = vld [vmem:[#allocation2 + $0xc] sm:$0xf]
        %v1491 = vld [vmem:[#allocation2 + $0x10] sm:$0xf]
        %v1492 = vld [vmem:[#allocation2 + $0x14] sm:$0xf]
        %v1493 = vld [vmem:[#allocation2 + $0x18] sm:$0xf]
        %v1494 = vld [vmem:[#allocation2 + $0x1c] sm:$0xf]
        %v1495 = vld [vmem:[#allocation2 + $0x20] sm:$0xf]
        %v1496 = vld [vmem:[#allocation2 + $0x24] sm:$0xf]
        %v1497 = vld [vmem:[#allocation2 + $0x28] sm:$0xf]
        %v1498 = vld [vmem:[#allocation2 + $0x2c] sm:$0xf]
        %v1499 = vld [vmem:[#allocation2 + $0x30] sm:$0xf]
        %v1500 = vld [vmem:[#allocation2 + $0x34] sm:$0xf]
        %v1501 = vld [vmem:[#allocation2 + $0x38] sm:$0xf]
        %v1502 = vld [vmem:[#allocation2 + $0x3c] sm:$0xf]
        %v1503 = vld [vmem:[%s1] sm:$0xf]
        %v1504 = vld [vmem:[%s1 + $0x4] sm:$0xf]
        %v1505 = vld [vmem:[%s1 + $0x8] sm:$0xf]
        %v1506 = vld [vmem:[%s1 + $0xc] sm:$0xf]
        %v1507 = vld [vmem:[%s1 + $0x10] sm:$0x3]
        %v1508 = vld [vmem:[%s2] sm:$0x1]
        %v1510 = vlaneseq
        %v1511 = vshrl.u32 %v1510, 7
        %v1512 = vsub.s32 0, %v1511
        %v1513 = vrot.slane %v1508, %v1512
        %v1531 = vunpack.c.l.b16 %v1487
        %v1532 = vunpack.c.l.b16 %v1488
        %v1533 = vunpack.c.l.b16 %v1489
        %v1534 = vunpack.c.l.b16 %v1490
        %v1535 = vunpack.c.l.b16 %v1491
        %v1536 = vunpack.c.l.b16 %v1492
        %v1537 = vunpack.c.l.b16 %v1493
        %v1538 = vunpack.c.l.b16 %v1494
        %v1539 = vunpack.c.l.b16 %v1495
        %v1540 = vunpack.c.l.b16 %v1496
        %v1541 = vunpack.c.l.b16 %v1497
        %v1542 = vunpack.c.l.b16 %v1498
        %v1543 = vunpack.c.l.b16 %v1499
        %v1544 = vunpack.c.l.b16 %v1500
        %v1545 = vunpack.c.l.b16 %v1501
        %v1546 = vunpack.c.l.b16 %v1502
        %v1547 = vpack.c.b16 %v1532, %v1531
        %v1548 = vpack.c.b16 %v1534, %v1533
        %v1549 = vpack.c.b16 %v1536, %v1535
        %v1550 = vpack.c.b16 %v1538, %v1537
        %v1551 = vpack.c.b16 %v1540, %v1539
        %v1552 = vpack.c.b16 %v1542, %v1541
        %v1553 = vpack.c.b16 %v1544, %v1543
        %v1554 = vpack.c.b16 %v1546, %v1545
        %v1560 = vunpack.c.l.b16 %v1503
        %v1561 = vunpack.c.l.b16 %v1504
        %v1562 = vunpack.c.l.b16 %v1505
        %v1563 = vunpack.c.l.b16 %v1506
        %v1564 = vunpack.c.l.b16 %v1507
        %v1565 = vpack.c.b16 %v1561, %v1560
        %v1566 = vpack.c.b16 %v1563, %v1562
        %v1567 = vpack.c.b16 %v1564, %v1564
        %vm1570 = vcmask 293888
        %v1572 = vsel %vm1570, %v1547, 0
        %v1575 = vsel %vm1570, %v1548, 0
        %v1578 = vsel %vm1570, %v1549, 0
        %v1581 = vsel %vm1570, %v1550, 0
        %v1584 = vsel %vm1570, %v1551, 0
        %v1587 = vsel %vm1570, %v1552, 0
        %v1590 = vsel %vm1570, %v1553, 0
        %v1593 = vsel %vm1570, %v1554, 0
        %vm1595 = vcmask 1041408
        %v1597 = vsel %vm1595, %v1567, 0
        %1599 = vmatprep.subr.bf16.mxu0 0
        %1600 = vmatpush1.bf16.msra.mxu0 0
        %1601 = vmatprep.subr.bf16.mxu0 0
        %1602 = vmatpush1.bf16.msra.mxu0 0
        %1603 = vmatprep.subr.bf16.mxu0 0
        %1604 = vmatpush1.bf16.msra.mxu0 0
        %1605 = vmatprep.subr.bf16.mxu0 0
        %1606 = vmatpush1.bf16.msra.mxu0 0
        %1607 = vmatprep.subr.bf16.mxu0 0
        %1608 = vmatpush1.bf16.msra.mxu0 0
        %1609 = vmatprep.subr.bf16.mxu0 0
        %1610 = vmatpush1.bf16.msra.mxu0 %v1597
        %1611 = vmatprep.subr.bf16.mxu0 0
        %1612 = vmatpush1.bf16.msra.mxu0 %v1566
        %1613 = vmatprep.subr.bf16.mxu0 0
        %1614 = vmatpush1.bf16.msra.mxu0 %v1565
        %1615 = vmatprep.subr.bf16.mxu0 0
        %1616 = vmatpush2.bf16.msra.mxu0 0
        %1617 = vmatprep.subr.bf16.mxu0 0
        %1618 = vmatpush2.bf16.msra.mxu0 0
        %1619 = vmatprep.subr.bf16.mxu0 0
        %1620 = vmatpush2.bf16.msra.mxu0 0
        %1621 = vmatprep.subr.bf16.mxu0 0
        %1622 = vmatpush2.bf16.msra.mxu0 0
        %1623 = vmatprep.subr.bf16.mxu0 0
        %1624 = vmatpush2.bf16.msra.mxu0 0
        %1625 = vmatprep.subr.bf16.mxu0 0
        %1626 = vmatpush2.bf16.msra.mxu0 0
        %1627 = vmatprep.subr.bf16.mxu0 0
        %1628 = vmatpush2.bf16.msra.mxu0 0
        %1629 = vmatprep.subr.bf16.mxu0 0
        %1630 = vmatpush2.bf16.msra.mxu0 0
        %1631 = vmatprep.mubr.bf16.mxu0 0
        %1632 = vmatmul.mubr.bf16.gmra.mxu0 %v1572
        %v1633 = vpop.f32.mrf.mxu0
        %v1634 = vadd.f32 %v1513, %v1633
        %v1635 = vpop.f32.mrf.mxu0
        %v1636 = vpop.f32.mrf.mxu0
        %v1637 = vadd.f32 %v1513, %v1636
        %v1638 = vpop.f32.mrf.mxu0
        %1639 = vmatprep.mubr.bf16.mxu0 0
        %1640 = vmatmul.mubr.bf16.gmra.mxu0 %v1575
        %v1641 = vpop.f32.mrf.mxu0
        %v1642 = vadd.f32 %v1513, %v1641
        %v1643 = vpop.f32.mrf.mxu0
        %v1644 = vpop.f32.mrf.mxu0
        %v1645 = vadd.f32 %v1513, %v1644
        %v1646 = vpop.f32.mrf.mxu0
        %1647 = vmatprep.mubr.bf16.mxu0 0
        %1648 = vmatmul.mubr.bf16.gmra.mxu0 %v1578
        %v1649 = vpop.f32.mrf.mxu0
        %v1650 = vadd.f32 %v1513, %v1649
        %v1651 = vpop.f32.mrf.mxu0
        %v1652 = vpop.f32.mrf.mxu0
        %v1653 = vadd.f32 %v1513, %v1652
        %v1654 = vpop.f32.mrf.mxu0
        %1655 = vmatprep.mubr.bf16.mxu0 0
        %1656 = vmatmul.mubr.bf16.gmra.mxu0 %v1581
        %v1657 = vpop.f32.mrf.mxu0
        %v1658 = vadd.f32 %v1513, %v1657
        %v1659 = vpop.f32.mrf.mxu0
        %v1660 = vpop.f32.mrf.mxu0
        %v1661 = vadd.f32 %v1513, %v1660
        %v1662 = vpop.f32.mrf.mxu0
        %1663 = vmatprep.mubr.bf16.mxu0 0
        %1664 = vmatmul.mubr.bf16.gmra.mxu0 %v1584
        %v1665 = vpop.f32.mrf.mxu0
        %v1666 = vadd.f32 %v1513, %v1665
        %v1667 = vpop.f32.mrf.mxu0
        %v1668 = vpop.f32.mrf.mxu0
        %v1669 = vadd.f32 %v1513, %v1668
        %v1670 = vpop.f32.mrf.mxu0
        %1671 = vmatprep.mubr.bf16.mxu0 0
        %1672 = vmatmul.mubr.bf16.gmra.mxu0 %v1587
        %v1673 = vpop.f32.mrf.mxu0
        %v1674 = vadd.f32 %v1513, %v1673
        %v1675 = vpop.f32.mrf.mxu0
        %v1676 = vpop.f32.mrf.mxu0
        %v1677 = vadd.f32 %v1513, %v1676
        %v1678 = vpop.f32.mrf.mxu0
        %1679 = vmatprep.mubr.bf16.mxu0 0
        %1680 = vmatmul.mubr.bf16.gmra.mxu0 %v1590
        %v1681 = vpop.f32.mrf.mxu0
        %v1682 = vadd.f32 %v1513, %v1681
        %v1683 = vpop.f32.mrf.mxu0
        %v1684 = vpop.f32.mrf.mxu0
        %v1685 = vadd.f32 %v1513, %v1684
        %v1686 = vpop.f32.mrf.mxu0
        %1687 = vmatprep.mubr.bf16.mxu0 0
        %1688 = vmatmul.mubr.bf16.gmra.mxu0 %v1593
        %v1689 = vpop.f32.mrf.mxu0
        %v1690 = vadd.f32 %v1513, %v1689
        %v1691 = vpop.f32.mrf.mxu0
        %v1692 = vpop.f32.mrf.mxu0
        %v1693 = vadd.f32 %v1513, %v1692
        %v1694 = vpop.f32.mrf.mxu0
        %1695 = vdwg.mxu0
        %1696 = vst [vmem:[%s177] sm:$0xff] %v1634
        %1697 = vst [vmem:[%s177 + $0x8] sm:$0xff] %v1637
        %1698 = vst [vmem:[%s177 + $0x10] sm:$0xff] %v1642
        %1699 = vst [vmem:[%s177 + $0x18] sm:$0xff] %v1645
        %1700 = vst [vmem:[%s177 + $0x20] sm:$0xff] %v1650
        %1701 = vst [vmem:[%s177 + $0x28] sm:$0xff] %v1653
        %1702 = vst [vmem:[%s177 + $0x30] sm:$0xff] %v1658
        %1703 = vst [vmem:[%s177 + $0x38] sm:$0xff] %v1661
        %1704 = vst [vmem:[%s177 + $0x40] sm:$0xff] %v1666
        %1705 = vst [vmem:[%s177 + $0x48] sm:$0xff] %v1669
        %1706 = vst [vmem:[%s177 + $0x50] sm:$0xff] %v1674
        %1707 = vst [vmem:[%s177 + $0x58] sm:$0xff] %v1677
        %1708 = vst [vmem:[%s177 + $0x60] sm:$0xff] %v1682
        %1709 = vst [vmem:[%s177 + $0x68] sm:$0xff] %v1685
        %1710 = vst [vmem:[%s177 + $0x70] sm:$0xff] %v1690
        %1711 = vst [vmem:[%s177 + $0x78] sm:$0xff] %v1693
        %s1712 = sand.u32 %s107, 1
        %s1713 = scalar_lea.sflag [#allocation4], %s1712
        %s1714 = sand.u32 %s107, 1
        %s1715 = smul.addr %s1714, 128
        %s1716 = scalar_lea.vmem [#allocation3], %s1715
        // Predicated region
        $region33: #{tpu_custom_call.1} parent=31 // pred_check
          %p1717 = pneg %p117
        $region34: #{tpu_custom_call.1} parent=31 // pred_check_branch
          %1719 = sbr.rel (%p1717) target = $region36
        $region35: #{tpu_custom_call.1} parent=31 // pred_region
          %s1720 = smul.u32 16, %s22
          %s1722 = ssub.s32 2048, 2048
          %1723 = vsyncadd %s1713, %s1722
          %s1724 = smul.addr %s21, 32
          %s1725 = sadd.s32 %s1720, %s1724
          %s1726 = smul.addr %s1725, 128
          %s1727 = scalar_lea.hbm %s3, %s1726
          %s1728 = sshll.u32 %s1716, 4
          %s1729 = int_to_ptr.vmem [resolvable:$true] %s1728
          %1734 = dma.vmem_to_hbm [thread:$0]  %s1729, 2048, %s1727, %s1713, 128, 128, 8
        $region36: #{tpu_custom_call.1} parent=31 // pred_fallthru
          _
      $region32: #{tpu_custom_call.1} parent=5 // pred_fallthru
        _
      %p1735 = scmp.le.s32.totalorder 2, %s12
      // Predicated region
      $region37: #{tpu_custom_call.1} parent=5 // pred_check
        %p1736 = pneg %p1735
      $region38: #{tpu_custom_call.1} parent=5 // pred_check_branch
        %1738 = sbr.rel (%p1736) target = $region40
      $region39: #{tpu_custom_call.1} parent=5 // pred_region
        %s1739 = ssub.s32 %s12, 2
        // Predicated region
        $region41: #{tpu_custom_call.1} parent=39 // pred_check
          %p1740 = pneg %p123
        $region42: #{tpu_custom_call.1} parent=39 // pred_check_branch
          %1742 = sbr.rel (%p1740) target = $region44
        $region43: #{tpu_custom_call.1} parent=39 // pred_region
          %s1743 = sand.u32 %s108, 1
          %s1744 = scalar_lea.sflag [#allocation4], %s1743
          %s1745 = sand.u32 %s108, 1
          %s1746 = smul.addr %s1745, 128
          %s1747 = scalar_lea.vmem [#allocation3], %s1746
          %1748 = dma.done %s1744, 2048
        $region44: #{tpu_custom_call.1} parent=39 // pred_fallthru
          _
      $region40: #{tpu_custom_call.1} parent=5 // pred_fallthru
        _
    $region6: #{tpu_custom_call.1} parent=1 // loop_footer
      %s16 = sadd.s32 1, %s12
    $region7: #{tpu_custom_call.1} parent=1 // loop_footer_branch
      %11 = sbr.rel target = $region3
    $region8: #{tpu_custom_call.1} parent=1 // loop_exit
      _
    %1749 = vsyncpa [#allocation4], 1
    %s1750 = scalar_lea.sflag [#allocation4], 1
    %1751 = vsyncpa %s1750, 1

// kernel: tpu_custom_call.1
$region0: #{tpu_custom_call.1}
  #allocation0 [shape = 'u32[]', space=smem, size = 0x4, offset = 0x4, fixed_abs, tag = 'smem constant byte address 0x4 - core index']
  #allocation1 [shape = 'u32[144,128]{1,0:T(1,128)}', space=vmem, size = 0x12000, scoped, tag = 'internal scratch']
  #allocation2 [shape = 'bf16[128,36]{1,0:T(8,128)(2,1)}', space=vmem, size = 0x8000, scoped, tag = 'scratch operand']
  %s0 = inlined_call_operand.vmem [shape: f32[2,304,4], index: 0, kind: input, shape index: {}]
  %s1 = inlined_call_operand.vmem [shape: bf16[36,128], index: 1, kind: input, shape index: {}]
  %s2 = inlined_call_operand.vmem [shape: f32[1,128], index: 2, kind: input, shape index: {}]
  %s3 = inlined_call_operand.hbm [shape: f32[2,256,128], index: 3, kind: output, shape index: {}]
  %s4 = sld [smem:[#allocation0]]
  $region45: #{tpu_custom_call.1} parent=0
    _
  %s6 = ssub.s32 1, %s4
  %s7 = scalar_select 0, %s6, %s4
  $region1: #{tpu_custom_call.1} parent=0
    #allocation3 [shape = 'u8[131072]{0}', space=vmem, size = 0x20000, scoped, tag = 'output window, operand 0']
    #allocation4 [shape = 's32[2]{0}', space=sflag, size = 0x8, scoped, tag = 'scoped memory for tpu_custom_call.1']
    %8 = vsyncpa [#allocation4], 0
    %s9 = scalar_lea.sflag [#allocation4], 1
    %10 = vsyncpa %s9, 0
    loop: start=0, step=1, limit=6
    $region2: #{tpu_custom_call.1} parent=1 // loop_pre_header
      _
    $region3: #{tpu_custom_call.1} parent=1 // loop_header
      %s12 = sphi 0, %s16
      %p13 = scmp.ge.s32.totalorder %s12, 6
      %s19 = sphi 0, %s31
      %s20 = sphi 0, %s27
      %s21 = sphi 0, %s19
      %s22 = sphi 0, %s20
      %s23 = sphi 0, %s21
      %s24 = sphi 0, %s22
      %s34 = sphi 0, %s36
      %s37 = sphi 0, %s34
      %s38 = sphi 0, %s37
      %s54 = sphi 0, %s38
      %s58 = sphi 0, %s58
      %s60 = sphi 0, %s58
      %s61 = sphi 0, %s60
      %s75 = sphi 0, %s61
      %s79 = sphi 0, %s79
      %s81 = sphi 0, %s79
      %s82 = sphi 0, %s81
      %s96 = sphi 0, %s82
      %s104 = sphi 0, %s106
      %s107 = sphi 0, %s104
      %s108 = sphi 0, %s107
      %s124 = sphi 0, %s108
    $region4: #{tpu_custom_call.1} parent=1 // loop_header_branch
      %15 = sbr.rel (%p13) target = $region8
    $region5: #{tpu_custom_call.1} parent=1 // loop_body
      %s17 = ssub.s32 %s12, 1
      %s18 = ssub.s32 %s12, 2
      %s25 = sadd.s32 1, %s20
      %p26 = scmp.ge.s32.totalorder %s25, 2
      %s27 = scalar_select %p26, 0, %s25
      %s28 = sadd.s32 1, %s19
      %s29 = scalar_select %p26, %s28, %s19
      %p30 = scmp.ge.s32.totalorder %s29, 2
      %s31 = scalar_select %p30, 0, %s29
      %s32 = ssub.s32 %s19, %s31
      %p33 = scmp.eq.s32.totalorder %s32, 0
      %s35 = sadd.s32 %s34, 1
      %s36 = scalar_select %p33, %s34, %s35
      %p39 = pneg %p33
      %p40 = scmp.eq.s32.totalorder %s12, 3
      %p41 = por %p39, %p40
      %p42 = scmp.ne.s32.totalorder %s34, %s37
      %p43 = scmp.eq.s32.totalorder %s12, 0
      %p44 = por %p42, %p43
      %p45 = scmp.ne.s32.totalorder %s34, %s37
      %p46 = scmp.eq.s32.totalorder %s17, 3
      %p47 = por %p45, %p46
      %p48 = scmp.ne.s32.totalorder %s37, %s38
      %p49 = scmp.eq.s32.totalorder %s17, 0
      %p50 = por %p48, %p49
      %p51 = scmp.ne.s32.totalorder %s37, %s38
      %p52 = scmp.eq.s32.totalorder %s18, 3
      %p53 = por %p51, %p52
      %p55 = scmp.ne.s32.totalorder %s38, %s54
      %p56 = scmp.eq.s32.totalorder %s18, 0
      %p57 = por %p55, %p56
      %s59 = sadd.s32 %s58, 1
      %p62 = scmp.eq.s32.totalorder %s12, 3
      %p63 = scmp.ne.s32.totalorder %s58, %s60
      %p64 = scmp.eq.s32.totalorder %s12, 0
      %p65 = por %p63, %p64
      %p66 = scmp.ne.s32.totalorder %s58, %s60
      %p67 = scmp.eq.s32.totalorder %s17, 3
      %p68 = por %p66, %p67
      %p69 = scmp.ne.s32.totalorder %s60, %s61
      %p70 = scmp.eq.s32.totalorder %s17, 0
      %p71 = por %p69, %p70
      %p72 = scmp.ne.s32.totalorder %s60, %s61
      %p73 = scmp.eq.s32.totalorder %s18, 3
      %p74 = por %p72, %p73
      %p76 = scmp.ne.s32.totalorder %s61, %s75
      %p77 = scmp.eq.s32.totalorder %s18, 0
      %p78 = por %p76, %p77
      %s80 = sadd.s32 %s79, 1
      %p83 = scmp.eq.s32.totalorder %s12, 3
      %p84 = scmp.ne.s32.totalorder %s79, %s81
      %p85 = scmp.eq.s32.totalorder %s12, 0
      %p86 = por %p84, %p85
      %p87 = scmp.ne.s32.totalorder %s79, %s81
      %p88 = scmp.eq.s32.totalorder %s17, 3
      %p89 = por %p87, %p88
      %p90 = scmp.ne.s32.totalorder %s81, %s82
      %p91 = scmp.eq.s32.totalorder %s17, 0
      %p92 = por %p90, %p91
      %p93 = scmp.ne.s32.totalorder %s81, %s82
      %p94 = scmp.eq.s32.totalorder %s18, 3
      %p95 = por %p93, %p94
      %p97 = scmp.ne.s32.totalorder %s82, %s96
      %p98 = scmp.eq.s32.totalorder %s18, 0
      %p99 = por %p97, %p98
      %s100 = ssub.s32 %s19, %s31
      %s101 = ssub.s32 %s20, %s27
      %s102 = sor.u32 %s100, %s101
      %p103 = scmp.eq.s32.totalorder %s102, 0
      %s105 = sadd.s32 %s104, 1
      %s106 = scalar_select %p103, %s104, %s105
      %p109 = pneg %p103
      %p110 = scmp.eq.s32.totalorder %s12, 3
      %p111 = por %p109, %p110
      %p112 = scmp.ne.s32.totalorder %s104, %s107
      %p113 = scmp.eq.s32.totalorder %s12, 0
      %p114 = por %p112, %p113
      %p115 = scmp.ne.s32.totalorder %s104, %s107
      %p116 = scmp.eq.s32.totalorder %s17, 3
      %p117 = por %p115, %p116
      %p118 = scmp.ne.s32.totalorder %s107, %s108
      %p119 = scmp.eq.s32.totalorder %s17, 0
      %p120 = por %p118, %p119
      %p121 = scmp.ne.s32.totalorder %s107, %s108
      %p122 = scmp.eq.s32.totalorder %s18, 3
      %p123 = por %p121, %p122
      %p125 = scmp.ne.s32.totalorder %s108, %s124
      %p126 = scmp.eq.s32.totalorder %s18, 0
      %p127 = por %p125, %p126
      %p128 = scmp.le.s32.totalorder 1, %s12
      %p129 = scmp.lt.s32.totalorder %s12, 5
      %p130 = pnand %p128, %p129
      %p131 = pneg %p130
      // Predicated region
      $region9: #{tpu_custom_call.1} parent=5 // pred_check
        _
      $region10: #{tpu_custom_call.1} parent=5 // pred_check_branch
        %133 = sbr.rel (%p130) target = $region12
      $region11: #{tpu_custom_call.1} parent=5 // pred_region
        %s134 = ssub.s32 %s12, 1
        // Predicated region
        $region13: #{tpu_custom_call.1} parent=11 // pred_check
          %p135 = pneg %p71
        $region14: #{tpu_custom_call.1} parent=11 // pred_check_branch
          %137 = sbr.rel (%p135) target = $region16
        $region15: #{tpu_custom_call.1} parent=11 // pred_region
          _
        $region16: #{tpu_custom_call.1} parent=11 // pred_fallthru
          _
        // Predicated region
        $region17: #{tpu_custom_call.1} parent=11 // pred_check
          %p138 = pneg %p92
        $region18: #{tpu_custom_call.1} parent=11 // pred_check_branch
          %140 = sbr.rel (%p138) target = $region20
        $region19: #{tpu_custom_call.1} parent=11 // pred_region
          _
        $region20: #{tpu_custom_call.1} parent=11 // pred_fallthru
          _
      $region12: #{tpu_custom_call.1} parent=5 // pred_fallthru
        _
      %p141 = scmp.lt.s32.totalorder %s12, 4
      // Predicated region
      $region21: #{tpu_custom_call.1} parent=5 // pred_check
        %p142 = pneg %p141
      $region22: #{tpu_custom_call.1} parent=5 // pred_check_branch
        %144 = sbr.rel (%p142) target = $region24
      $region23: #{tpu_custom_call.1} parent=5 // pred_region
        // Predicated region
        $region25: #{tpu_custom_call.1} parent=23 // pred_check
          %p145 = pneg %p44
        $region26: #{tpu_custom_call.1} parent=23 // pred_check_branch
          %147 = sbr.rel (%p145) target = $region28
        $region27: #{tpu_custom_call.1} parent=23 // pred_region
          %p148 = scmp.lt.s32.totalorder %s19, 1
          %s149 = scalar_select %p148, %s19, 1
          %s150 = smul.addr %s149, 38
          %s151 = smul.addr %s150, 8
          %s152 = scalar_lea.vmem %s0, %s151
        $region28: #{tpu_custom_call.1} parent=23 // pred_fallthru
          _
      $region24: #{tpu_custom_call.1} parent=5 // pred_fallthru
        _
      %p153 = scmp.le.s32.totalorder 1, %s12
      %p154 = scmp.lt.s32.totalorder %s12, 5
      %p155 = pnand %p153, %p154
      %p156 = pneg %p155
      // Predicated region
      $region29: #{tpu_custom_call.1} parent=5 // pred_check
        _
      $region30: #{tpu_custom_call.1} parent=5 // pred_check_branch
        %158 = sbr.rel (%p155) target = $region32
      $region31: #{tpu_custom_call.1} parent=5 // pred_region
        %s159 = ssub.s32 %s12, 1
        %p160 = scmp.lt.s32.totalorder %s21, 1
        %s161 = scalar_select %p160, %s21, 1
        %s162 = smul.addr %s161, 38
        %s163 = smul.addr %s162, 8
        %s164 = scalar_lea.vmem %s0, %s163
        %p165 = pneg %p50
        %p166 = pneg %p47
        %p167 = pneg %p71
        %p168 = pneg %p68
        %p169 = pneg %p92
        %p170 = pneg %p89
        %p171 = pneg %p120
        %p172 = pneg %p117
        %s173 = sand.u32 %s107, 1
        %s174 = scalar_lea.sflag [#allocation4], %s173
        %s175 = sand.u32 %s107, 1
        %s176 = smul.addr %s175, 128
        %s177 = scalar_lea.vmem [#allocation3], %s176
        %p178 = scmp.lt.s32.totalorder %s21, 1
        %s179 = scalar_select %p178, %s21, 1
        %s180 = smul.addr %s179, 38
        %s181 = smul.addr %s180, 8
        %s182 = scalar_lea.vmem %s0, %s181
        %s183 = smul.u32 16, %s22
        %s185 = smul.u32 %s22, 8
        %s186 = smul.u32 %s22, 128
        %s187 = scalar_lea.vmem %s182, %s186
        %v188 = vld [vmem:[%s187] sm:$0xff]
        %v189 = vld [vmem:[%s187 + $0x8] sm:$0xff]
        %v190 = vld [vmem:[%s187 + $0x10] sm:$0xff]
        %v191 = vld [vmem:[%s187 + $0x18] sm:$0xff]
        %v192 = vld [vmem:[%s187 + $0x20] sm:$0xff]
        %v193 = vld [vmem:[%s187 + $0x28] sm:$0xff]
        %v194 = vld [vmem:[%s187 + $0x30] sm:$0xff]
        %v195 = vld [vmem:[%s187 + $0x38] sm:$0xff]
        %v196 = vld [vmem:[%s187 + $0x40] sm:$0xff]
        %v197 = vld [vmem:[%s187 + $0x48] sm:$0xff]
        %v198 = vld [vmem:[%s187 + $0x50] sm:$0xff]
        %v199 = vld [vmem:[%s187 + $0x58] sm:$0xff]
        %v200 = vld [vmem:[%s187 + $0x60] sm:$0xff]
        %v201 = vld [vmem:[%s187 + $0x68] sm:$0xff]
        %v202 = vld [vmem:[%s187 + $0x70] sm:$0xff]
        %v203 = vld [vmem:[%s187 + $0x78] sm:$0xff]
        %v204 = vpack.c.bf16 %v189, %v188
        %v205 = vpack.c.bf16 %v191, %v190
        %v206 = vpack.c.bf16 %v193, %v192
        %v207 = vpack.c.bf16 %v195, %v194
        %v208 = vpack.c.bf16 %v197, %v196
        %v209 = vpack.c.bf16 %v199, %v198
        %v210 = vpack.c.bf16 %v201, %v200
        %v211 = vpack.c.bf16 %v203, %v202
        %v220 = vunpack.c.l.b16 %v204
        %v221 = vunpack.c.h.b16 %v204
        %v222 = vunpack.c.l.b16 %v205
        %v223 = vunpack.c.h.b16 %v205
        %v224 = vunpack.c.l.b16 %v206
        %v225 = vunpack.c.h.b16 %v206
        %v226 = vunpack.c.l.b16 %v207
        %v227 = vunpack.c.h.b16 %v207
        %v228 = vunpack.c.l.b16 %v208
        %v229 = vunpack.c.h.b16 %v208
        %v230 = vunpack.c.l.b16 %v209
        %v231 = vunpack.c.h.b16 %v209
        %v232 = vunpack.c.l.b16 %v210
        %v233 = vunpack.c.h.b16 %v210
        %v234 = vunpack.c.l.b16 %v211
        %v235 = vunpack.c.h.b16 %v211
        %v236 = vpack.c.b16 %v220, %v220
        %v237 = vpack.c.b16 %v221, %v221
        %v238 = vpack.c.b16 %v222, %v222
        %v239 = vpack.c.b16 %v223, %v223
        %v240 = vpack.c.b16 %v224, %v224
        %v241 = vpack.c.b16 %v225, %v225
        %v242 = vpack.c.b16 %v226, %v226
        %v243 = vpack.c.b16 %v227, %v227
        %v244 = vpack.c.b16 %v228, %v228
        %v245 = vpack.c.b16 %v229, %v229
        %v246 = vpack.c.b16 %v230, %v230
        %v247 = vpack.c.b16 %v231, %v231
        %v248 = vpack.c.b16 %v232, %v232
        %v249 = vpack.c.b16 %v233, %v233
        %v250 = vpack.c.b16 %v234, %v234
        %v251 = vpack.c.b16 %v235, %v235
        %vm268 = vcmask 27648
        %269 = vst.msk [vmem:[#allocation2] sm:$0xf] %vm268, %v236
        %270 = vst.msk [vmem:[#allocation2 + $0x4] sm:$0xf] %vm268, %v237
        %271 = vst.msk [vmem:[#allocation2 + $0x8] sm:$0xf] %vm268, %v238
        %272 = vst.msk [vmem:[#allocation2 + $0xc] sm:$0xf] %vm268, %v239
        %273 = vst.msk [vmem:[#allocation2 + $0x10] sm:$0xf] %vm268, %v240
        %274 = vst.msk [vmem:[#allocation2 + $0x14] sm:$0xf] %vm268, %v241
        %275 = vst.msk [vmem:[#allocation2 + $0x18] sm:$0xf] %vm268, %v242
        %276 = vst.msk [vmem:[#allocation2 + $0x1c] sm:$0xf] %vm268, %v243
        %277 = vst.msk [vmem:[#allocation2 + $0x20] sm:$0xf] %vm268, %v244
        %278 = vst.msk [vmem:[#allocation2 + $0x24] sm:$0xf] %vm268, %v245
        %279 = vst.msk [vmem:[#allocation2 + $0x28] sm:$0xf] %vm268, %v246
        %280 = vst.msk [vmem:[#allocation2 + $0x2c] sm:$0xf] %vm268, %v247
        %281 = vst.msk [vmem:[#allocation2 + $0x30] sm:$0xf] %vm268, %v248
        %282 = vst.msk [vmem:[#allocation2 + $0x34] sm:$0xf] %vm268, %v249
        %283 = vst.msk [vmem:[#allocation2 + $0x38] sm:$0xf] %vm268, %v250
        %284 = vst.msk [vmem:[#allocation2 + $0x3c] sm:$0xf] %vm268, %v251
        %s285 = sadd.s32 %s186, 1
        %s286 = scalar_lea.vmem %s182, %s285
        %v287 = vld [vmem:[%s286] sm:$0xff]
        %v288 = vld [vmem:[%s286 + $0x8] sm:$0xff]
        %v289 = vld [vmem:[%s286 + $0x10] sm:$0xff]
        %v290 = vld [vmem:[%s286 + $0x18] sm:$0xff]
        %v291 = vld [vmem:[%s286 + $0x20] sm:$0xff]
        %v292 = vld [vmem:[%s286 + $0x28] sm:$0xff]
        %v293 = vld [vmem:[%s286 + $0x30] sm:$0xff]
        %v294 = vld [vmem:[%s286 + $0x38] sm:$0xff]
        %v295 = vld [vmem:[%s286 + $0x40] sm:$0xff]
        %v296 = vld [vmem:[%s286 + $0x48] sm:$0xff]
        %v297 = vld [vmem:[%s286 + $0x50] sm:$0xff]
        %v298 = vld [vmem:[%s286 + $0x58] sm:$0xff]
        %v299 = vld [vmem:[%s286 + $0x60] sm:$0xff]
        %v300 = vld [vmem:[%s286 + $0x68] sm:$0xff]
        %v301 = vld [vmem:[%s286 + $0x70] sm:$0xff]
        %v302 = vld [vmem:[%s286 + $0x78] sm:$0xff]
        %v303 = vpack.c.bf16 %v288, %v287
        %v304 = vpack.c.bf16 %v290, %v289
        %v305 = vpack.c.bf16 %v292, %v291
        %v306 = vpack.c.bf16 %v294, %v293
        %v307 = vpack.c.bf16 %v296, %v295
        %v308 = vpack.c.bf16 %v298, %v297
        %v309 = vpack.c.bf16 %v300, %v299
        %v310 = vpack.c.bf16 %v302, %v301
        %v319 = vunpack.c.l.b16 %v303
        %v320 = vunpack.c.h.b16 %v303
        %v321 = vunpack.c.l.b16 %v304
        %v322 = vunpack.c.h.b16 %v304
        %v323 = vunpack.c.l.b16 %v305
        %v324 = vunpack.c.h.b16 %v305
        %v325 = vunpack.c.l.b16 %v306
        %v326 = vunpack.c.h.b16 %v306
        %v327 = vunpack.c.l.b16 %v307
        %v328 = vunpack.c.h.b16 %v307
        %v329 = vunpack.c.l.b16 %v308
        %v330 = vunpack.c.h.b16 %v308
        %v331 = vunpack.c.l.b16 %v309
        %v332 = vunpack.c.h.b16 %v309
        %v333 = vunpack.c.l.b16 %v310
        %v334 = vunpack.c.h.b16 %v310
        %v335 = vpack.c.b16 %v319, %v319
        %v336 = vpack.c.b16 %v320, %v320
        %v337 = vpack.c.b16 %v321, %v321
        %v338 = vpack.c.b16 %v322, %v322
        %v339 = vpack.c.b16 %v323, %v323
        %v340 = vpack.c.b16 %v324, %v324
        %v341 = vpack.c.b16 %v325, %v325
        %v342 = vpack.c.b16 %v326, %v326
        %v343 = vpack.c.b16 %v327, %v327
        %v344 = vpack.c.b16 %v328, %v328
        %v345 = vpack.c.b16 %v329, %v329
        %v346 = vpack.c.b16 %v330, %v330
        %v347 = vpack.c.b16 %v331, %v331
        %v348 = vpack.c.b16 %v332, %v332
        %v349 = vpack.c.b16 %v333, %v333
        %v350 = vpack.c.b16 %v334, %v334
        %351 = vrot.lane.b32.xlu0 %v335, 4
        %v352 = vpop.permute.xlu0 %351
        %353 = vrot.lane.b32.xlu0 %v336, 4
        %v354 = vpop.permute.xlu0 %353
        %355 = vrot.lane.b32.xlu0 %v337, 4
        %v356 = vpop.permute.xlu0 %355
        %357 = vrot.lane.b32.xlu0 %v338, 4
        %v358 = vpop.permute.xlu0 %357
        %359 = vrot.lane.b32.xlu0 %v339, 4
        %v360 = vpop.permute.xlu0 %359
        %361 = vrot.lane.b32.xlu0 %v340, 4
        %v362 = vpop.permute.xlu0 %361
        %363 = vrot.lane.b32.xlu0 %v341, 4
        %v364 = vpop.permute.xlu0 %363
        %365 = vrot.lane.b32.xlu0 %v342, 4
        %v366 = vpop.permute.xlu0 %365
        %367 = vrot.lane.b32.xlu0 %v343, 4
        %v368 = vpop.permute.xlu0 %367
        %369 = vrot.lane.b32.xlu0 %v344, 4
        %v370 = vpop.permute.xlu0 %369
        %371 = vrot.lane.b32.xlu0 %v345, 4
        %v372 = vpop.permute.xlu0 %371
        %373 = vrot.lane.b32.xlu0 %v346, 4
        %v374 = vpop.permute.xlu0 %373
        %375 = vrot.lane.b32.xlu0 %v347, 4
        %v376 = vpop.permute.xlu0 %375
        %377 = vrot.lane.b32.xlu0 %v348, 4
        %v378 = vpop.permute.xlu0 %377
        %379 = vrot.lane.b32.xlu0 %v349, 4
        %v380 = vpop.permute.xlu0 %379
        %381 = vrot.lane.b32.xlu0 %v350, 4
        %v382 = vpop.permute.xlu0 %381
        %vm399 = vcmask 60448
        %400 = vst.msk [vmem:[#allocation2] sm:$0xf] %vm399, %v352
        %401 = vst.msk [vmem:[#allocation2 + $0x4] sm:$0xf] %vm399, %v354
        %402 = vst.msk [vmem:[#allocation2 + $0x8] sm:$0xf] %vm399, %v356
        %403 = vst.msk [vmem:[#allocation2 + $0xc] sm:$0xf] %vm399, %v358
        %404 = vst.msk [vmem:[#allocation2 + $0x10] sm:$0xf] %vm399, %v360
        %405 = vst.msk [vmem:[#allocation2 + $0x14] sm:$0xf] %vm399, %v362
        %406 = vst.msk [vmem:[#allocation2 + $0x18] sm:$0xf] %vm399, %v364
        %407 = vst.msk [vmem:[#allocation2 + $0x1c] sm:$0xf] %vm399, %v366
        %408 = vst.msk [vmem:[#allocation2 + $0x20] sm:$0xf] %vm399, %v368
        %409 = vst.msk [vmem:[#allocation2 + $0x24] sm:$0xf] %vm399, %v370
        %410 = vst.msk [vmem:[#allocation2 + $0x28] sm:$0xf] %vm399, %v372
        %411 = vst.msk [vmem:[#allocation2 + $0x2c] sm:$0xf] %vm399, %v374
        %412 = vst.msk [vmem:[#allocation2 + $0x30] sm:$0xf] %vm399, %v376
        %413 = vst.msk [vmem:[#allocation2 + $0x34] sm:$0xf] %vm399, %v378
        %414 = vst.msk [vmem:[#allocation2 + $0x38] sm:$0xf] %vm399, %v380
        %415 = vst.msk [vmem:[#allocation2 + $0x3c] sm:$0xf] %vm399, %v382
        %s416 = sadd.s32 %s186, 2
        %s417 = scalar_lea.vmem %s182, %s416
        %v418 = vld [vmem:[%s417] sm:$0xff]
        %v419 = vld [vmem:[%s417 + $0x8] sm:$0xff]
        %v420 = vld [vmem:[%s417 + $0x10] sm:$0xff]
        %v421 = vld [vmem:[%s417 + $0x18] sm:$0xff]
        %v422 = vld [vmem:[%s417 + $0x20] sm:$0xff]
        %v423 = vld [vmem:[%s417 + $0x28] sm:$0xff]
        %v424 = vld [vmem:[%s417 + $0x30] sm:$0xff]
        %v425 = vld [vmem:[%s417 + $0x38] sm:$0xff]
        %v426 = vld [vmem:[%s417 + $0x40] sm:$0xff]
        %v427 = vld [vmem:[%s417 + $0x48] sm:$0xff]
        %v428 = vld [vmem:[%s417 + $0x50] sm:$0xff]
        %v429 = vld [vmem:[%s417 + $0x58] sm:$0xff]
        %v430 = vld [vmem:[%s417 + $0x60] sm:$0xff]
        %v431 = vld [vmem:[%s417 + $0x68] sm:$0xff]
        %v432 = vld [vmem:[%s417 + $0x70] sm:$0xff]
        %v433 = vld [vmem:[%s417 + $0x78] sm:$0xff]
        %v434 = vpack.c.bf16 %v419, %v418
        %v435 = vpack.c.bf16 %v421, %v420
        %v436 = vpack.c.bf16 %v423, %v422
        %v437 = vpack.c.bf16 %v425, %v424
        %v438 = vpack.c.bf16 %v427, %v426
        %v439 = vpack.c.bf16 %v429, %v428
        %v440 = vpack.c.bf16 %v431, %v430
        %v441 = vpack.c.bf16 %v433, %v432
        %v450 = vunpack.c.l.b16 %v434
        %v451 = vunpack.c.h.b16 %v434
        %v452 = vunpack.c.l.b16 %v435
        %v453 = vunpack.c.h.b16 %v435
        %v454 = vunpack.c.l.b16 %v436
        %v455 = vunpack.c.h.b16 %v436
        %v456 = vunpack.c.l.b16 %v437
        %v457 = vunpack.c.h.b16 %v437
        %v458 = vunpack.c.l.b16 %v438
        %v459 = vunpack.c.h.b16 %v438
        %v460 = vunpack.c.l.b16 %v439
        %v461 = vunpack.c.h.b16 %v439
        %v462 = vunpack.c.l.b16 %v440
        %v463 = vunpack.c.h.b16 %v440
        %v464 = vunpack.c.l.b16 %v441
        %v465 = vunpack.c.h.b16 %v441
        %v466 = vpack.c.b16 %v450, %v450
        %v467 = vpack.c.b16 %v451, %v451
        %v468 = vpack.c.b16 %v452, %v452
        %v469 = vpack.c.b16 %v453, %v453
        %v470 = vpack.c.b16 %v454, %v454
        %v471 = vpack.c.b16 %v455, %v455
        %v472 = vpack.c.b16 %v456, %v456
        %v473 = vpack.c.b16 %v457, %v457
        %v474 = vpack.c.b16 %v458, %v458
        %v475 = vpack.c.b16 %v459, %v459
        %v476 = vpack.c.b16 %v460, %v460
        %v477 = vpack.c.b16 %v461, %v461
        %v478 = vpack.c.b16 %v462, %v462
        %v479 = vpack.c.b16 %v463, %v463
        %v480 = vpack.c.b16 %v464, %v464
        %v481 = vpack.c.b16 %v465, %v465
        %482 = vrot.lane.b32.xlu0 %v466, 8
        %v483 = vpop.permute.xlu0 %482
        %484 = vrot.lane.b32.xlu0 %v467, 8
        %v485 = vpop.permute.xlu0 %484
        %486 = vrot.lane.b32.xlu0 %v468, 8
        %v487 = vpop.permute.xlu0 %486
        %488 = vrot.lane.b32.xlu0 %v469, 8
        %v489 = vpop.permute.xlu0 %488
        %490 = vrot.lane.b32.xlu0 %v470, 8
        %v491 = vpop.permute.xlu0 %490
        %492 = vrot.lane.b32.xlu0 %v471, 8
        %v493 = vpop.permute.xlu0 %492
        %494 = vrot.lane.b32.xlu0 %v472, 8
        %v495 = vpop.permute.xlu0 %494
        %496 = vrot.lane.b32.xlu0 %v473, 8
        %v497 = vpop.permute.xlu0 %496
        %498 = vrot.lane.b32.xlu0 %v474, 8
        %v499 = vpop.permute.xlu0 %498
        %500 = vrot.lane.b32.xlu0 %v475, 8
        %v501 = vpop.permute.xlu0 %500
        %502 = vrot.lane.b32.xlu0 %v476, 8
        %v503 = vpop.permute.xlu0 %502
        %504 = vrot.lane.b32.xlu0 %v477, 8
        %v505 = vpop.permute.xlu0 %504
        %506 = vrot.lane.b32.xlu0 %v478, 8
        %v507 = vpop.permute.xlu0 %506
        %508 = vrot.lane.b32.xlu0 %v479, 8
        %v509 = vpop.permute.xlu0 %508
        %510 = vrot.lane.b32.xlu0 %v480, 8
        %v511 = vpop.permute.xlu0 %510
        %512 = vrot.lane.b32.xlu0 %v481, 8
        %v513 = vpop.permute.xlu0 %512
        %vm530 = vcmask 93248
        %531 = vst.msk [vmem:[#allocation2] sm:$0xf] %vm530, %v483
        %532 = vst.msk [vmem:[#allocation2 + $0x4] sm:$0xf] %vm530, %v485
        %533 = vst.msk [vmem:[#allocation2 + $0x8] sm:$0xf] %vm530, %v487
        %534 = vst.msk [vmem:[#allocation2 + $0xc] sm:$0xf] %vm530, %v489
        %535 = vst.msk [vmem:[#allocation2 + $0x10] sm:$0xf] %vm530, %v491
        %536 = vst.msk [vmem:[#allocation2 + $0x14] sm:$0xf] %vm530, %v493
        %537 = vst.msk [vmem:[#allocation2 + $0x18] sm:$0xf] %vm530, %v495
        %538 = vst.msk [vmem:[#allocation2 + $0x1c] sm:$0xf] %vm530, %v497
        %539 = vst.msk [vmem:[#allocation2 + $0x20] sm:$0xf] %vm530, %v499
        %540 = vst.msk [vmem:[#allocation2 + $0x24] sm:$0xf] %vm530, %v501
        %541 = vst.msk [vmem:[#allocation2 + $0x28] sm:$0xf] %vm530, %v503
        %542 = vst.msk [vmem:[#allocation2 + $0x2c] sm:$0xf] %vm530, %v505
        %543 = vst.msk [vmem:[#allocation2 + $0x30] sm:$0xf] %vm530, %v507
        %544 = vst.msk [vmem:[#allocation2 + $0x34] sm:$0xf] %vm530, %v509
        %545 = vst.msk [vmem:[#allocation2 + $0x38] sm:$0xf] %vm530, %v511
        %546 = vst.msk [vmem:[#allocation2 + $0x3c] sm:$0xf] %vm530, %v513
        %s547 = sadd.s32 %s185, 1
        %s548 = smul.u32 %s547, 16
        %s549 = scalar_lea.vmem %s182, %s548
        %v550 = vld [vmem:[%s549] sm:$0xff]
        %v551 = vld [vmem:[%s549 + $0x8] sm:$0xff]
        %v552 = vld [vmem:[%s549 + $0x10] sm:$0xff]
        %v553 = vld [vmem:[%s549 + $0x18] sm:$0xff]
        %v554 = vld [vmem:[%s549 + $0x20] sm:$0xff]
        %v555 = vld [vmem:[%s549 + $0x28] sm:$0xff]
        %v556 = vld [vmem:[%s549 + $0x30] sm:$0xff]
        %v557 = vld [vmem:[%s549 + $0x38] sm:$0xff]
        %v558 = vld [vmem:[%s549 + $0x40] sm:$0xff]
        %v559 = vld [vmem:[%s549 + $0x48] sm:$0xff]
        %v560 = vld [vmem:[%s549 + $0x50] sm:$0xff]
        %v561 = vld [vmem:[%s549 + $0x58] sm:$0xff]
        %v562 = vld [vmem:[%s549 + $0x60] sm:$0xff]
        %v563 = vld [vmem:[%s549 + $0x68] sm:$0xff]
        %v564 = vld [vmem:[%s549 + $0x70] sm:$0xff]
        %v565 = vld [vmem:[%s549 + $0x78] sm:$0xff]
        %v566 = vpack.c.bf16 %v551, %v550
        %v567 = vpack.c.bf16 %v553, %v552
        %v568 = vpack.c.bf16 %v555, %v554
        %v569 = vpack.c.bf16 %v557, %v556
        %v570 = vpack.c.bf16 %v559, %v558
        %v571 = vpack.c.bf16 %v561, %v560
        %v572 = vpack.c.bf16 %v563, %v562
        %v573 = vpack.c.bf16 %v565, %v564
        %v582 = vunpack.c.l.b16 %v566
        %v583 = vunpack.c.h.b16 %v566
        %v584 = vunpack.c.l.b16 %v567
        %v585 = vunpack.c.h.b16 %v567
        %v586 = vunpack.c.l.b16 %v568
        %v587 = vunpack.c.h.b16 %v568
        %v588 = vunpack.c.l.b16 %v569
        %v589 = vunpack.c.h.b16 %v569
        %v590 = vunpack.c.l.b16 %v570
        %v591 = vunpack.c.h.b16 %v570
        %v592 = vunpack.c.l.b16 %v571
        %v593 = vunpack.c.h.b16 %v571
        %v594 = vunpack.c.l.b16 %v572
        %v595 = vunpack.c.h.b16 %v572
        %v596 = vunpack.c.l.b16 %v573
        %v597 = vunpack.c.h.b16 %v573
        %v598 = vpack.c.b16 %v582, %v582
        %v599 = vpack.c.b16 %v583, %v583
        %v600 = vpack.c.b16 %v584, %v584
        %v601 = vpack.c.b16 %v585, %v585
        %v602 = vpack.c.b16 %v586, %v586
        %v603 = vpack.c.b16 %v587, %v587
        %v604 = vpack.c.b16 %v588, %v588
        %v605 = vpack.c.b16 %v589, %v589
        %v606 = vpack.c.b16 %v590, %v590
        %v607 = vpack.c.b16 %v591, %v591
        %v608 = vpack.c.b16 %v592, %v592
        %v609 = vpack.c.b16 %v593, %v593
        %v610 = vpack.c.b16 %v594, %v594
        %v611 = vpack.c.b16 %v595, %v595
        %v612 = vpack.c.b16 %v596, %v596
        %v613 = vpack.c.b16 %v597, %v597
        %614 = vrot.lane.b32.xlu0 %v598, 12
        %v615 = vpop.permute.xlu0 %614
        %616 = vrot.lane.b32.xlu0 %v599, 12
        %v617 = vpop.permute.xlu0 %616
        %618 = vrot.lane.b32.xlu0 %v600, 12
        %v619 = vpop.permute.xlu0 %618
        %620 = vrot.lane.b32.xlu0 %v601, 12
        %v621 = vpop.permute.xlu0 %620
        %622 = vrot.lane.b32.xlu0 %v602, 12
        %v623 = vpop.permute.xlu0 %622
        %624 = vrot.lane.b32.xlu0 %v603, 12
        %v625 = vpop.permute.xlu0 %624
        %626 = vrot.lane.b32.xlu0 %v604, 12
        %v627 = vpop.permute.xlu0 %626
        %628 = vrot.lane.b32.xlu0 %v605, 12
        %v629 = vpop.permute.xlu0 %628
        %630 = vrot.lane.b32.xlu0 %v606, 12
        %v631 = vpop.permute.xlu0 %630
        %632 = vrot.lane.b32.xlu0 %v607, 12
        %v633 = vpop.permute.xlu0 %632
        %634 = vrot.lane.b32.xlu0 %v608, 12
        %v635 = vpop.permute.xlu0 %634
        %636 = vrot.lane.b32.xlu0 %v609, 12
        %v637 = vpop.permute.xlu0 %636
        %638 = vrot.lane.b32.xlu0 %v610, 12
        %v639 = vpop.permute.xlu0 %638
        %640 = vrot.lane.b32.xlu0 %v611, 12
        %v641 = vpop.permute.xlu0 %640
        %642 = vrot.lane.b32.xlu0 %v612, 12
        %v643 = vpop.permute.xlu0 %642
        %644 = vrot.lane.b32.xlu0 %v613, 12
        %v645 = vpop.permute.xlu0 %644
        %vm662 = vcmask 126048
        %663 = vst.msk [vmem:[#allocation2] sm:$0xf] %vm662, %v615
        %664 = vst.msk [vmem:[#allocation2 + $0x4] sm:$0xf] %vm662, %v617
        %665 = vst.msk [vmem:[#allocation2 + $0x8] sm:$0xf] %vm662, %v619
        %666 = vst.msk [vmem:[#allocation2 + $0xc] sm:$0xf] %vm662, %v621
        %667 = vst.msk [vmem:[#allocation2 + $0x10] sm:$0xf] %vm662, %v623
        %668 = vst.msk [vmem:[#allocation2 + $0x14] sm:$0xf] %vm662, %v625
        %669 = vst.msk [vmem:[#allocation2 + $0x18] sm:$0xf] %vm662, %v627
        %670 = vst.msk [vmem:[#allocation2 + $0x1c] sm:$0xf] %vm662, %v629
        %671 = vst.msk [vmem:[#allocation2 + $0x20] sm:$0xf] %vm662, %v631
        %672 = vst.msk [vmem:[#allocation2 + $0x24] sm:$0xf] %vm662, %v633
        %673 = vst.msk [vmem:[#allocation2 + $0x28] sm:$0xf] %vm662, %v635
        %674 = vst.msk [vmem:[#allocation2 + $0x2c] sm:$0xf] %vm662, %v637
        %675 = vst.msk [vmem:[#allocation2 + $0x30] sm:$0xf] %vm662, %v639
        %676 = vst.msk [vmem:[#allocation2 + $0x34] sm:$0xf] %vm662, %v641
        %677 = vst.msk [vmem:[#allocation2 + $0x38] sm:$0xf] %vm662, %v643
        %678 = vst.msk [vmem:[#allocation2 + $0x3c] sm:$0xf] %vm662, %v645
        %s679 = sadd.s32 %s548, 1
        %s680 = scalar_lea.vmem %s182, %s679
        %v681 = vld [vmem:[%s680] sm:$0xff]
        %v682 = vld [vmem:[%s680 + $0x8] sm:$0xff]
        %v683 = vld [vmem:[%s680 + $0x10] sm:$0xff]
        %v684 = vld [vmem:[%s680 + $0x18] sm:$0xff]
        %v685 = vld [vmem:[%s680 + $0x20] sm:$0xff]
        %v686 = vld [vmem:[%s680 + $0x28] sm:$0xff]
        %v687 = vld [vmem:[%s680 + $0x30] sm:$0xff]
        %v688 = vld [vmem:[%s680 + $0x38] sm:$0xff]
        %v689 = vld [vmem:[%s680 + $0x40] sm:$0xff]
        %v690 = vld [vmem:[%s680 + $0x48] sm:$0xff]
        %v691 = vld [vmem:[%s680 + $0x50] sm:$0xff]
        %v692 = vld [vmem:[%s680 + $0x58] sm:$0xff]
        %v693 = vld [vmem:[%s680 + $0x60] sm:$0xff]
        %v694 = vld [vmem:[%s680 + $0x68] sm:$0xff]
        %v695 = vld [vmem:[%s680 + $0x70] sm:$0xff]
        %v696 = vld [vmem:[%s680 + $0x78] sm:$0xff]
        %v697 = vpack.c.bf16 %v682, %v681
        %v698 = vpack.c.bf16 %v684, %v683
        %v699 = vpack.c.bf16 %v686, %v685
        %v700 = vpack.c.bf16 %v688, %v687
        %v701 = vpack.c.bf16 %v690, %v689
        %v702 = vpack.c.bf16 %v692, %v691
        %v703 = vpack.c.bf16 %v694, %v693
        %v704 = vpack.c.bf16 %v696, %v695
        %v713 = vunpack.c.l.b16 %v697
        %v714 = vunpack.c.h.b16 %v697
        %v715 = vunpack.c.l.b16 %v698
        %v716 = vunpack.c.h.b16 %v698
        %v717 = vunpack.c.l.b16 %v699
        %v718 = vunpack.c.h.b16 %v699
        %v719 = vunpack.c.l.b16 %v700
        %v720 = vunpack.c.h.b16 %v700
        %v721 = vunpack.c.l.b16 %v701
        %v722 = vunpack.c.h.b16 %v701
        %v723 = vunpack.c.l.b16 %v702
        %v724 = vunpack.c.h.b16 %v702
        %v725 = vunpack.c.l.b16 %v703
        %v726 = vunpack.c.h.b16 %v703
        %v727 = vunpack.c.l.b16 %v704
        %v728 = vunpack.c.h.b16 %v704
        %v729 = vpack.c.b16 %v713, %v713
        %v730 = vpack.c.b16 %v714, %v714
        %v731 = vpack.c.b16 %v715, %v715
        %v732 = vpack.c.b16 %v716, %v716
        %v733 = vpack.c.b16 %v717, %v717
        %v734 = vpack.c.b16 %v718, %v718
        %v735 = vpack.c.b16 %v719, %v719
        %v736 = vpack.c.b16 %v720, %v720
        %v737 = vpack.c.b16 %v721, %v721
        %v738 = vpack.c.b16 %v722, %v722
        %v739 = vpack.c.b16 %v723, %v723
        %v740 = vpack.c.b16 %v724, %v724
        %v741 = vpack.c.b16 %v725, %v725
        %v742 = vpack.c.b16 %v726, %v726
        %v743 = vpack.c.b16 %v727, %v727
        %v744 = vpack.c.b16 %v728, %v728
        %745 = vrot.lane.b32.xlu0 %v729, 16
        %v746 = vpop.permute.xlu0 %745
        %747 = vrot.lane.b32.xlu0 %v730, 16
        %v748 = vpop.permute.xlu0 %747
        %749 = vrot.lane.b32.xlu0 %v731, 16
        %v750 = vpop.permute.xlu0 %749
        %751 = vrot.lane.b32.xlu0 %v732, 16
        %v752 = vpop.permute.xlu0 %751
        %753 = vrot.lane.b32.xlu0 %v733, 16
        %v754 = vpop.permute.xlu0 %753
        %755 = vrot.lane.b32.xlu0 %v734, 16
        %v756 = vpop.permute.xlu0 %755
        %757 = vrot.lane.b32.xlu0 %v735, 16
        %v758 = vpop.permute.xlu0 %757
        %759 = vrot.lane.b32.xlu0 %v736, 16
        %v760 = vpop.permute.xlu0 %759
        %761 = vrot.lane.b32.xlu0 %v737, 16
        %v762 = vpop.permute.xlu0 %761
        %763 = vrot.lane.b32.xlu0 %v738, 16
        %v764 = vpop.permute.xlu0 %763
        %765 = vrot.lane.b32.xlu0 %v739, 16
        %v766 = vpop.permute.xlu0 %765
        %767 = vrot.lane.b32.xlu0 %v740, 16
        %v768 = vpop.permute.xlu0 %767
        %769 = vrot.lane.b32.xlu0 %v741, 16
        %v770 = vpop.permute.xlu0 %769
        %771 = vrot.lane.b32.xlu0 %v742, 16
        %v772 = vpop.permute.xlu0 %771
        %773 = vrot.lane.b32.xlu0 %v743, 16
        %v774 = vpop.permute.xlu0 %773
        %775 = vrot.lane.b32.xlu0 %v744, 16
        %v776 = vpop.permute.xlu0 %775
        %vm793 = vcmask 158848
        %794 = vst.msk [vmem:[#allocation2] sm:$0xf] %vm793, %v746
        %795 = vst.msk [vmem:[#allocation2 + $0x4] sm:$0xf] %vm793, %v748
        %796 = vst.msk [vmem:[#allocation2 + $0x8] sm:$0xf] %vm793, %v750
        %797 = vst.msk [vmem:[#allocation2 + $0xc] sm:$0xf] %vm793, %v752
        %798 = vst.msk [vmem:[#allocation2 + $0x10] sm:$0xf] %vm793, %v754
        %799 = vst.msk [vmem:[#allocation2 + $0x14] sm:$0xf] %vm793, %v756
        %800 = vst.msk [vmem:[#allocation2 + $0x18] sm:$0xf] %vm793, %v758
        %801 = vst.msk [vmem:[#allocation2 + $0x1c] sm:$0xf] %vm793, %v760
        %802 = vst.msk [vmem:[#allocation2 + $0x20] sm:$0xf] %vm793, %v762
        %803 = vst.msk [vmem:[#allocation2 + $0x24] sm:$0xf] %vm793, %v764
        %804 = vst.msk [vmem:[#allocation2 + $0x28] sm:$0xf] %vm793, %v766
        %805 = vst.msk [vmem:[#allocation2 + $0x2c] sm:$0xf] %vm793, %v768
        %806 = vst.msk [vmem:[#allocation2 + $0x30] sm:$0xf] %vm793, %v770
        %807 = vst.msk [vmem:[#allocation2 + $0x34] sm:$0xf] %vm793, %v772
        %808 = vst.msk [vmem:[#allocation2 + $0x38] sm:$0xf] %vm793, %v774
        %809 = vst.msk [vmem:[#allocation2 + $0x3c] sm:$0xf] %vm793, %v776
        %s810 = sadd.s32 %s548, 2
        %s811 = scalar_lea.vmem %s182, %s810
        %v812 = vld [vmem:[%s811] sm:$0xff]
        %v813 = vld [vmem:[%s811 + $0x8] sm:$0xff]
        %v814 = vld [vmem:[%s811 + $0x10] sm:$0xff]
        %v815 = vld [vmem:[%s811 + $0x18] sm:$0xff]
        %v816 = vld [vmem:[%s811 + $0x20] sm:$0xff]
        %v817 = vld [vmem:[%s811 + $0x28] sm:$0xff]
        %v818 = vld [vmem:[%s811 + $0x30] sm:$0xff]
        %v819 = vld [vmem:[%s811 + $0x38] sm:$0xff]
        %v820 = vld [vmem:[%s811 + $0x40] sm:$0xff]
        %v821 = vld [vmem:[%s811 + $0x48] sm:$0xff]
        %v822 = vld [vmem:[%s811 + $0x50] sm:$0xff]
        %v823 = vld [vmem:[%s811 + $0x58] sm:$0xff]
        %v824 = vld [vmem:[%s811 + $0x60] sm:$0xff]
        %v825 = vld [vmem:[%s811 + $0x68] sm:$0xff]
        %v826 = vld [vmem:[%s811 + $0x70] sm:$0xff]
        %v827 = vld [vmem:[%s811 + $0x78] sm:$0xff]
        %v828 = vpack.c.bf16 %v813, %v812
        %v829 = vpack.c.bf16 %v815, %v814
        %v830 = vpack.c.bf16 %v817, %v816
        %v831 = vpack.c.bf16 %v819, %v818
        %v832 = vpack.c.bf16 %v821, %v820
        %v833 = vpack.c.bf16 %v823, %v822
        %v834 = vpack.c.bf16 %v825, %v824
        %v835 = vpack.c.bf16 %v827, %v826
        %v844 = vunpack.c.l.b16 %v828
        %v845 = vunpack.c.h.b16 %v828
        %v846 = vunpack.c.l.b16 %v829
        %v847 = vunpack.c.h.b16 %v829
        %v848 = vunpack.c.l.b16 %v830
        %v849 = vunpack.c.h.b16 %v830
        %v850 = vunpack.c.l.b16 %v831
        %v851 = vunpack.c.h.b16 %v831
        %v852 = vunpack.c.l.b16 %v832
        %v853 = vunpack.c.h.b16 %v832
        %v854 = vunpack.c.l.b16 %v833
        %v855 = vunpack.c.h.b16 %v833
        %v856 = vunpack.c.l.b16 %v834
        %v857 = vunpack.c.h.b16 %v834
        %v858 = vunpack.c.l.b16 %v835
        %v859 = vunpack.c.h.b16 %v835
        %v860 = vpack.c.b16 %v844, %v844
        %v861 = vpack.c.b16 %v845, %v845
        %v862 = vpack.c.b16 %v846, %v846
        %v863 = vpack.c.b16 %v847, %v847
        %v864 = vpack.c.b16 %v848, %v848
        %v865 = vpack.c.b16 %v849, %v849
        %v866 = vpack.c.b16 %v850, %v850
        %v867 = vpack.c.b16 %v851, %v851
        %v868 = vpack.c.b16 %v852, %v852
        %v869 = vpack.c.b16 %v853, %v853
        %v870 = vpack.c.b16 %v854, %v854
        %v871 = vpack.c.b16 %v855, %v855
        %v872 = vpack.c.b16 %v856, %v856
        %v873 = vpack.c.b16 %v857, %v857
        %v874 = vpack.c.b16 %v858, %v858
        %v875 = vpack.c.b16 %v859, %v859
        %876 = vrot.lane.b32.xlu0 %v860, 20
        %v877 = vpop.permute.xlu0 %876
        %878 = vrot.lane.b32.xlu0 %v861, 20
        %v879 = vpop.permute.xlu0 %878
        %880 = vrot.lane.b32.xlu0 %v862, 20
        %v881 = vpop.permute.xlu0 %880
        %882 = vrot.lane.b32.xlu0 %v863, 20
        %v883 = vpop.permute.xlu0 %882
        %884 = vrot.lane.b32.xlu0 %v864, 20
        %v885 = vpop.permute.xlu0 %884
        %886 = vrot.lane.b32.xlu0 %v865, 20
        %v887 = vpop.permute.xlu0 %886
        %888 = vrot.lane.b32.xlu0 %v866, 20
        %v889 = vpop.permute.xlu0 %888
        %890 = vrot.lane.b32.xlu0 %v867, 20
        %v891 = vpop.permute.xlu0 %890
        %892 = vrot.lane.b32.xlu0 %v868, 20
        %v893 = vpop.permute.xlu0 %892
        %894 = vrot.lane.b32.xlu0 %v869, 20
        %v895 = vpop.permute.xlu0 %894
        %896 = vrot.lane.b32.xlu0 %v870, 20
        %v897 = vpop.permute.xlu0 %896
        %898 = vrot.lane.b32.xlu0 %v871, 20
        %v899 = vpop.permute.xlu0 %898
        %900 = vrot.lane.b32.xlu0 %v872, 20
        %v901 = vpop.permute.xlu0 %900
        %902 = vrot.lane.b32.xlu0 %v873, 20
        %v903 = vpop.permute.xlu0 %902
        %904 = vrot.lane.b32.xlu0 %v874, 20
        %v905 = vpop.permute.xlu0 %904
        %906 = vrot.lane.b32.xlu0 %v875, 20
        %v907 = vpop.permute.xlu0 %906
        %vm924 = vcmask 191648
        %925 = vst.msk [vmem:[#allocation2] sm:$0xf] %vm924, %v877
        %926 = vst.msk [vmem:[#allocation2 + $0x4] sm:$0xf] %vm924, %v879
        %927 = vst.msk [vmem:[#allocation2 + $0x8] sm:$0xf] %vm924, %v881
        %928 = vst.msk [vmem:[#allocation2 + $0xc] sm:$0xf] %vm924, %v883
        %929 = vst.msk [vmem:[#allocation2 + $0x10] sm:$0xf] %vm924, %v885
        %930 = vst.msk [vmem:[#allocation2 + $0x14] sm:$0xf] %vm924, %v887
        %931 = vst.msk [vmem:[#allocation2 + $0x18] sm:$0xf] %vm924, %v889
        %932 = vst.msk [vmem:[#allocation2 + $0x1c] sm:$0xf] %vm924, %v891
        %933 = vst.msk [vmem:[#allocation2 + $0x20] sm:$0xf] %vm924, %v893
        %934 = vst.msk [vmem:[#allocation2 + $0x24] sm:$0xf] %vm924, %v895
        %935 = vst.msk [vmem:[#allocation2 + $0x28] sm:$0xf] %vm924, %v897
        %936 = vst.msk [vmem:[#allocation2 + $0x2c] sm:$0xf] %vm924, %v899
        %937 = vst.msk [vmem:[#allocation2 + $0x30] sm:$0xf] %vm924, %v901
        %938 = vst.msk [vmem:[#allocation2 + $0x34] sm:$0xf] %vm924, %v903
        %939 = vst.msk [vmem:[#allocation2 + $0x38] sm:$0xf] %vm924, %v905
        %940 = vst.msk [vmem:[#allocation2 + $0x3c] sm:$0xf] %vm924, %v907
        %s941 = sadd.s32 %s185, 2
        %s942 = smul.u32 %s941, 16
        %s943 = scalar_lea.vmem %s182, %s942
        %v944 = vld [vmem:[%s943] sm:$0xff]
        %v945 = vld [vmem:[%s943 + $0x8] sm:$0xff]
        %v946 = vld [vmem:[%s943 + $0x10] sm:$0xff]
        %v947 = vld [vmem:[%s943 + $0x18] sm:$0xff]
        %v948 = vld [vmem:[%s943 + $0x20] sm:$0xff]
        %v949 = vld [vmem:[%s943 + $0x28] sm:$0xff]
        %v950 = vld [vmem:[%s943 + $0x30] sm:$0xff]
        %v951 = vld [vmem:[%s943 + $0x38] sm:$0xff]
        %v952 = vld [vmem:[%s943 + $0x40] sm:$0xff]
        %v953 = vld [vmem:[%s943 + $0x48] sm:$0xff]
        %v954 = vld [vmem:[%s943 + $0x50] sm:$0xff]
        %v955 = vld [vmem:[%s943 + $0x58] sm:$0xff]
        %v956 = vld [vmem:[%s943 + $0x60] sm:$0xff]
        %v957 = vld [vmem:[%s943 + $0x68] sm:$0xff]
        %v958 = vld [vmem:[%s943 + $0x70] sm:$0xff]
        %v959 = vld [vmem:[%s943 + $0x78] sm:$0xff]
        %v960 = vpack.c.bf16 %v945, %v944
        %v961 = vpack.c.bf16 %v947, %v946
        %v962 = vpack.c.bf16 %v949, %v948
        %v963 = vpack.c.bf16 %v951, %v950
        %v964 = vpack.c.bf16 %v953, %v952
        %v965 = vpack.c.bf16 %v955, %v954
        %v966 = vpack.c.bf16 %v957, %v956
        %v967 = vpack.c.bf16 %v959, %v958
        %v976 = vunpack.c.l.b16 %v960
        %v977 = vunpack.c.h.b16 %v960
        %v978 = vunpack.c.l.b16 %v961
        %v979 = vunpack.c.h.b16 %v961
        %v980 = vunpack.c.l.b16 %v962
        %v981 = vunpack.c.h.b16 %v962
        %v982 = vunpack.c.l.b16 %v963
        %v983 = vunpack.c.h.b16 %v963
        %v984 = vunpack.c.l.b16 %v964
        %v985 = vunpack.c.h.b16 %v964
        %v986 = vunpack.c.l.b16 %v965
        %v987 = vunpack.c.h.b16 %v965
        %v988 = vunpack.c.l.b16 %v966
        %v989 = vunpack.c.h.b16 %v966
        %v990 = vunpack.c.l.b16 %v967
        %v991 = vunpack.c.h.b16 %v967
        %v992 = vpack.c.b16 %v976, %v976
        %v993 = vpack.c.b16 %v977, %v977
        %v994 = vpack.c.b16 %v978, %v978
        %v995 = vpack.c.b16 %v979, %v979
        %v996 = vpack.c.b16 %v980, %v980
        %v997 = vpack.c.b16 %v981, %v981
        %v998 = vpack.c.b16 %v982, %v982
        %v999 = vpack.c.b16 %v983, %v983
        %v1000 = vpack.c.b16 %v984, %v984
        %v1001 = vpack.c.b16 %v985, %v985
        %v1002 = vpack.c.b16 %v986, %v986
        %v1003 = vpack.c.b16 %v987, %v987
        %v1004 = vpack.c.b16 %v988, %v988
        %v1005 = vpack.c.b16 %v989, %v989
        %v1006 = vpack.c.b16 %v990, %v990
        %v1007 = vpack.c.b16 %v991, %v991
        %1008 = vrot.lane.b32.xlu0 %v992, 24
        %v1009 = vpop.permute.xlu0 %1008
        %1010 = vrot.lane.b32.xlu0 %v993, 24
        %v1011 = vpop.permute.xlu0 %1010
        %1012 = vrot.lane.b32.xlu0 %v994, 24
        %v1013 = vpop.permute.xlu0 %1012
        %1014 = vrot.lane.b32.xlu0 %v995, 24
        %v1015 = vpop.permute.xlu0 %1014
        %1016 = vrot.lane.b32.xlu0 %v996, 24
        %v1017 = vpop.permute.xlu0 %1016
        %1018 = vrot.lane.b32.xlu0 %v997, 24
        %v1019 = vpop.permute.xlu0 %1018
        %1020 = vrot.lane.b32.xlu0 %v998, 24
        %v1021 = vpop.permute.xlu0 %1020
        %1022 = vrot.lane.b32.xlu0 %v999, 24
        %v1023 = vpop.permute.xlu0 %1022
        %1024 = vrot.lane.b32.xlu0 %v1000, 24
        %v1025 = vpop.permute.xlu0 %1024
        %1026 = vrot.lane.b32.xlu0 %v1001, 24
        %v1027 = vpop.permute.xlu0 %1026
        %1028 = vrot.lane.b32.xlu0 %v1002, 24
        %v1029 = vpop.permute.xlu0 %1028
        %1030 = vrot.lane.b32.xlu0 %v1003, 24
        %v1031 = vpop.permute.xlu0 %1030
        %1032 = vrot.lane.b32.xlu0 %v1004, 24
        %v1033 = vpop.permute.xlu0 %1032
        %1034 = vrot.lane.b32.xlu0 %v1005, 24
        %v1035 = vpop.permute.xlu0 %1034
        %1036 = vrot.lane.b32.xlu0 %v1006, 24
        %v1037 = vpop.permute.xlu0 %1036
        %1038 = vrot.lane.b32.xlu0 %v1007, 24
        %v1039 = vpop.permute.xlu0 %1038
        %vm1056 = vcmask 224448
        %1057 = vst.msk [vmem:[#allocation2] sm:$0xf] %vm1056, %v1009
        %1058 = vst.msk [vmem:[#allocation2 + $0x4] sm:$0xf] %vm1056, %v1011
        %1059 = vst.msk [vmem:[#allocation2 + $0x8] sm:$0xf] %vm1056, %v1013
        %1060 = vst.msk [vmem:[#allocation2 + $0xc] sm:$0xf] %vm1056, %v1015
        %1061 = vst.msk [vmem:[#allocation2 + $0x10] sm:$0xf] %vm1056, %v1017
        %1062 = vst.msk [vmem:[#allocation2 + $0x14] sm:$0xf] %vm1056, %v1019
        %1063 = vst.msk [vmem:[#allocation2 + $0x18] sm:$0xf] %vm1056, %v1021
        %1064 = vst.msk [vmem:[#allocation2 + $0x1c] sm:$0xf] %vm1056, %v1023
        %1065 = vst.msk [vmem:[#allocation2 + $0x20] sm:$0xf] %vm1056, %v1025
        %1066 = vst.msk [vmem:[#allocation2 + $0x24] sm:$0xf] %vm1056, %v1027
        %1067 = vst.msk [vmem:[#allocation2 + $0x28] sm:$0xf] %vm1056, %v1029
        %1068 = vst.msk [vmem:[#allocation2 + $0x2c] sm:$0xf] %vm1056, %v1031
        %1069 = vst.msk [vmem:[#allocation2 + $0x30] sm:$0xf] %vm1056, %v1033
        %1070 = vst.msk [vmem:[#allocation2 + $0x34] sm:$0xf] %vm1056, %v1035
        %1071 = vst.msk [vmem:[#allocation2 + $0x38] sm:$0xf] %vm1056, %v1037
        %1072 = vst.msk [vmem:[#allocation2 + $0x3c] sm:$0xf] %vm1056, %v1039
        %s1073 = sadd.s32 %s942, 1
        %s1074 = scalar_lea.vmem %s182, %s1073
        %v1075 = vld [vmem:[%s1074] sm:$0xff]
        %v1076 = vld [vmem:[%s1074 + $0x8] sm:$0xff]
        %v1077 = vld [vmem:[%s1074 + $0x10] sm:$0xff]
        %v1078 = vld [vmem:[%s1074 + $0x18] sm:$0xff]
        %v1079 = vld [vmem:[%s1074 + $0x20] sm:$0xff]
        %v1080 = vld [vmem:[%s1074 + $0x28] sm:$0xff]
        %v1081 = vld [vmem:[%s1074 + $0x30] sm:$0xff]
        %v1082 = vld [vmem:[%s1074 + $0x38] sm:$0xff]
        %v1083 = vld [vmem:[%s1074 + $0x40] sm:$0xff]
        %v1084 = vld [vmem:[%s1074 + $0x48] sm:$0xff]
        %v1085 = vld [vmem:[%s1074 + $0x50] sm:$0xff]
        %v1086 = vld [vmem:[%s1074 + $0x58] sm:$0xff]
        %v1087 = vld [vmem:[%s1074 + $0x60] sm:$0xff]
        %v1088 = vld [vmem:[%s1074 + $0x68] sm:$0xff]
        %v1089 = vld [vmem:[%s1074 + $0x70] sm:$0xff]
        %v1090 = vld [vmem:[%s1074 + $0x78] sm:$0xff]
        %v1091 = vpack.c.bf16 %v1076, %v1075
        %v1092 = vpack.c.bf16 %v1078, %v1077
        %v1093 = vpack.c.bf16 %v1080, %v1079
        %v1094 = vpack.c.bf16 %v1082, %v1081
        %v1095 = vpack.c.bf16 %v1084, %v1083
        %v1096 = vpack.c.bf16 %v1086, %v1085
        %v1097 = vpack.c.bf16 %v1088, %v1087
        %v1098 = vpack.c.bf16 %v1090, %v1089
        %v1107 = vunpack.c.l.b16 %v1091
        %v1108 = vunpack.c.h.b16 %v1091
        %v1109 = vunpack.c.l.b16 %v1092
        %v1110 = vunpack.c.h.b16 %v1092
        %v1111 = vunpack.c.l.b16 %v1093
        %v1112 = vunpack.c.h.b16 %v1093
        %v1113 = vunpack.c.l.b16 %v1094
        %v1114 = vunpack.c.h.b16 %v1094
        %v1115 = vunpack.c.l.b16 %v1095
        %v1116 = vunpack.c.h.b16 %v1095
        %v1117 = vunpack.c.l.b16 %v1096
        %v1118 = vunpack.c.h.b16 %v1096
        %v1119 = vunpack.c.l.b16 %v1097
        %v1120 = vunpack.c.h.b16 %v1097
        %v1121 = vunpack.c.l.b16 %v1098
        %v1122 = vunpack.c.h.b16 %v1098
        %v1123 = vpack.c.b16 %v1107, %v1107
        %v1124 = vpack.c.b16 %v1108, %v1108
        %v1125 = vpack.c.b16 %v1109, %v1109
        %v1126 = vpack.c.b16 %v1110, %v1110
        %v1127 = vpack.c.b16 %v1111, %v1111
        %v1128 = vpack.c.b16 %v1112, %v1112
        %v1129 = vpack.c.b16 %v1113, %v1113
        %v1130 = vpack.c.b16 %v1114, %v1114
        %v1131 = vpack.c.b16 %v1115, %v1115
        %v1132 = vpack.c.b16 %v1116, %v1116
        %v1133 = vpack.c.b16 %v1117, %v1117
        %v1134 = vpack.c.b16 %v1118, %v1118
        %v1135 = vpack.c.b16 %v1119, %v1119
        %v1136 = vpack.c.b16 %v1120, %v1120
        %v1137 = vpack.c.b16 %v1121, %v1121
        %v1138 = vpack.c.b16 %v1122, %v1122
        %1139 = vrot.lane.b32.xlu0 %v1123, 28
        %v1140 = vpop.permute.xlu0 %1139
        %1141 = vrot.lane.b32.xlu0 %v1124, 28
        %v1142 = vpop.permute.xlu0 %1141
        %1143 = vrot.lane.b32.xlu0 %v1125, 28
        %v1144 = vpop.permute.xlu0 %1143
        %1145 = vrot.lane.b32.xlu0 %v1126, 28
        %v1146 = vpop.permute.xlu0 %1145
        %1147 = vrot.lane.b32.xlu0 %v1127, 28
        %v1148 = vpop.permute.xlu0 %1147
        %1149 = vrot.lane.b32.xlu0 %v1128, 28
        %v1150 = vpop.permute.xlu0 %1149
        %1151 = vrot.lane.b32.xlu0 %v1129, 28
        %v1152 = vpop.permute.xlu0 %1151
        %1153 = vrot.lane.b32.xlu0 %v1130, 28
        %v1154 = vpop.permute.xlu0 %1153
        %1155 = vrot.lane.b32.xlu0 %v1131, 28
        %v1156 = vpop.permute.xlu0 %1155
        %1157 = vrot.lane.b32.xlu0 %v1132, 28
        %v1158 = vpop.permute.xlu0 %1157
        %1159 = vrot.lane.b32.xlu0 %v1133, 28
        %v1160 = vpop.permute.xlu0 %1159
        %1161 = vrot.lane.b32.xlu0 %v1134, 28
        %v1162 = vpop.permute.xlu0 %1161
        %1163 = vrot.lane.b32.xlu0 %v1135, 28
        %v1164 = vpop.permute.xlu0 %1163
        %1165 = vrot.lane.b32.xlu0 %v1136, 28
        %v1166 = vpop.permute.xlu0 %1165
        %1167 = vrot.lane.b32.xlu0 %v1137, 28
        %v1168 = vpop.permute.xlu0 %1167
        %1169 = vrot.lane.b32.xlu0 %v1138, 28
        %v1170 = vpop.permute.xlu0 %1169
        %vm1187 = vcmask 257248
        %1188 = vst.msk [vmem:[#allocation2] sm:$0xf] %vm1187, %v1140
        %1189 = vst.msk [vmem:[#allocation2 + $0x4] sm:$0xf] %vm1187, %v1142
        %1190 = vst.msk [vmem:[#allocation2 + $0x8] sm:$0xf] %vm1187, %v1144
        %1191 = vst.msk [vmem:[#allocation2 + $0xc] sm:$0xf] %vm1187, %v1146
        %1192 = vst.msk [vmem:[#allocation2 + $0x10] sm:$0xf] %vm1187, %v1148
        %1193 = vst.msk [vmem:[#allocation2 + $0x14] sm:$0xf] %vm1187, %v1150
        %1194 = vst.msk [vmem:[#allocation2 + $0x18] sm:$0xf] %vm1187, %v1152
        %1195 = vst.msk [vmem:[#allocation2 + $0x1c] sm:$0xf] %vm1187, %v1154
        %1196 = vst.msk [vmem:[#allocation2 + $0x20] sm:$0xf] %vm1187, %v1156
        %1197 = vst.msk [vmem:[#allocation2 + $0x24] sm:$0xf] %vm1187, %v1158
        %1198 = vst.msk [vmem:[#allocation2 + $0x28] sm:$0xf] %vm1187, %v1160
        %1199 = vst.msk [vmem:[#allocation2 + $0x2c] sm:$0xf] %vm1187, %v1162
        %1200 = vst.msk [vmem:[#allocation2 + $0x30] sm:$0xf] %vm1187, %v1164
        %1201 = vst.msk [vmem:[#allocation2 + $0x34] sm:$0xf] %vm1187, %v1166
        %1202 = vst.msk [vmem:[#allocation2 + $0x38] sm:$0xf] %vm1187, %v1168
        %1203 = vst.msk [vmem:[#allocation2 + $0x3c] sm:$0xf] %vm1187, %v1170
        %s1204 = sadd.s32 %s942, 2
        %s1205 = scalar_lea.vmem %s182, %s1204
        %v1206 = vld [vmem:[%s1205] sm:$0xff]
        %v1207 = vld [vmem:[%s1205 + $0x8] sm:$0xff]
        %v1208 = vld [vmem:[%s1205 + $0x10] sm:$0xff]
        %v1209 = vld [vmem:[%s1205 + $0x18] sm:$0xff]
        %v1210 = vld [vmem:[%s1205 + $0x20] sm:$0xff]
        %v1211 = vld [vmem:[%s1205 + $0x28] sm:$0xff]
        %v1212 = vld [vmem:[%s1205 + $0x30] sm:$0xff]
        %v1213 = vld [vmem:[%s1205 + $0x38] sm:$0xff]
        %v1214 = vld [vmem:[%s1205 + $0x40] sm:$0xff]
        %v1215 = vld [vmem:[%s1205 + $0x48] sm:$0xff]
        %v1216 = vld [vmem:[%s1205 + $0x50] sm:$0xff]
        %v1217 = vld [vmem:[%s1205 + $0x58] sm:$0xff]
        %v1218 = vld [vmem:[%s1205 + $0x60] sm:$0xff]
        %v1219 = vld [vmem:[%s1205 + $0x68] sm:$0xff]
        %v1220 = vld [vmem:[%s1205 + $0x70] sm:$0xff]
        %v1221 = vld [vmem:[%s1205 + $0x78] sm:$0xff]
        %v1222 = vpack.c.bf16 %v1207, %v1206
        %v1223 = vpack.c.bf16 %v1209, %v1208
        %v1224 = vpack.c.bf16 %v1211, %v1210
        %v1225 = vpack.c.bf16 %v1213, %v1212
        %v1226 = vpack.c.bf16 %v1215, %v1214
        %v1227 = vpack.c.bf16 %v1217, %v1216
        %v1228 = vpack.c.bf16 %v1219, %v1218
        %v1229 = vpack.c.bf16 %v1221, %v1220
        %v1238 = vunpack.c.l.b16 %v1222
        %v1239 = vunpack.c.h.b16 %v1222
        %v1240 = vunpack.c.l.b16 %v1223
        %v1241 = vunpack.c.h.b16 %v1223
        %v1242 = vunpack.c.l.b16 %v1224
        %v1243 = vunpack.c.h.b16 %v1224
        %v1244 = vunpack.c.l.b16 %v1225
        %v1245 = vunpack.c.h.b16 %v1225
        %v1246 = vunpack.c.l.b16 %v1226
        %v1247 = vunpack.c.h.b16 %v1226
        %v1248 = vunpack.c.l.b16 %v1227
        %v1249 = vunpack.c.h.b16 %v1227
        %v1250 = vunpack.c.l.b16 %v1228
        %v1251 = vunpack.c.h.b16 %v1228
        %v1252 = vunpack.c.l.b16 %v1229
        %v1253 = vunpack.c.h.b16 %v1229
        %v1254 = vpack.c.b16 %v1238, %v1238
        %v1255 = vpack.c.b16 %v1239, %v1239
        %v1256 = vpack.c.b16 %v1240, %v1240
        %v1257 = vpack.c.b16 %v1241, %v1241
        %v1258 = vpack.c.b16 %v1242, %v1242
        %v1259 = vpack.c.b16 %v1243, %v1243
        %v1260 = vpack.c.b16 %v1244, %v1244
        %v1261 = vpack.c.b16 %v1245, %v1245
        %v1262 = vpack.c.b16 %v1246, %v1246
        %v1263 = vpack.c.b16 %v1247, %v1247
        %v1264 = vpack.c.b16 %v1248, %v1248
        %v1265 = vpack.c.b16 %v1249, %v1249
        %v1266 = vpack.c.b16 %v1250, %v1250
        %v1267 = vpack.c.b16 %v1251, %v1251
        %v1268 = vpack.c.b16 %v1252, %v1252
        %v1269 = vpack.c.b16 %v1253, %v1253
        %1270 = vrot.lane.b32.xlu0 %v1254, 32
        %v1271 = vpop.permute.xlu0 %1270
        %1272 = vrot.lane.b32.xlu0 %v1255, 32
        %v1273 = vpop.permute.xlu0 %1272
        %1274 = vrot.lane.b32.xlu0 %v1256, 32
        %v1275 = vpop.permute.xlu0 %1274
        %1276 = vrot.lane.b32.xlu0 %v1257, 32
        %v1277 = vpop.permute.xlu0 %1276
        %1278 = vrot.lane.b32.xlu0 %v1258, 32
        %v1279 = vpop.permute.xlu0 %1278
        %1280 = vrot.lane.b32.xlu0 %v1259, 32
        %v1281 = vpop.permute.xlu0 %1280
        %1282 = vrot.lane.b32.xlu0 %v1260, 32
        %v1283 = vpop.permute.xlu0 %1282
        %1284 = vrot.lane.b32.xlu0 %v1261, 32
        %v1285 = vpop.permute.xlu0 %1284
        %1286 = vrot.lane.b32.xlu0 %v1262, 32
        %v1287 = vpop.permute.xlu0 %1286
        %1288 = vrot.lane.b32.xlu0 %v1263, 32
        %v1289 = vpop.permute.xlu0 %1288
        %1290 = vrot.lane.b32.xlu0 %v1264, 32
        %v1291 = vpop.permute.xlu0 %1290
        %1292 = vrot.lane.b32.xlu0 %v1265, 32
        %v1293 = vpop.permute.xlu0 %1292
        %1294 = vrot.lane.b32.xlu0 %v1266, 32
        %v1295 = vpop.permute.xlu0 %1294
        %1296 = vrot.lane.b32.xlu0 %v1267, 32
        %v1297 = vpop.permute.xlu0 %1296
        %1298 = vrot.lane.b32.xlu0 %v1268, 32
        %v1299 = vpop.permute.xlu0 %1298
        %1300 = vrot.lane.b32.xlu0 %v1269, 32
        %v1301 = vpop.permute.xlu0 %1300
        %vm1318 = vcmask 290048
        %1319 = vst.msk [vmem:[#allocation2] sm:$0xf] %vm1318, %v1271
        %1320 = vst.msk [vmem:[#allocation2 + $0x4] sm:$0xf] %vm1318, %v1273
        %1321 = vst.msk [vmem:[#allocation2 + $0x8] sm:$0xf] %vm1318, %v1275
        %1322 = vst.msk [vmem:[#allocation2 + $0xc] sm:$0xf] %vm1318, %v1277
        %1323 = vst.msk [vmem:[#allocation2 + $0x10] sm:$0xf] %vm1318, %v1279
        %1324 = vst.msk [vmem:[#allocation2 + $0x14] sm:$0xf] %vm1318, %v1281
        %1325 = vst.msk [vmem:[#allocation2 + $0x18] sm:$0xf] %vm1318, %v1283
        %1326 = vst.msk [vmem:[#allocation2 + $0x1c] sm:$0xf] %vm1318, %v1285
        %1327 = vst.msk [vmem:[#allocation2 + $0x20] sm:$0xf] %vm1318, %v1287
        %1328 = vst.msk [vmem:[#allocation2 + $0x24] sm:$0xf] %vm1318, %v1289
        %1329 = vst.msk [vmem:[#allocation2 + $0x28] sm:$0xf] %vm1318, %v1291
        %1330 = vst.msk [vmem:[#allocation2 + $0x2c] sm:$0xf] %vm1318, %v1293
        %1331 = vst.msk [vmem:[#allocation2 + $0x30] sm:$0xf] %vm1318, %v1295
        %1332 = vst.msk [vmem:[#allocation2 + $0x34] sm:$0xf] %vm1318, %v1297
        %1333 = vst.msk [vmem:[#allocation2 + $0x38] sm:$0xf] %vm1318, %v1299
        %1334 = vst.msk [vmem:[#allocation2 + $0x3c] sm:$0xf] %vm1318, %v1301
        %v1335 = vld [vmem:[#allocation2] sm:$0xf]
        %v1336 = vld [vmem:[#allocation2 + $0x4] sm:$0xf]
        %v1337 = vld [vmem:[#allocation2 + $0x8] sm:$0xf]
        %v1338 = vld [vmem:[#allocation2 + $0xc] sm:$0xf]
        %v1339 = vld [vmem:[#allocation2 + $0x10] sm:$0xf]
        %v1340 = vld [vmem:[#allocation2 + $0x14] sm:$0xf]
        %v1341 = vld [vmem:[#allocation2 + $0x18] sm:$0xf]
        %v1342 = vld [vmem:[#allocation2 + $0x1c] sm:$0xf]
        %v1343 = vld [vmem:[#allocation2 + $0x20] sm:$0xf]
        %v1344 = vld [vmem:[#allocation2 + $0x24] sm:$0xf]
        %v1345 = vld [vmem:[#allocation2 + $0x28] sm:$0xf]
        %v1346 = vld [vmem:[#allocation2 + $0x2c] sm:$0xf]
        %v1347 = vld [vmem:[#allocation2 + $0x30] sm:$0xf]
        %v1348 = vld [vmem:[#allocation2 + $0x34] sm:$0xf]
        %v1349 = vld [vmem:[#allocation2 + $0x38] sm:$0xf]
        %v1350 = vld [vmem:[#allocation2 + $0x3c] sm:$0xf]
        %v1351 = vld [vmem:[%s1] sm:$0xf]
        %v1352 = vld [vmem:[%s1 + $0x4] sm:$0xf]
        %v1353 = vld [vmem:[%s1 + $0x8] sm:$0xf]
        %v1354 = vld [vmem:[%s1 + $0xc] sm:$0xf]
        %v1355 = vld [vmem:[%s1 + $0x10] sm:$0x3]
        %v1356 = vld [vmem:[%s2] sm:$0x1]
        %v1358 = vlaneseq
        %v1359 = vshrl.u32 %v1358, 7
        %v1360 = vsub.s32 0, %v1359
        %v1361 = vrot.slane %v1356, %v1360
        %v1379 = vunpack.c.l.b16 %v1335
        %v1380 = vunpack.c.l.b16 %v1336
        %v1381 = vunpack.c.l.b16 %v1337
        %v1382 = vunpack.c.l.b16 %v1338
        %v1383 = vunpack.c.l.b16 %v1339
        %v1384 = vunpack.c.l.b16 %v1340
        %v1385 = vunpack.c.l.b16 %v1341
        %v1386 = vunpack.c.l.b16 %v1342
        %v1387 = vunpack.c.l.b16 %v1343
        %v1388 = vunpack.c.l.b16 %v1344
        %v1389 = vunpack.c.l.b16 %v1345
        %v1390 = vunpack.c.l.b16 %v1346
        %v1391 = vunpack.c.l.b16 %v1347
        %v1392 = vunpack.c.l.b16 %v1348
        %v1393 = vunpack.c.l.b16 %v1349
        %v1394 = vunpack.c.l.b16 %v1350
        %v1395 = vpack.c.b16 %v1380, %v1379
        %v1396 = vpack.c.b16 %v1382, %v1381
        %v1397 = vpack.c.b16 %v1384, %v1383
        %v1398 = vpack.c.b16 %v1386, %v1385
        %v1399 = vpack.c.b16 %v1388, %v1387
        %v1400 = vpack.c.b16 %v1390, %v1389
        %v1401 = vpack.c.b16 %v1392, %v1391
        %v1402 = vpack.c.b16 %v1394, %v1393
        %v1408 = vunpack.c.l.b16 %v1351
        %v1409 = vunpack.c.l.b16 %v1352
        %v1410 = vunpack.c.l.b16 %v1353
        %v1411 = vunpack.c.l.b16 %v1354
        %v1412 = vunpack.c.l.b16 %v1355
        %v1413 = vpack.c.b16 %v1409, %v1408
        %v1414 = vpack.c.b16 %v1411, %v1410
        %v1415 = vpack.c.b16 %v1412, %v1412
        %vm1418 = vcmask 293888
        %v1420 = vsel %vm1418, %v1395, 0
        %v1423 = vsel %vm1418, %v1396, 0
        %v1426 = vsel %vm1418, %v1397, 0
        %v1429 = vsel %vm1418, %v1398, 0
        %v1432 = vsel %vm1418, %v1399, 0
        %v1435 = vsel %vm1418, %v1400, 0
        %v1438 = vsel %vm1418, %v1401, 0
        %v1441 = vsel %vm1418, %v1402, 0
        %vm1443 = vcmask 1041408
        %v1445 = vsel %vm1443, %v1415, 0
        %1447 = vmatprep.subr.bf16.mxu0 0
        %1448 = vmatpush1.bf16.msra.mxu0 0
        %1449 = vmatprep.subr.bf16.mxu0 0
        %1450 = vmatpush1.bf16.msra.mxu0 0
        %1451 = vmatprep.subr.bf16.mxu0 0
        %1452 = vmatpush1.bf16.msra.mxu0 0
        %1453 = vmatprep.subr.bf16.mxu0 0
        %1454 = vmatpush1.bf16.msra.mxu0 0
        %1455 = vmatprep.subr.bf16.mxu0 0
        %1456 = vmatpush1.bf16.msra.mxu0 0
        %1457 = vmatprep.subr.bf16.mxu0 0
        %1458 = vmatpush1.bf16.msra.mxu0 %v1445
        %1459 = vmatprep.subr.bf16.mxu0 0
        %1460 = vmatpush1.bf16.msra.mxu0 %v1414
        %1461 = vmatprep.subr.bf16.mxu0 0
        %1462 = vmatpush1.bf16.msra.mxu0 %v1413
        %1463 = vmatprep.subr.bf16.mxu0 0
        %1464 = vmatpush2.bf16.msra.mxu0 0
        %1465 = vmatprep.subr.bf16.mxu0 0
        %1466 = vmatpush2.bf16.msra.mxu0 0
        %1467 = vmatprep.subr.bf16.mxu0 0
        %1468 = vmatpush2.bf16.msra.mxu0 0
        %1469 = vmatprep.subr.bf16.mxu0 0
        %1470 = vmatpush2.bf16.msra.mxu0 0
        %1471 = vmatprep.subr.bf16.mxu0 0
        %1472 = vmatpush2.bf16.msra.mxu0 0
        %1473 = vmatprep.subr.bf16.mxu0 0
        %1474 = vmatpush2.bf16.msra.mxu0 0
        %1475 = vmatprep.subr.bf16.mxu0 0
        %1476 = vmatpush2.bf16.msra.mxu0 0
        %1477 = vmatprep.subr.bf16.mxu0 0
        %1478 = vmatpush2.bf16.msra.mxu0 0
        %1479 = vmatprep.mubr.bf16.mxu0 0
        %1480 = vmatmul.mubr.bf16.gmra.mxu0 %v1420
        %v1481 = vpop.f32.mrf.mxu0
        %v1482 = vadd.f32 %v1361, %v1481
        %v1483 = vpop.f32.mrf.mxu0
        %v1484 = vpop.f32.mrf.mxu0
        %v1485 = vadd.f32 %v1361, %v1484
        %v1486 = vpop.f32.mrf.mxu0
        %1487 = vmatprep.mubr.bf16.mxu0 0
        %1488 = vmatmul.mubr.bf16.gmra.mxu0 %v1423
        %v1489 = vpop.f32.mrf.mxu0
        %v1490 = vadd.f32 %v1361, %v1489
        %v1491 = vpop.f32.mrf.mxu0
        %v1492 = vpop.f32.mrf.mxu0
        %v1493 = vadd.f32 %v1361, %v1492
        %v1494 = vpop.f32.mrf.mxu0
        %1495 = vmatprep.mubr.bf16.mxu0 0
        %1496 = vmatmul.mubr.bf16.gmra.mxu0 %v1426
        %v1497 = vpop.f32.mrf.mxu0
        %v1498 = vadd.f32 %v1361, %v1497
        %v1499 = vpop.f32.mrf.mxu0
        %v1500 = vpop.f32.mrf.mxu0
        %v1501 = vadd.f32 %v1361, %v1500
        %v1502 = vpop.f32.mrf.mxu0
        %1503 = vmatprep.mubr.bf16.mxu0 0
        %1504 = vmatmul.mubr.bf16.gmra.mxu0 %v1429
        %v1505 = vpop.f32.mrf.mxu0
        %v1506 = vadd.f32 %v1361, %v1505
        %v1507 = vpop.f32.mrf.mxu0
        %v1508 = vpop.f32.mrf.mxu0
        %v1509 = vadd.f32 %v1361, %v1508
        %v1510 = vpop.f32.mrf.mxu0
        %1511 = vmatprep.mubr.bf16.mxu0 0
        %1512 = vmatmul.mubr.bf16.gmra.mxu0 %v1432
        %v1513 = vpop.f32.mrf.mxu0
        %v1514 = vadd.f32 %v1361, %v1513
        %v1515 = vpop.f32.mrf.mxu0
        %v1516 = vpop.f32.mrf.mxu0
        %v1517 = vadd.f32 %v1361, %v1516
        %v1518 = vpop.f32.mrf.mxu0
        %1519 = vmatprep.mubr.bf16.mxu0 0
        %1520 = vmatmul.mubr.bf16.gmra.mxu0 %v1435
        %v1521 = vpop.f32.mrf.mxu0
        %v1522 = vadd.f32 %v1361, %v1521
        %v1523 = vpop.f32.mrf.mxu0
        %v1524 = vpop.f32.mrf.mxu0
        %v1525 = vadd.f32 %v1361, %v1524
        %v1526 = vpop.f32.mrf.mxu0
        %1527 = vmatprep.mubr.bf16.mxu0 0
        %1528 = vmatmul.mubr.bf16.gmra.mxu0 %v1438
        %v1529 = vpop.f32.mrf.mxu0
        %v1530 = vadd.f32 %v1361, %v1529
        %v1531 = vpop.f32.mrf.mxu0
        %v1532 = vpop.f32.mrf.mxu0
        %v1533 = vadd.f32 %v1361, %v1532
        %v1534 = vpop.f32.mrf.mxu0
        %1535 = vmatprep.mubr.bf16.mxu0 0
        %1536 = vmatmul.mubr.bf16.gmra.mxu0 %v1441
        %v1537 = vpop.f32.mrf.mxu0
        %v1538 = vadd.f32 %v1361, %v1537
        %v1539 = vpop.f32.mrf.mxu0
        %v1540 = vpop.f32.mrf.mxu0
        %v1541 = vadd.f32 %v1361, %v1540
        %v1542 = vpop.f32.mrf.mxu0
        %1543 = vdwg.mxu0
        %1544 = vst [vmem:[%s177] sm:$0xff] %v1482
        %1545 = vst [vmem:[%s177 + $0x8] sm:$0xff] %v1485
        %1546 = vst [vmem:[%s177 + $0x10] sm:$0xff] %v1490
        %1547 = vst [vmem:[%s177 + $0x18] sm:$0xff] %v1493
        %1548 = vst [vmem:[%s177 + $0x20] sm:$0xff] %v1498
        %1549 = vst [vmem:[%s177 + $0x28] sm:$0xff] %v1501
        %1550 = vst [vmem:[%s177 + $0x30] sm:$0xff] %v1506
        %1551 = vst [vmem:[%s177 + $0x38] sm:$0xff] %v1509
        %1552 = vst [vmem:[%s177 + $0x40] sm:$0xff] %v1514
        %1553 = vst [vmem:[%s177 + $0x48] sm:$0xff] %v1517
        %1554 = vst [vmem:[%s177 + $0x50] sm:$0xff] %v1522
        %1555 = vst [vmem:[%s177 + $0x58] sm:$0xff] %v1525
        %1556 = vst [vmem:[%s177 + $0x60] sm:$0xff] %v1530
        %1557 = vst [vmem:[%s177 + $0x68] sm:$0xff] %v1533
        %1558 = vst [vmem:[%s177 + $0x70] sm:$0xff] %v1538
        %1559 = vst [vmem:[%s177 + $0x78] sm:$0xff] %v1541
        %s1560 = sand.u32 %s107, 1
        %s1561 = scalar_lea.sflag [#allocation4], %s1560
        %s1562 = sand.u32 %s107, 1
        %s1563 = smul.addr %s1562, 128
        %s1564 = scalar_lea.vmem [#allocation3], %s1563
        // Predicated region
        $region33: #{tpu_custom_call.1} parent=31 // pred_check
          %p1565 = pneg %p117
        $region34: #{tpu_custom_call.1} parent=31 // pred_check_branch
          %1567 = sbr.rel (%p1565) target = $region36
        $region35: #{tpu_custom_call.1} parent=31 // pred_region
          %s1568 = smul.u32 16, %s22
          %s1570 = ssub.s32 2048, 2048
          %1571 = vsyncadd %s1561, %s1570
          %s1572 = smul.addr %s21, 32
          %s1573 = sadd.s32 %s1568, %s1572
          %s1574 = smul.addr %s1573, 128
          %s1575 = scalar_lea.hbm %s3, %s1574
          %s1576 = sshll.u32 %s1564, 4
          %s1577 = int_to_ptr.vmem [resolvable:$true] %s1576
          %1582 = dma.vmem_to_hbm [thread:$0]  %s1577, 2048, %s1575, %s1561, 128, 128, 8
        $region36: #{tpu_custom_call.1} parent=31 // pred_fallthru
          _
      $region32: #{tpu_custom_call.1} parent=5 // pred_fallthru
        _
      %p1583 = scmp.le.s32.totalorder 2, %s12
      // Predicated region
      $region37: #{tpu_custom_call.1} parent=5 // pred_check
        %p1584 = pneg %p1583
      $region38: #{tpu_custom_call.1} parent=5 // pred_check_branch
        %1586 = sbr.rel (%p1584) target = $region40
      $region39: #{tpu_custom_call.1} parent=5 // pred_region
        %s1587 = ssub.s32 %s12, 2
        // Predicated region
        $region41: #{tpu_custom_call.1} parent=39 // pred_check
          %p1588 = pneg %p123
        $region42: #{tpu_custom_call.1} parent=39 // pred_check_branch
          %1590 = sbr.rel (%p1588) target = $region44
        $region43: #{tpu_custom_call.1} parent=39 // pred_region
          %s1591 = sand.u32 %s108, 1
          %s1592 = scalar_lea.sflag [#allocation4], %s1591
          %s1593 = sand.u32 %s108, 1
          %s1594 = smul.addr %s1593, 128
          %s1595 = scalar_lea.vmem [#allocation3], %s1594
          %1596 = dma.done %s1592, 2048
        $region44: #{tpu_custom_call.1} parent=39 // pred_fallthru
          _
      $region40: #{tpu_custom_call.1} parent=5 // pred_fallthru
        _
    $region6: #{tpu_custom_call.1} parent=1 // loop_footer
      %s16 = sadd.s32 1, %s12
    $region7: #{tpu_custom_call.1} parent=1 // loop_footer_branch
      %11 = sbr.rel target = $region3
    $region8: #{tpu_custom_call.1} parent=1 // loop_exit
      _
    %1597 = vsyncpa [#allocation4], 1
    %s1598 = scalar_lea.sflag [#allocation4], 1
    %1599 = vsyncpa %s1598, 1

</llo_original>
